<compile_context>
chip_gen: v7x
topology: tpu7x:2x2x1
jax: 0.10.0
libtpu: 0.0.40
codegen_flags: <defaults>
</compile_context>

<pallas_src>
from typing import NamedTuple

import numpy as np
import jax
import jax.numpy as jnp
from jax import lax
from jax.experimental import pallas as pl
from jax.experimental.pallas import tpu as pltpu


class LatentState(NamedTuple):
    input_len: jnp.ndarray
    dec_input: jnp.ndarray
    dis_input: jnp.ndarray


# ----------------------------------------------------------------------------
# Kernel 1: bulk matmul + bias  (hoisted gate projection / output projection)
# ----------------------------------------------------------------------------

def _matmul_bias_kernel(x_ref, w_ref, b_ref, o_ref):
    # bf16 MXU operands with f32 accumulation (native on v6e/v7x, fine on v5e).
    o_ref[...] = (jnp.dot(x_ref[...].astype(jnp.bfloat16), w_ref[...],
                          preferred_element_type=jnp.float32)
                  + b_ref[...]).astype(o_ref.dtype)


def matmul_bias(x2d, w_bf16, b_f32, row_tile=512):
    """(n, k) f32 @ (k, m) bf16 + (1, m) f32 -> (n, m) f32, row-tiled."""
    n, k = x2d.shape
    m = w_bf16.shape[1]
    # Use a row grid when it divides evenly; otherwise a single resident block.
    tm = row_tile if (n > row_tile and n % row_tile == 0) else n
    return pl.pallas_call(
        _matmul_bias_kernel,
        out_shape=jax.ShapeDtypeStruct((n, m), jnp.float32),
        grid=(n // tm,),
        in_specs=[pl.BlockSpec((tm, k), lambda i: (i, 0)),
                  pl.BlockSpec((k, m), lambda i: (0, 0)),
                  pl.BlockSpec((1, m), lambda i: (0, 0))],
        out_specs=pl.BlockSpec((tm, m), lambda i: (i, 0)),
        compiler_params=pltpu.CompilerParams(
            dimension_semantics=("parallel",)),
    )(x2d, w_bf16, b_f32)


# ----------------------------------------------------------------------------
# Kernel 2: fused bidirectional LSTM recurrence over precomputed gates_x
# ----------------------------------------------------------------------------

def _make_bilstm_kernel(slen, bs, H):
    G = 4 * H

    def kernel(gx_ref, len_ref, whhf_ref, whhr_ref, out_ref,
               outf_sc, outr_sc, hf, cf, hr, cr):
        # gx_ref : (slen, bs, 8H) f32  -- x@Wih + b for both directions (hoisted)
        # len_ref: (bs, 1) int32       -- sentence lengths (replaces packed seq)
        # whh*   : (H, 4H) bf16        -- recurrent weights (torch layout, transposed)
        # out_ref: (slen, bs, 2H) f32  -- [fwd | rev] hidden states, 0 past length
        lens = len_ref[...]                       # (bs, 1) int32
        hf[...] = jnp.zeros_like(hf)
        cf[...] = jnp.zeros_like(cf)
        hr[...] = jnp.zeros_like(hr)
        cr[...] = jnp.zeros_like(cr)

        def cell(pre, c_prev):
            # torch.nn.LSTM gate order: i, f, g, o.
            # TODO(synk): for production H (padded to a multiple of 128) reorder
            # gate columns so these slices are lane-tile aligned; at H=32 each
            # slice is an intra-vreg select.
            i_g = jax.nn.sigmoid(pre[:, 0 * H:1 * H])
            f_g = jax.nn.sigmoid(pre[:, 1 * H:2 * H])
            g_g = jnp.tanh(pre[:, 2 * H:3 * H])
            o_g = jax.nn.sigmoid(pre[:, 3 * H:4 * H])
            c_new = f_g * c_prev + i_g * g_g
            h_new = o_g * jnp.tanh(c_new)
            return h_new, c_new

        # Fully unrolled time loop (slen is small & static).  Both directions
        # advance in the same iteration, so their independent MXU / EUP / VPU
        # work interleaves and hides the serial h-dependency latency.
        for t in range(slen):
            tr = slen - 1 - t
            keep_f = t < lens                     # (bs, 1) bool
            keep_r = tr < lens
            m_f = keep_f.astype(jnp.float32)
            m_r = keep_r.astype(jnp.float32)

            pre_f = gx_ref[t, :, 0:G] + jnp.dot(
                hf[...].astype(jnp.bfloat16), whhf_ref[...],
                preferred_element_type=jnp.float32)
            pre_r = gx_ref[tr, :, G:2 * G] + jnp.dot(
                hr[...].astype(jnp.bfloat16), whhr_ref[...],
                preferred_element_type=jnp.float32)

            hf_new, cf_new = cell(pre_f, cf[...])
            hr_new, cr_new = cell(pre_r, cr[...])

            # Masked state update == packed-sequence semantics: padded steps
            # neither advance nor contaminate the state.
            hf[...] = jnp.where(keep_f, hf_new, hf[...])
            cf[...] = jnp.where(keep_f, cf_new, cf[...])
            hr[...] = jnp.where(keep_r, hr_new, hr[...])
            cr[...] = jnp.where(keep_r, cr_new, cr[...])

            outf_sc[t] = hf_new * m_f
            outr_sc[tr] = hr_new * m_r

        # Combine both directions in-kernel (no wrapper-side concatenate).
        out_ref[:, :, 0:H] = outf_sc[...]
        out_ref[:, :, H:2 * H] = outr_sc[...]

    return kernel


def bilstm_layer(gx3d, len2d, whh_f, whh_r):
    slen, bs, g8 = gx3d.shape
    H = g8 // 8
    return pl.pallas_call(
        _make_bilstm_kernel(slen, bs, H),
        out_shape=jax.ShapeDtypeStruct((slen, bs, 2 * H), jnp.float32),
        in_specs=[pl.BlockSpec((slen, bs, 8 * H), lambda: (0, 0, 0)),
                  pl.BlockSpec((bs, 1), lambda: (0, 0)),
                  pl.BlockSpec((H, 4 * H), lambda: (0, 0)),
                  pl.BlockSpec((H, 4 * H), lambda: (0, 0))],
        out_specs=pl.BlockSpec((slen, bs, 2 * H), lambda: (0, 0, 0)),
        scratch_shapes=[pltpu.VMEM((slen, bs, H), jnp.float32),
                        pltpu.VMEM((slen, bs, H), jnp.float32),
                        pltpu.VMEM((bs, H), jnp.float32),
                        pltpu.VMEM((bs, H), jnp.float32),
                        pltpu.VMEM((bs, H), jnp.float32),
                        pltpu.VMEM((bs, H), jnp.float32)],
    )(gx3d, len2d, whh_f, whh_r)


# ----------------------------------------------------------------------------
# Encoder forward (kernel version)
# ----------------------------------------------------------------------------

def encoder_forward(params, weights, x, lengths):
    """x: (slen, bs) int32 word ids; lengths: (bs,) with max(lengths) == slen."""
    slen, bs = x.shape
    E, H = params["emb_dim"], params["hidden_dim"]

    # Sort-by-length + unsort in the PyTorch code cancel exactly; packed-seq
    # behaviour is reproduced by the in-kernel length mask.
    emb = weights["emb"][x]                                   # embedding gather: XLA glue
    # F.dropout: identity (eval / training=False)
    len2d = jnp.asarray(lengths, jnp.int32).reshape(bs, 1)

    h2d = emb.reshape(slen * bs, E).astype(jnp.float32)       # time-major rows
    for l in range(params["n_enc_layers"]):
        wih_all, b_all, whh_f, whh_r = weights["lstm"][l]
        # Hoisted input->gate projection for BOTH directions: one dense matmul.
        gx = matmul_bias(h2d, wih_all, b_all).reshape(slen, bs, 8 * H)
        out = bilstm_layer(gx, len2d, whh_f, whh_r)           # (slen, bs, 2H)
        h2d = out.reshape(slen * bs, 2 * H)
        # inter-layer LSTM dropout: identity in eval mode

    proj = matmul_bias(h2d, weights["proj_t"], weights["proj_b0"])
    return proj.reshape(slen, bs, E)


# ----------------------------------------------------------------------------
# Pure-JAX reference (same numerics: bf16 MXU operands, f32 accumulate)
# ----------------------------------------------------------------------------

def _lstm_dir_ref(gx_dir, mask, whh, H, reverse):
    slen, bs, _ = gx_dir.shape
    if reverse:
        gx_dir = gx_dir[::-1]
        mask = mask[::-1]

    def step(carry, inp):
        h, c = carry
        g_t, m_t = inp
        pre = g_t + jnp.dot(h.astype(jnp.bfloat16), whh,
                            preferred_element_type=jnp.float32)
        i = jax.nn.sigmoid(pre[:, :H])
        f = jax.nn.sigmoid(pre[:, H:2 * H])
        g = jnp.tanh(pre[:, 2 * H:3 * H])
        o = jax.nn.sigmoid(pre[:, 3 * H:])
        c_new = f * c + i * g
        h_new = o * jnp.tanh(c_new)
        return ((jnp.where(m_t > 0, h_new, h), jnp.where(m_t > 0, c_new, c)),
                h_new * m_t)

    init = (jnp.zeros((bs, H), jnp.float32), jnp.zeros((bs, H), jnp.float32))
    _, out = lax.scan(step, init, (gx_dir, mask))
    return out[::-1] if reverse else out


def encoder_forward_ref(params, weights, x, lengths):
    slen, bs = x.shape
    E, H = params["emb_dim"], params["hidden_dim"]
    emb = weights["emb"][x].astype(jnp.float32)
    lens = jnp.asarray(lengths, jnp.int32)
    mask = (jnp.arange(slen)[:, None] < lens[None, :]).astype(jnp.float32)[:, :, None]
    h2d = emb.reshape(slen * bs, E)
    for l in range(params["n_enc_layers"]):
        wih_all, b_all, whh_f, whh_r = weights["lstm"][l]
        gx = (jnp.dot(h2d.astype(jnp.bfloat16), wih_all,
                      preferred_element_type=jnp.float32)
              + b_all).reshape(slen, bs, 8 * H)
        of = _lstm_dir_ref(gx[:, :, :4 * H], mask, whh_f, H, reverse=False)
        orv = _lstm_dir_ref(gx[:, :, 4 * H:], mask, whh_r, H, reverse=True)
        h2d = jnp.concatenate([of, orv], axis=-1).reshape(slen * bs, 2 * H)
    proj = jnp.dot(h2d.astype(jnp.bfloat16), weights["proj_t"],
                   preferred_element_type=jnp.float32)
    return proj.reshape(slen, bs, E)


# ----------------------------------------------------------------------------
# Deterministic parameter init (matches the module's shapes)
# ----------------------------------------------------------------------------

def init_weights(key, params):
    E, H = params["emb_dim"], params["hidden_dim"]
    n_words, pad_index = params["n_words"], params["pad_index"]
    keys = iter(jax.random.split(key, 64))

    emb = 0.1 * jax.random.normal(next(keys), (n_words, E), dtype=jnp.float32)
    emb = emb.at[pad_index].set(0.0)

    bound = 1.0 / float(np.sqrt(H))
    lstm = []
    for l in range(params["n_enc_layers"]):
        din = E if l == 0 else 2 * H
        per_dir = []
        for _d in range(2):     # 0 = forward, 1 = reverse
            w_ih = jax.random.uniform(next(keys), (4 * H, din), jnp.float32, -bound, bound)
            w_hh = jax.random.uniform(next(keys), (4 * H, H), jnp.float32, -bound, bound)
            b_ih = jax.random.uniform(next(keys), (4 * H,), jnp.float32, -bound, bound)
            b_hh = jax.random.uniform(next(keys), (4 * H,), jnp.float32, -bound, bound)
            per_dir.append((w_ih, w_hh, b_ih + b_hh))
        wih_all = jnp.concatenate([per_dir[0][0].T, per_dir[1][0].T], axis=1)   # (din, 8H)
        b_all = jnp.concatenate([per_dir[0][2], per_dir[1][2]])[None, :]        # (1, 8H)
        lstm.append((wih_all.astype(jnp.bfloat16),
                     b_all.astype(jnp.float32),
                     per_dir[0][1].T.astype(jnp.bfloat16),
                     per_dir[1][1].T.astype(jnp.bfloat16)))

    pb = 1.0 / float(np.sqrt(2 * H))
    proj_w = jax.random.uniform(next(keys), (E, 2 * H), jnp.float32, -pb, pb)   # (out, in)
    return {"emb": emb, "lstm": lstm,
            "proj_t": proj_w.T.astype(jnp.bfloat16),
            "proj_b0": jnp.zeros((1, E), jnp.float32)}


# ----------------------------------------------------------------------------
# Main
# ----------------------------------------------------------------------------

if __name__ == "__main__":
    params = dict(
        n_words=32, emb_dim=16, hidden_dim=32, n_enc_layers=2,
        pad_index=0, dropout=0.0, pool_latent=None, dis_input_proj=True,
    )

    key = jax.random.PRNGKey(0)
    wkey, xkey = jax.random.split(key)
    weights = init_weights(wkey, params)

    slen, bs = 8, 4
    lengths = np.array([8, 8, 6, 3], dtype=np.int32)   # decreasing, max == slen
    assert int(np.max(lengths)) == slen
    x_np = np.array(jax.random.randint(xkey, (slen, bs), 1, params["n_words"]))
    for b in range(bs):
        x_np[lengths[b]:, b] = params["pad_index"]
    x = jnp.asarray(x_np, dtype=jnp.int32)

    fwd = jax.jit(lambda w, xx, ll: encoder_forward(params, w, xx, ll))
    padded_output = jax.block_until_ready(fwd(weights, x, jnp.asarray(lengths)))

    # dis_input_proj=True branch: masked_select of padded_output with the
    # all-words length mask -> (sum(lengths), emb_dim), rows in (t, b) order.
    # Data-dependent output size -> host-side glue.
    po = np.asarray(padded_output)
    sel = [(t, b) for t in range(slen) for b in range(bs) if t < lengths[b]]
    t_sel = np.array([s[0] for s in sel])
    b_sel = np.array([s[1] for s in sel])
    dis_input = po[t_sel, b_sel, :]
    assert dis_input.shape == (int(lengths.sum()), params["emb_dim"])

    # Correctness check.  Tolerance reflects the intentional bf16 MXU operands
    # (f32 accumulation); both kernel and reference use identical bf16 casts.
    ref = np.asarray(encoder_forward_ref(params, weights, x, lengths))
    assert po.shape == (slen, bs, params["emb_dim"])
    assert np.allclose(po, ref, atol=2e-3, rtol=2e-3), \
        "kernel/reference mismatch: max abs diff %.3e" % np.max(np.abs(po - ref))

    state = LatentState(
        input_len=jnp.asarray(lengths),
        dec_input=padded_output,
        dis_input=jnp.asarray(dis_input),
    )
    jax.block_until_ready(state.dec_input)

    # TODO(synk): pool_latent avg/max-pool1d branch not exercised (configured None).
    print("KERNEL_OK")
</pallas_src>

<mosaic_0001>
module attributes {stable_mosaic.version = 11 : i64} {
  func.func @_matmul_bias_kernel(%arg0: i32, %arg1: memref<32x16xf32, #tpu.memory_space<vmem>>, %arg2: memref<16x256xbf16, #tpu.memory_space<vmem>>, %arg3: memref<1x256xf32, #tpu.memory_space<vmem>>, %arg4: memref<32x256xf32, #tpu.memory_space<vmem>>) attributes {dimension_semantics = [#tpu.dimension_semantics<parallel>], iteration_bounds = array<i64: 1>, scalar_prefetch = 0 : i64, scratch_operands = 0 : i64, tpu.core_type = #tpu.core_type<tc>, window_params = [{transform_indices = @transform_0, window_bounds = array<i64: 32, 16>}, {pipeline_mode = #tpu.pipeline_mode<synchronous>, transform_indices = @transform_1, window_bounds = array<i64: 16, 256>}, {pipeline_mode = #tpu.pipeline_mode<synchronous>, transform_indices = @transform_2, window_bounds = array<i64: 1, 256>}, {transform_indices = @transform_3, window_bounds = array<i64: 32, 256>}]} {
    %c0 = arith.constant 0 : index
    %c0_0 = arith.constant 0 : index
    %0 = vector.load %arg1[%c0, %c0_0] : memref<32x16xf32, #tpu.memory_space<vmem>>, vector<32x16xf32>
    %1 = arith.truncf %0 : vector<32x16xf32> to vector<32x16xbf16>
    %c0_1 = arith.constant 0 : index
    %c0_2 = arith.constant 0 : index
    %2 = vector.load %arg2[%c0_1, %c0_2] : memref<16x256xbf16, #tpu.memory_space<vmem>>, vector<16x256xbf16>
    %cst = arith.constant dense<0.000000e+00> : vector<32x256xf32>
    %3 = tpu.matmul %1, %2, %cst {dimension_numbers = #tpu.dot_dimension_numbers<[1], [0], [0], [1], [0, 0, 1, 1], [], []>} : vector<32x16xbf16>, vector<16x256xbf16>, vector<32x256xf32> -> vector<32x256xf32>
    %c0_3 = arith.constant 0 : index
    %c0_4 = arith.constant 0 : index
    %4 = vector.load %arg3[%c0_3, %c0_4] : memref<1x256xf32, #tpu.memory_space<vmem>>, vector<1x256xf32>
    %5 = vector.broadcast %4 : vector<1x256xf32> to vector<32x256xf32>
    %6 = arith.addf %3, %5 : vector<32x256xf32>
    %c0_5 = arith.constant 0 : index
    %c0_6 = arith.constant 0 : index
    %7 = vector.load %arg4[%c0_5, %c0_6] : memref<32x256xf32, #tpu.memory_space<vmem>>, vector<32x256xf32>
    tpu.vector_store %arg4[%c0_5, %c0_6], %6 {strides = array<i32>} : memref<32x256xf32, #tpu.memory_space<vmem>>, vector<32x256xf32>,
    return
  }
  func.func @transform_0(%arg0: i32) -> (i32, i32) {
    %c0_i32 = arith.constant 0 : i32
    %c0_i32_0 = arith.constant 0 : i32
    return %arg0, %c0_i32 : i32, i32
  }
  func.func @transform_1(%arg0: i32) -> (i32, i32) {
    %c0_i32 = arith.constant 0 : i32
    %c0_i32_0 = arith.constant 0 : i32
    %c0_i32_1 = arith.constant 0 : i32
    return %c0_i32, %c0_i32_0 : i32, i32
  }
  func.func @transform_2(%arg0: i32) -> (i32, i32) {
    %c0_i32 = arith.constant 0 : i32
    %c0_i32_0 = arith.constant 0 : i32
    %c0_i32_1 = arith.constant 0 : i32
    return %c0_i32, %c0_i32_0 : i32, i32
  }
  func.func @transform_3(%arg0: i32) -> (i32, i32) {
    %c0_i32 = arith.constant 0 : i32
    %c0_i32_0 = arith.constant 0 : i32
    return %arg0, %c0_i32 : i32, i32
  }
}

module attributes {stable_mosaic.version = 11 : i64} {
  func.func @_matmul_bias_kernel(%arg0: i32, %arg1: memref<32x64xf32, #tpu.memory_space<vmem>>, %arg2: memref<64x256xbf16, #tpu.memory_space<vmem>>, %arg3: memref<1x256xf32, #tpu.memory_space<vmem>>, %arg4: memref<32x256xf32, #tpu.memory_space<vmem>>) attributes {dimension_semantics = [#tpu.dimension_semantics<parallel>], iteration_bounds = array<i64: 1>, scalar_prefetch = 0 : i64, scratch_operands = 0 : i64, tpu.core_type = #tpu.core_type<tc>, window_params = [{transform_indices = @transform_0, window_bounds = array<i64: 32, 64>}, {pipeline_mode = #tpu.pipeline_mode<synchronous>, transform_indices = @transform_1, window_bounds = array<i64: 64, 256>}, {pipeline_mode = #tpu.pipeline_mode<synchronous>, transform_indices = @transform_2, window_bounds = array<i64: 1, 256>}, {transform_indices = @transform_3, window_bounds = array<i64: 32, 256>}]} {
    %c0 = arith.constant 0 : index
    %c0_0 = arith.constant 0 : index
    %0 = vector.load %arg1[%c0, %c0_0] : memref<32x64xf32, #tpu.memory_space<vmem>>, vector<32x64xf32>
    %1 = arith.truncf %0 : vector<32x64xf32> to vector<32x64xbf16>
    %c0_1 = arith.constant 0 : index
    %c0_2 = arith.constant 0 : index
    %2 = vector.load %arg2[%c0_1, %c0_2] : memref<64x256xbf16, #tpu.memory_space<vmem>>, vector<64x256xbf16>
    %cst = arith.constant dense<0.000000e+00> : vector<32x256xf32>
    %3 = tpu.matmul %1, %2, %cst {dimension_numbers = #tpu.dot_dimension_numbers<[1], [0], [0], [1], [0, 0, 1, 1], [], []>} : vector<32x64xbf16>, vector<64x256xbf16>, vector<32x256xf32> -> vector<32x256xf32>
    %c0_3 = arith.constant 0 : index
    %c0_4 = arith.constant 0 : index
    %4 = vector.load %arg3[%c0_3, %c0_4] : memref<1x256xf32, #tpu.memory_space<vmem>>, vector<1x256xf32>
    %5 = vector.broadcast %4 : vector<1x256xf32> to vector<32x256xf32>
    %6 = arith.addf %3, %5 : vector<32x256xf32>
    %c0_5 = arith.constant 0 : index
    %c0_6 = arith.constant 0 : index
    %7 = vector.load %arg4[%c0_5, %c0_6] : memref<32x256xf32, #tpu.memory_space<vmem>>, vector<32x256xf32>
    tpu.vector_store %arg4[%c0_5, %c0_6], %6 {strides = array<i32>} : memref<32x256xf32, #tpu.memory_space<vmem>>, vector<32x256xf32>,
    return
  }
  func.func @transform_0(%arg0: i32) -> (i32, i32) {
    %c0_i32 = arith.constant 0 : i32
    %c0_i32_0 = arith.constant 0 : i32
    return %arg0, %c0_i32 : i32, i32
  }
  func.func @transform_1(%arg0: i32) -> (i32, i32) {
    %c0_i32 = arith.constant 0 : i32
    %c0_i32_0 = arith.constant 0 : i32
    %c0_i32_1 = arith.constant 0 : i32
    return %c0_i32, %c0_i32_0 : i32, i32
  }
  func.func @transform_2(%arg0: i32) -> (i32, i32) {
    %c0_i32 = arith.constant 0 : i32
    %c0_i32_0 = arith.constant 0 : i32
    %c0_i32_1 = arith.constant 0 : i32
    return %c0_i32, %c0_i32_0 : i32, i32
  }
  func.func @transform_3(%arg0: i32) -> (i32, i32) {
    %c0_i32 = arith.constant 0 : i32
    %c0_i32_0 = arith.constant 0 : i32
    return %arg0, %c0_i32 : i32, i32
  }
}

module attributes {stable_mosaic.version = 11 : i64} {
  func.func @_matmul_bias_kernel(%arg0: i32, %arg1: memref<32x64xf32, #tpu.memory_space<vmem>>, %arg2: memref<64x16xbf16, #tpu.memory_space<vmem>>, %arg3: memref<1x16xf32, #tpu.memory_space<vmem>>, %arg4: memref<32x16xf32, #tpu.memory_space<vmem>>) attributes {dimension_semantics = [#tpu.dimension_semantics<parallel>], iteration_bounds = array<i64: 1>, scalar_prefetch = 0 : i64, scratch_operands = 0 : i64, tpu.core_type = #tpu.core_type<tc>, window_params = [{transform_indices = @transform_0, window_bounds = array<i64: 32, 64>}, {pipeline_mode = #tpu.pipeline_mode<synchronous>, transform_indices = @transform_1, window_bounds = array<i64: 64, 16>}, {pipeline_mode = #tpu.pipeline_mode<synchronous>, transform_indices = @transform_2, window_bounds = array<i64: 1, 16>}, {transform_indices = @transform_3, window_bounds = array<i64: 32, 16>}]} {
    %c0 = arith.constant 0 : index
    %c0_0 = arith.constant 0 : index
    %0 = vector.load %arg1[%c0, %c0_0] : memref<32x64xf32, #tpu.memory_space<vmem>>, vector<32x64xf32>
    %1 = arith.truncf %0 : vector<32x64xf32> to vector<32x64xbf16>
    %c0_1 = arith.constant 0 : index
    %c0_2 = arith.constant 0 : index
    %2 = vector.load %arg2[%c0_1, %c0_2] : memref<64x16xbf16, #tpu.memory_space<vmem>>, vector<64x16xbf16>
    %cst = arith.constant dense<0.000000e+00> : vector<32x16xf32>
    %3 = tpu.matmul %1, %2, %cst {dimension_numbers = #tpu.dot_dimension_numbers<[1], [0], [0], [1], [0, 0, 1, 1], [], []>} : vector<32x64xbf16>, vector<64x16xbf16>, vector<32x16xf32> -> vector<32x16xf32>
    %c0_3 = arith.constant 0 : index
    %c0_4 = arith.constant 0 : index
    %4 = vector.load %arg3[%c0_3, %c0_4] : memref<1x16xf32, #tpu.memory_space<vmem>>, vector<1x16xf32>
    %5 = vector.broadcast %4 : vector<1x16xf32> to vector<32x16xf32>
    %6 = arith.addf %3, %5 : vector<32x16xf32>
    %c0_5 = arith.constant 0 : index
    %c0_6 = arith.constant 0 : index
    %7 = vector.load %arg4[%c0_5, %c0_6] : memref<32x16xf32, #tpu.memory_space<vmem>>, vector<32x16xf32>
    tpu.vector_store %arg4[%c0_5, %c0_6], %6 {strides = array<i32>} : memref<32x16xf32, #tpu.memory_space<vmem>>, vector<32x16xf32>,
    return
  }
  func.func @transform_0(%arg0: i32) -> (i32, i32) {
    %c0_i32 = arith.constant 0 : i32
    %c0_i32_0 = arith.constant 0 : i32
    return %arg0, %c0_i32 : i32, i32
  }
  func.func @transform_1(%arg0: i32) -> (i32, i32) {
    %c0_i32 = arith.constant 0 : i32
    %c0_i32_0 = arith.constant 0 : i32
    %c0_i32_1 = arith.constant 0 : i32
    return %c0_i32, %c0_i32_0 : i32, i32
  }
  func.func @transform_2(%arg0: i32) -> (i32, i32) {
    %c0_i32 = arith.constant 0 : i32
    %c0_i32_0 = arith.constant 0 : i32
    %c0_i32_1 = arith.constant 0 : i32
    return %c0_i32, %c0_i32_0 : i32, i32
  }
  func.func @transform_3(%arg0: i32) -> (i32, i32) {
    %c0_i32 = arith.constant 0 : i32
    %c0_i32_0 = arith.constant 0 : i32
    return %arg0, %c0_i32 : i32, i32
  }
}

module attributes {stable_mosaic.version = 11 : i64} {
  func.func @kernel(%arg0: memref<8x4x256xf32, #tpu.memory_space<vmem>>, %arg1: memref<4x1xi32, #tpu.memory_space<vmem>>, %arg2: memref<32x128xbf16, #tpu.memory_space<vmem>>, %arg3: memref<32x128xbf16, #tpu.memory_space<vmem>>, %arg4: memref<8x4x64xf32, #tpu.memory_space<vmem>>, %arg5: memref<8x4x32xf32, #tpu.memory_space<vmem>>, %arg6: memref<8x4x32xf32, #tpu.memory_space<vmem>>, %arg7: memref<4x32xf32, #tpu.memory_space<vmem>>, %arg8: memref<4x32xf32, #tpu.memory_space<vmem>>, %arg9: memref<4x32xf32, #tpu.memory_space<vmem>>, %arg10: memref<4x32xf32, #tpu.memory_space<vmem>>) attributes {dimension_semantics = [], scalar_prefetch = 0 : i64, scratch_operands = 6 : i64, tpu.core_type = #tpu.core_type<tc>} {
    %c0 = arith.constant 0 : index
    %c0_0 = arith.constant 0 : index
    %0 = vector.load %arg1[%c0, %c0_0] : memref<4x1xi32, #tpu.memory_space<vmem>>, vector<4x1xi32>
    %cst = arith.constant 0.000000e+00 : f32
    %1 = vector.broadcast %cst : f32 to vector<4x32xf32>
    %c0_1 = arith.constant 0 : index
    %c0_2 = arith.constant 0 : index
    %2 = vector.load %arg7[%c0_1, %c0_2] : memref<4x32xf32, #tpu.memory_space<vmem>>, vector<4x32xf32>
    tpu.vector_store %arg7[%c0_1, %c0_2], %1 {strides = array<i32>} : memref<4x32xf32, #tpu.memory_space<vmem>>, vector<4x32xf32>,
    %cst_3 = arith.constant 0.000000e+00 : f32
    %3 = vector.broadcast %cst_3 : f32 to vector<4x32xf32>
    %c0_4 = arith.constant 0 : index
    %c0_5 = arith.constant 0 : index
    %4 = vector.load %arg8[%c0_4, %c0_5] : memref<4x32xf32, #tpu.memory_space<vmem>>, vector<4x32xf32>
    tpu.vector_store %arg8[%c0_4, %c0_5], %3 {strides = array<i32>} : memref<4x32xf32, #tpu.memory_space<vmem>>, vector<4x32xf32>,
    %cst_6 = arith.constant 0.000000e+00 : f32
    %5 = vector.broadcast %cst_6 : f32 to vector<4x32xf32>
    %c0_7 = arith.constant 0 : index
    %c0_8 = arith.constant 0 : index
    %6 = vector.load %arg9[%c0_7, %c0_8] : memref<4x32xf32, #tpu.memory_space<vmem>>, vector<4x32xf32>
    tpu.vector_store %arg9[%c0_7, %c0_8], %5 {strides = array<i32>} : memref<4x32xf32, #tpu.memory_space<vmem>>, vector<4x32xf32>,
    %cst_9 = arith.constant 0.000000e+00 : f32
    %7 = vector.broadcast %cst_9 : f32 to vector<4x32xf32>
    %c0_10 = arith.constant 0 : index
    %c0_11 = arith.constant 0 : index
    %8 = vector.load %arg10[%c0_10, %c0_11] : memref<4x32xf32, #tpu.memory_space<vmem>>, vector<4x32xf32>
    tpu.vector_store %arg10[%c0_10, %c0_11], %7 {strides = array<i32>} : memref<4x32xf32, #tpu.memory_space<vmem>>, vector<4x32xf32>,
    %c0_i32 = arith.constant 0 : i32
    %9 = vector.broadcast %c0_i32 : i32 to vector<4x1xi32>
    %10 = arith.cmpi sgt, %0, %9 : vector<4x1xi32>
    %c7_i32 = arith.constant 7 : i32
    %11 = vector.broadcast %c7_i32 : i32 to vector<4x1xi32>
    %12 = arith.cmpi sgt, %0, %11 : vector<4x1xi32>
    %13 = arith.extui %10 : vector<4x1xi1> to vector<4x1xi32>
    %14 = arith.sitofp %13 : vector<4x1xi32> to vector<4x1xf32>
    %15 = arith.extui %12 : vector<4x1xi1> to vector<4x1xi32>
    %16 = arith.sitofp %15 : vector<4x1xi32> to vector<4x1xf32>
    %c0_12 = arith.constant 0 : index
    %c0_13 = arith.constant 0 : index
    %c0_14 = arith.constant 0 : index
    %17 = vector.load %arg0[%c0_12, %c0_13, %c0_14] : memref<8x4x256xf32, #tpu.memory_space<vmem>>, vector<1x4x128xf32>
    %18 = vector.shape_cast %17 : vector<1x4x128xf32> to vector<4x128xf32>
    %c0_15 = arith.constant 0 : index
    %c0_16 = arith.constant 0 : index
    %19 = vector.load %arg7[%c0_15, %c0_16] : memref<4x32xf32, #tpu.memory_space<vmem>>, vector<4x32xf32>
    %20 = arith.truncf %19 : vector<4x32xf32> to vector<4x32xbf16>
    %c0_17 = arith.constant 0 : index
    %c0_18 = arith.constant 0 : index
    %21 = vector.load %arg2[%c0_17, %c0_18] : memref<32x128xbf16, #tpu.memory_space<vmem>>, vector<32x128xbf16>
    %cst_19 = arith.constant dense<0.000000e+00> : vector<4x128xf32>
    %22 = tpu.matmul %20, %21, %cst_19 {dimension_numbers = #tpu.dot_dimension_numbers<[1], [0], [0], [1], [0, 0, 1, 1], [], []>} : vector<4x32xbf16>, vector<32x128xbf16>, vector<4x128xf32> -> vector<4x128xf32>
    %23 = arith.addf %18, %22 : vector<4x128xf32>
    %c7 = arith.constant 7 : index
    %c0_20 = arith.constant 0 : index
    %c128 = arith.constant 128 : index
    %24 = vector.load %arg0[%c7, %c0_20, %c128] : memref<8x4x256xf32, #tpu.memory_space<vmem>>, vector<1x4x128xf32>
    %25 = vector.shape_cast %24 : vector<1x4x128xf32> to vector<4x128xf32>
    %c0_21 = arith.constant 0 : index
    %c0_22 = arith.constant 0 : index
    %26 = vector.load %arg9[%c0_21, %c0_22] : memref<4x32xf32, #tpu.memory_space<vmem>>, vector<4x32xf32>
    %27 = arith.truncf %26 : vector<4x32xf32> to vector<4x32xbf16>
    %c0_23 = arith.constant 0 : index
    %c0_24 = arith.constant 0 : index
    %28 = vector.load %arg3[%c0_23, %c0_24] : memref<32x128xbf16, #tpu.memory_space<vmem>>, vector<32x128xbf16>
    %cst_25 = arith.constant dense<0.000000e+00> : vector<4x128xf32>
    %29 = tpu.matmul %27, %28, %cst_25 {dimension_numbers = #tpu.dot_dimension_numbers<[1], [0], [0], [1], [0, 0, 1, 1], [], []>} : vector<4x32xbf16>, vector<32x128xbf16>, vector<4x128xf32> -> vector<4x128xf32>
    %30 = arith.addf %25, %29 : vector<4x128xf32>
    %c0_26 = arith.constant 0 : index
    %c0_27 = arith.constant 0 : index
    %31 = vector.load %arg8[%c0_26, %c0_27] : memref<4x32xf32, #tpu.memory_space<vmem>>, vector<4x32xf32>
    %32 = vector.extract_strided_slice %23 {offsets = [0, 0], sizes = [4, 32], strides = [1, 1]} : vector<4x128xf32> to vector<4x32xf32>
    %33 = arith.negf %32 : vector<4x32xf32>
    %34 = math.exp %33 : vector<4x32xf32>
    %cst_28 = arith.constant 1.000000e+00 : f32
    %35 = vector.broadcast %cst_28 : f32 to vector<4x32xf32>
    %36 = arith.addf %35, %34 : vector<4x32xf32>
    %37 = arith.divf %35, %36 : vector<4x32xf32>
    %38 = vector.extract_strided_slice %23 {offsets = [0, 32], sizes = [4, 32], strides = [1, 1]} : vector<4x128xf32> to vector<4x32xf32>
    %39 = arith.negf %38 : vector<4x32xf32>
    %40 = math.exp %39 : vector<4x32xf32>
    %cst_29 = arith.constant 1.000000e+00 : f32
    %41 = vector.broadcast %cst_29 : f32 to vector<4x32xf32>
    %42 = arith.addf %41, %40 : vector<4x32xf32>
    %43 = arith.divf %41, %42 : vector<4x32xf32>
    %44 = vector.extract_strided_slice %23 {offsets = [0, 64], sizes = [4, 32], strides = [1, 1]} : vector<4x128xf32> to vector<4x32xf32>
    %45 = math.tanh %44 : vector<4x32xf32>
    %46 = vector.extract_strided_slice %23 {offsets = [0, 96], sizes = [4, 32], strides = [1, 1]} : vector<4x128xf32> to vector<4x32xf32>
    %47 = arith.negf %46 : vector<4x32xf32>
    %48 = math.exp %47 : vector<4x32xf32>
    %cst_30 = arith.constant 1.000000e+00 : f32
    %49 = vector.broadcast %cst_30 : f32 to vector<4x32xf32>
    %50 = arith.addf %49, %48 : vector<4x32xf32>
    %51 = arith.divf %49, %50 : vector<4x32xf32>
    %52 = arith.mulf %43, %31 : vector<4x32xf32>
    %53 = arith.mulf %37, %45 : vector<4x32xf32>
    %54 = arith.addf %52, %53 : vector<4x32xf32>
    %55 = math.tanh %54 : vector<4x32xf32>
    %56 = arith.mulf %51, %55 : vector<4x32xf32>
    %c0_31 = arith.constant 0 : index
    %c0_32 = arith.constant 0 : index
    %57 = vector.load %arg10[%c0_31, %c0_32] : memref<4x32xf32, #tpu.memory_space<vmem>>, vector<4x32xf32>
    %58 = vector.extract_strided_slice %30 {offsets = [0, 0], sizes = [4, 32], strides = [1, 1]} : vector<4x128xf32> to vector<4x32xf32>
    %59 = arith.negf %58 : vector<4x32xf32>
    %60 = math.exp %59 : vector<4x32xf32>
    %cst_33 = arith.constant 1.000000e+00 : f32
    %61 = vector.broadcast %cst_33 : f32 to vector<4x32xf32>
    %62 = arith.addf %61, %60 : vector<4x32xf32>
    %63 = arith.divf %61, %62 : vector<4x32xf32>
    %64 = vector.extract_strided_slice %30 {offsets = [0, 32], sizes = [4, 32], strides = [1, 1]} : vector<4x128xf32> to vector<4x32xf32>
    %65 = arith.negf %64 : vector<4x32xf32>
    %66 = math.exp %65 : vector<4x32xf32>
    %cst_34 = arith.constant 1.000000e+00 : f32
    %67 = vector.broadcast %cst_34 : f32 to vector<4x32xf32>
    %68 = arith.addf %67, %66 : vector<4x32xf32>
    %69 = arith.divf %67, %68 : vector<4x32xf32>
    %70 = vector.extract_strided_slice %30 {offsets = [0, 64], sizes = [4, 32], strides = [1, 1]} : vector<4x128xf32> to vector<4x32xf32>
    %71 = math.tanh %70 : vector<4x32xf32>
    %72 = vector.extract_strided_slice %30 {offsets = [0, 96], sizes = [4, 32], strides = [1, 1]} : vector<4x128xf32> to vector<4x32xf32>
    %73 = arith.negf %72 : vector<4x32xf32>
    %74 = math.exp %73 : vector<4x32xf32>
    %cst_35 = arith.constant 1.000000e+00 : f32
    %75 = vector.broadcast %cst_35 : f32 to vector<4x32xf32>
    %76 = arith.addf %75, %74 : vector<4x32xf32>
    %77 = arith.divf %75, %76 : vector<4x32xf32>
    %78 = arith.mulf %69, %57 : vector<4x32xf32>
    %79 = arith.mulf %63, %71 : vector<4x32xf32>
    %80 = arith.addf %78, %79 : vector<4x32xf32>
    %81 = math.tanh %80 : vector<4x32xf32>
    %82 = arith.mulf %77, %81 : vector<4x32xf32>
    %c0_36 = arith.constant 0 : index
    %c0_37 = arith.constant 0 : index
    %83 = vector.load %arg7[%c0_36, %c0_37] : memref<4x32xf32, #tpu.memory_space<vmem>>, vector<4x32xf32>
    %84 = vector.shape_cast %10 : vector<4x1xi1> to vector<4x1xi1>
    %85 = vector.broadcast %84 : vector<4x1xi1> to vector<4x32xi1>
    %86 = arith.select %85, %56, %83 : vector<4x32xi1>, vector<4x32xf32>
    %c0_38 = arith.constant 0 : index
    %c0_39 = arith.constant 0 : index
    %87 = vector.load %arg7[%c0_38, %c0_39] : memref<4x32xf32, #tpu.memory_space<vmem>>, vector<4x32xf32>
    tpu.vector_store %arg7[%c0_38, %c0_39], %86 {strides = array<i32>} : memref<4x32xf32, #tpu.memory_space<vmem>>, vector<4x32xf32>,
    %c0_40 = arith.constant 0 : index
    %c0_41 = arith.constant 0 : index
    %88 = vector.load %arg8[%c0_40, %c0_41] : memref<4x32xf32, #tpu.memory_space<vmem>>, vector<4x32xf32>
    %89 = vector.shape_cast %10 : vector<4x1xi1> to vector<4x1xi1>
    %90 = vector.broadcast %89 : vector<4x1xi1> to vector<4x32xi1>
    %91 = arith.select %90, %54, %88 : vector<4x32xi1>, vector<4x32xf32>
    %c0_42 = arith.constant 0 : index
    %c0_43 = arith.constant 0 : index
    %92 = vector.load %arg8[%c0_42, %c0_43] : memref<4x32xf32, #tpu.memory_space<vmem>>, vector<4x32xf32>
    tpu.vector_store %arg8[%c0_42, %c0_43], %91 {strides = array<i32>} : memref<4x32xf32, #tpu.memory_space<vmem>>, vector<4x32xf32>,
    %c0_44 = arith.constant 0 : index
    %c0_45 = arith.constant 0 : index
    %93 = vector.load %arg9[%c0_44, %c0_45] : memref<4x32xf32, #tpu.memory_space<vmem>>, vector<4x32xf32>
    %94 = vector.shape_cast %12 : vector<4x1xi1> to vector<4x1xi1>
    %95 = vector.broadcast %94 : vector<4x1xi1> to vector<4x32xi1>
    %96 = arith.select %95, %82, %93 : vector<4x32xi1>, vector<4x32xf32>
    %c0_46 = arith.constant 0 : index
    %c0_47 = arith.constant 0 : index
    %97 = vector.load %arg9[%c0_46, %c0_47] : memref<4x32xf32, #tpu.memory_space<vmem>>, vector<4x32xf32>
    tpu.vector_store %arg9[%c0_46, %c0_47], %96 {strides = array<i32>} : memref<4x32xf32, #tpu.memory_space<vmem>>, vector<4x32xf32>,
    %c0_48 = arith.constant 0 : index
    %c0_49 = arith.constant 0 : index
    %98 = vector.load %arg10[%c0_48, %c0_49] : memref<4x32xf32, #tpu.memory_space<vmem>>, vector<4x32xf32>
    %99 = vector.shape_cast %12 : vector<4x1xi1> to vector<4x1xi1>
    %100 = vector.broadcast %99 : vector<4x1xi1> to vector<4x32xi1>
    %101 = arith.select %100, %80, %98 : vector<4x32xi1>, vector<4x32xf32>
    %c0_50 = arith.constant 0 : index
    %c0_51 = arith.constant 0 : index
    %102 = vector.load %arg10[%c0_50, %c0_51] : memref<4x32xf32, #tpu.memory_space<vmem>>, vector<4x32xf32>
    tpu.vector_store %arg10[%c0_50, %c0_51], %101 {strides = array<i32>} : memref<4x32xf32, #tpu.memory_space<vmem>>, vector<4x32xf32>,
    %103 = vector.broadcast %14 : vector<4x1xf32> to vector<4x32xf32>
    %104 = arith.mulf %56, %103 : vector<4x32xf32>
    %c0_52 = arith.constant 0 : index
    %c0_53 = arith.constant 0 : index
    %c0_54 = arith.constant 0 : index
    %105 = vector.load %arg5[%c0_52, %c0_53, %c0_54] : memref<8x4x32xf32, #tpu.memory_space<vmem>>, vector<1x4x32xf32>
    %106 = vector.shape_cast %105 : vector<1x4x32xf32> to vector<4x32xf32>
    %107 = vector.shape_cast %104 : vector<4x32xf32> to vector<1x4x32xf32>
    tpu.vector_store %arg5[%c0_52, %c0_53, %c0_54], %107 {strides = array<i32>} : memref<8x4x32xf32, #tpu.memory_space<vmem>>, vector<1x4x32xf32>,
    %108 = vector.broadcast %16 : vector<4x1xf32> to vector<4x32xf32>
    %109 = arith.mulf %82, %108 : vector<4x32xf32>
    %c7_55 = arith.constant 7 : index
    %c0_56 = arith.constant 0 : index
    %c0_57 = arith.constant 0 : index
    %110 = vector.load %arg6[%c7_55, %c0_56, %c0_57] : memref<8x4x32xf32, #tpu.memory_space<vmem>>, vector<1x4x32xf32>
    %111 = vector.shape_cast %110 : vector<1x4x32xf32> to vector<4x32xf32>
    %112 = vector.shape_cast %109 : vector<4x32xf32> to vector<1x4x32xf32>
    tpu.vector_store %arg6[%c7_55, %c0_56, %c0_57], %112 {strides = array<i32>} : memref<8x4x32xf32, #tpu.memory_space<vmem>>, vector<1x4x32xf32>,
    %c1_i32 = arith.constant 1 : i32
    %113 = vector.broadcast %c1_i32 : i32 to vector<4x1xi32>
    %114 = arith.cmpi sgt, %0, %113 : vector<4x1xi32>
    %c6_i32 = arith.constant 6 : i32
    %115 = vector.broadcast %c6_i32 : i32 to vector<4x1xi32>
    %116 = arith.cmpi sgt, %0, %115 : vector<4x1xi32>
    %117 = arith.extui %114 : vector<4x1xi1> to vector<4x1xi32>
    %118 = arith.sitofp %117 : vector<4x1xi32> to vector<4x1xf32>
    %119 = arith.extui %116 : vector<4x1xi1> to vector<4x1xi32>
    %120 = arith.sitofp %119 : vector<4x1xi32> to vector<4x1xf32>
    %c1 = arith.constant 1 : index
    %c0_58 = arith.constant 0 : index
    %c0_59 = arith.constant 0 : index
    %121 = vector.load %arg0[%c1, %c0_58, %c0_59] : memref<8x4x256xf32, #tpu.memory_space<vmem>>, vector<1x4x128xf32>
    %122 = vector.shape_cast %121 : vector<1x4x128xf32> to vector<4x128xf32>
    %c0_60 = arith.constant 0 : index
    %c0_61 = arith.constant 0 : index
    %123 = vector.load %arg7[%c0_60, %c0_61] : memref<4x32xf32, #tpu.memory_space<vmem>>, vector<4x32xf32>
    %124 = arith.truncf %123 : vector<4x32xf32> to vector<4x32xbf16>
    %c0_62 = arith.constant 0 : index
    %c0_63 = arith.constant 0 : index
    %125 = vector.load %arg2[%c0_62, %c0_63] : memref<32x128xbf16, #tpu.memory_space<vmem>>, vector<32x128xbf16>
    %cst_64 = arith.constant dense<0.000000e+00> : vector<4x128xf32>
    %126 = tpu.matmul %124, %125, %cst_64 {dimension_numbers = #tpu.dot_dimension_numbers<[1], [0], [0], [1], [0, 0, 1, 1], [], []>} : vector<4x32xbf16>, vector<32x128xbf16>, vector<4x128xf32> -> vector<4x128xf32>
    %127 = arith.addf %122, %126 : vector<4x128xf32>
    %c6 = arith.constant 6 : index
    %c0_65 = arith.constant 0 : index
    %c128_66 = arith.constant 128 : index
    %128 = vector.load %arg0[%c6, %c0_65, %c128_66] : memref<8x4x256xf32, #tpu.memory_space<vmem>>, vector<1x4x128xf32>
    %129 = vector.shape_cast %128 : vector<1x4x128xf32> to vector<4x128xf32>
    %c0_67 = arith.constant 0 : index
    %c0_68 = arith.constant 0 : index
    %130 = vector.load %arg9[%c0_67, %c0_68] : memref<4x32xf32, #tpu.memory_space<vmem>>, vector<4x32xf32>
    %131 = arith.truncf %130 : vector<4x32xf32> to vector<4x32xbf16>
    %c0_69 = arith.constant 0 : index
    %c0_70 = arith.constant 0 : index
    %132 = vector.load %arg3[%c0_69, %c0_70] : memref<32x128xbf16, #tpu.memory_space<vmem>>, vector<32x128xbf16>
    %cst_71 = arith.constant dense<0.000000e+00> : vector<4x128xf32>
    %133 = tpu.matmul %131, %132, %cst_71 {dimension_numbers = #tpu.dot_dimension_numbers<[1], [0], [0], [1], [0, 0, 1, 1], [], []>} : vector<4x32xbf16>, vector<32x128xbf16>, vector<4x128xf32> -> vector<4x128xf32>
    %134 = arith.addf %129, %133 : vector<4x128xf32>
    %c0_72 = arith.constant 0 : index
    %c0_73 = arith.constant 0 : index
    %135 = vector.load %arg8[%c0_72, %c0_73] : memref<4x32xf32, #tpu.memory_space<vmem>>, vector<4x32xf32>
    %136 = vector.extract_strided_slice %127 {offsets = [0, 0], sizes = [4, 32], strides = [1, 1]} : vector<4x128xf32> to vector<4x32xf32>
    %137 = arith.negf %136 : vector<4x32xf32>
    %138 = math.exp %137 : vector<4x32xf32>
    %cst_74 = arith.constant 1.000000e+00 : f32
    %139 = vector.broadcast %cst_74 : f32 to vector<4x32xf32>
    %140 = arith.addf %139, %138 : vector<4x32xf32>
    %141 = arith.divf %139, %140 : vector<4x32xf32>
    %142 = vector.extract_strided_slice %127 {offsets = [0, 32], sizes = [4, 32], strides = [1, 1]} : vector<4x128xf32> to vector<4x32xf32>
    %143 = arith.negf %142 : vector<4x32xf32>
    %144 = math.exp %143 : vector<4x32xf32>
    %cst_75 = arith.constant 1.000000e+00 : f32
    %145 = vector.broadcast %cst_75 : f32 to vector<4x32xf32>
    %146 = arith.addf %145, %144 : vector<4x32xf32>
    %147 = arith.divf %145, %146 : vector<4x32xf32>
    %148 = vector.extract_strided_slice %127 {offsets = [0, 64], sizes = [4, 32], strides = [1, 1]} : vector<4x128xf32> to vector<4x32xf32>
    %149 = math.tanh %148 : vector<4x32xf32>
    %150 = vector.extract_strided_slice %127 {offsets = [0, 96], sizes = [4, 32], strides = [1, 1]} : vector<4x128xf32> to vector<4x32xf32>
    %151 = arith.negf %150 : vector<4x32xf32>
    %152 = math.exp %151 : vector<4x32xf32>
    %cst_76 = arith.constant 1.000000e+00 : f32
    %153 = vector.broadcast %cst_76 : f32 to vector<4x32xf32>
    %154 = arith.addf %153, %152 : vector<4x32xf32>
    %155 = arith.divf %153, %154 : vector<4x32xf32>
    %156 = arith.mulf %147, %135 : vector<4x32xf32>
    %157 = arith.mulf %141, %149 : vector<4x32xf32>
    %158 = arith.addf %156, %157 : vector<4x32xf32>
    %159 = math.tanh %158 : vector<4x32xf32>
    %160 = arith.mulf %155, %159 : vector<4x32xf32>
    %c0_77 = arith.constant 0 : index
    %c0_78 = arith.constant 0 : index
    %161 = vector.load %arg10[%c0_77, %c0_78] : memref<4x32xf32, #tpu.memory_space<vmem>>, vector<4x32xf32>
    %162 = vector.extract_strided_slice %134 {offsets = [0, 0], sizes = [4, 32], strides = [1, 1]} : vector<4x128xf32> to vector<4x32xf32>
    %163 = arith.negf %162 : vector<4x32xf32>
    %164 = math.exp %163 : vector<4x32xf32>
    %cst_79 = arith.constant 1.000000e+00 : f32
    %165 = vector.broadcast %cst_79 : f32 to vector<4x32xf32>
    %166 = arith.addf %165, %164 : vector<4x32xf32>
    %167 = arith.divf %165, %166 : vector<4x32xf32>
    %168 = vector.extract_strided_slice %134 {offsets = [0, 32], sizes = [4, 32], strides = [1, 1]} : vector<4x128xf32> to vector<4x32xf32>
    %169 = arith.negf %168 : vector<4x32xf32>
    %170 = math.exp %169 : vector<4x32xf32>
    %cst_80 = arith.constant 1.000000e+00 : f32
    %171 = vector.broadcast %cst_80 : f32 to vector<4x32xf32>
    %172 = arith.addf %171, %170 : vector<4x32xf32>
    %173 = arith.divf %171, %172 : vector<4x32xf32>
    %174 = vector.extract_strided_slice %134 {offsets = [0, 64], sizes = [4, 32], strides = [1, 1]} : vector<4x128xf32> to vector<4x32xf32>
    %175 = math.tanh %174 : vector<4x32xf32>
    %176 = vector.extract_strided_slice %134 {offsets = [0, 96], sizes = [4, 32], strides = [1, 1]} : vector<4x128xf32> to vector<4x32xf32>
    %177 = arith.negf %176 : vector<4x32xf32>
    %178 = math.exp %177 : vector<4x32xf32>
    %cst_81 = arith.constant 1.000000e+00 : f32
    %179 = vector.broadcast %cst_81 : f32 to vector<4x32xf32>
    %180 = arith.addf %179, %178 : vector<4x32xf32>
    %181 = arith.divf %179, %180 : vector<4x32xf32>
    %182 = arith.mulf %173, %161 : vector<4x32xf32>
    %183 = arith.mulf %167, %175 : vector<4x32xf32>
    %184 = arith.addf %182, %183 : vector<4x32xf32>
    %185 = math.tanh %184 : vector<4x32xf32>
    %186 = arith.mulf %181, %185 : vector<4x32xf32>
    %c0_82 = arith.constant 0 : index
    %c0_83 = arith.constant 0 : index
    %187 = vector.load %arg7[%c0_82, %c0_83] : memref<4x32xf32, #tpu.memory_space<vmem>>, vector<4x32xf32>
    %188 = vector.shape_cast %114 : vector<4x1xi1> to vector<4x1xi1>
    %189 = vector.broadcast %188 : vector<4x1xi1> to vector<4x32xi1>
    %190 = arith.select %189, %160, %187 : vector<4x32xi1>, vector<4x32xf32>
    %c0_84 = arith.constant 0 : index
    %c0_85 = arith.constant 0 : index
    %191 = vector.load %arg7[%c0_84, %c0_85] : memref<4x32xf32, #tpu.memory_space<vmem>>, vector<4x32xf32>
    tpu.vector_store %arg7[%c0_84, %c0_85], %190 {strides = array<i32>} : memref<4x32xf32, #tpu.memory_space<vmem>>, vector<4x32xf32>,
    %c0_86 = arith.constant 0 : index
    %c0_87 = arith.constant 0 : index
    %192 = vector.load %arg8[%c0_86, %c0_87] : memref<4x32xf32, #tpu.memory_space<vmem>>, vector<4x32xf32>
    %193 = vector.shape_cast %114 : vector<4x1xi1> to vector<4x1xi1>
    %194 = vector.broadcast %193 : vector<4x1xi1> to vector<4x32xi1>
    %195 = arith.select %194, %158, %192 : vector<4x32xi1>, vector<4x32xf32>
    %c0_88 = arith.constant 0 : index
    %c0_89 = arith.constant 0 : index
    %196 = vector.load %arg8[%c0_88, %c0_89] : memref<4x32xf32, #tpu.memory_space<vmem>>, vector<4x32xf32>
    tpu.vector_store %arg8[%c0_88, %c0_89], %195 {strides = array<i32>} : memref<4x32xf32, #tpu.memory_space<vmem>>, vector<4x32xf32>,
    %c0_90 = arith.constant 0 : index
    %c0_91 = arith.constant 0 : index
    %197 = vector.load %arg9[%c0_90, %c0_91] : memref<4x32xf32, #tpu.memory_space<vmem>>, vector<4x32xf32>
    %198 = vector.shape_cast %116 : vector<4x1xi1> to vector<4x1xi1>
    %199 = vector.broadcast %198 : vector<4x1xi1> to vector<4x32xi1>
    %200 = arith.select %199, %186, %197 : vector<4x32xi1>, vector<4x32xf32>
    %c0_92 = arith.constant 0 : index
    %c0_93 = arith.constant 0 : index
    %201 = vector.load %arg9[%c0_92, %c0_93] : memref<4x32xf32, #tpu.memory_space<vmem>>, vector<4x32xf32>
    tpu.vector_store %arg9[%c0_92, %c0_93], %200 {strides = array<i32>} : memref<4x32xf32, #tpu.memory_space<vmem>>, vector<4x32xf32>,
    %c0_94 = arith.constant 0 : index
    %c0_95 = arith.constant 0 : index
    %202 = vector.load %arg10[%c0_94, %c0_95] : memref<4x32xf32, #tpu.memory_space<vmem>>, vector<4x32xf32>
    %203 = vector.shape_cast %116 : vector<4x1xi1> to vector<4x1xi1>
    %204 = vector.broadcast %203 : vector<4x1xi1> to vector<4x32xi1>
    %205 = arith.select %204, %184, %202 : vector<4x32xi1>, vector<4x32xf32>
    %c0_96 = arith.constant 0 : index
    %c0_97 = arith.constant 0 : index
    %206 = vector.load %arg10[%c0_96, %c0_97] : memref<4x32xf32, #tpu.memory_space<vmem>>, vector<4x32xf32>
    tpu.vector_store %arg10[%c0_96, %c0_97], %205 {strides = array<i32>} : memref<4x32xf32, #tpu.memory_space<vmem>>, vector<4x32xf32>,
    %207 = vector.broadcast %118 : vector<4x1xf32> to vector<4x32xf32>
    %208 = arith.mulf %160, %207 : vector<4x32xf32>
    %c1_98 = arith.constant 1 : index
    %c0_99 = arith.constant 0 : index
    %c0_100 = arith.constant 0 : index
    %209 = vector.load %arg5[%c1_98, %c0_99, %c0_100] : memref<8x4x32xf32, #tpu.memory_space<vmem>>, vector<1x4x32xf32>
    %210 = vector.shape_cast %209 : vector<1x4x32xf32> to vector<4x32xf32>
    %211 = vector.shape_cast %208 : vector<4x32xf32> to vector<1x4x32xf32>
    tpu.vector_store %arg5[%c1_98, %c0_99, %c0_100], %211 {strides = array<i32>} : memref<8x4x32xf32, #tpu.memory_space<vmem>>, vector<1x4x32xf32>,
    %212 = vector.broadcast %120 : vector<4x1xf32> to vector<4x32xf32>
    %213 = arith.mulf %186, %212 : vector<4x32xf32>
    %c6_101 = arith.constant 6 : index
    %c0_102 = arith.constant 0 : index
    %c0_103 = arith.constant 0 : index
    %214 = vector.load %arg6[%c6_101, %c0_102, %c0_103] : memref<8x4x32xf32, #tpu.memory_space<vmem>>, vector<1x4x32xf32>
    %215 = vector.shape_cast %214 : vector<1x4x32xf32> to vector<4x32xf32>
    %216 = vector.shape_cast %213 : vector<4x32xf32> to vector<1x4x32xf32>
    tpu.vector_store %arg6[%c6_101, %c0_102, %c0_103], %216 {strides = array<i32>} : memref<8x4x32xf32, #tpu.memory_space<vmem>>, vector<1x4x32xf32>,
    %c2_i32 = arith.constant 2 : i32
    %217 = vector.broadcast %c2_i32 : i32 to vector<4x1xi32>
    %218 = arith.cmpi sgt, %0, %217 : vector<4x1xi32>
    %c5_i32 = arith.constant 5 : i32
    %219 = vector.broadcast %c5_i32 : i32 to vector<4x1xi32>
    %220 = arith.cmpi sgt, %0, %219 : vector<4x1xi32>
    %221 = arith.extui %218 : vector<4x1xi1> to vector<4x1xi32>
    %222 = arith.sitofp %221 : vector<4x1xi32> to vector<4x1xf32>
    %223 = arith.extui %220 : vector<4x1xi1> to vector<4x1xi32>
    %224 = arith.sitofp %223 : vector<4x1xi32> to vector<4x1xf32>
    %c2 = arith.constant 2 : index
    %c0_104 = arith.constant 0 : index
    %c0_105 = arith.constant 0 : index
    %225 = vector.load %arg0[%c2, %c0_104, %c0_105] : memref<8x4x256xf32, #tpu.memory_space<vmem>>, vector<1x4x128xf32>
    %226 = vector.shape_cast %225 : vector<1x4x128xf32> to vector<4x128xf32>
    %c0_106 = arith.constant 0 : index
    %c0_107 = arith.constant 0 : index
    %227 = vector.load %arg7[%c0_106, %c0_107] : memref<4x32xf32, #tpu.memory_space<vmem>>, vector<4x32xf32>
    %228 = arith.truncf %227 : vector<4x32xf32> to vector<4x32xbf16>
    %c0_108 = arith.constant 0 : index
    %c0_109 = arith.constant 0 : index
    %229 = vector.load %arg2[%c0_108, %c0_109] : memref<32x128xbf16, #tpu.memory_space<vmem>>, vector<32x128xbf16>
    %cst_110 = arith.constant dense<0.000000e+00> : vector<4x128xf32>
    %230 = tpu.matmul %228, %229, %cst_110 {dimension_numbers = #tpu.dot_dimension_numbers<[1], [0], [0], [1], [0, 0, 1, 1], [], []>} : vector<4x32xbf16>, vector<32x128xbf16>, vector<4x128xf32> -> vector<4x128xf32>
    %231 = arith.addf %226, %230 : vector<4x128xf32>
    %c5 = arith.constant 5 : index
    %c0_111 = arith.constant 0 : index
    %c128_112 = arith.constant 128 : index
    %232 = vector.load %arg0[%c5, %c0_111, %c128_112] : memref<8x4x256xf32, #tpu.memory_space<vmem>>, vector<1x4x128xf32>
    %233 = vector.shape_cast %232 : vector<1x4x128xf32> to vector<4x128xf32>
    %c0_113 = arith.constant 0 : index
    %c0_114 = arith.constant 0 : index
    %234 = vector.load %arg9[%c0_113, %c0_114] : memref<4x32xf32, #tpu.memory_space<vmem>>, vector<4x32xf32>
    %235 = arith.truncf %234 : vector<4x32xf32> to vector<4x32xbf16>
    %c0_115 = arith.constant 0 : index
    %c0_116 = arith.constant 0 : index
    %236 = vector.load %arg3[%c0_115, %c0_116] : memref<32x128xbf16, #tpu.memory_space<vmem>>, vector<32x128xbf16>
    %cst_117 = arith.constant dense<0.000000e+00> : vector<4x128xf32>
    %237 = tpu.matmul %235, %236, %cst_117 {dimension_numbers = #tpu.dot_dimension_numbers<[1], [0], [0], [1], [0, 0, 1, 1], [], []>} : vector<4x32xbf16>, vector<32x128xbf16>, vector<4x128xf32> -> vector<4x128xf32>
    %238 = arith.addf %233, %237 : vector<4x128xf32>
    %c0_118 = arith.constant 0 : index
    %c0_119 = arith.constant 0 : index
    %239 = vector.load %arg8[%c0_118, %c0_119] : memref<4x32xf32, #tpu.memory_space<vmem>>, vector<4x32xf32>
    %240 = vector.extract_strided_slice %231 {offsets = [0, 0], sizes = [4, 32], strides = [1, 1]} : vector<4x128xf32> to vector<4x32xf32>
    %241 = arith.negf %240 : vector<4x32xf32>
    %242 = math.exp %241 : vector<4x32xf32>
    %cst_120 = arith.constant 1.000000e+00 : f32
    %243 = vector.broadcast %cst_120 : f32 to vector<4x32xf32>
    %244 = arith.addf %243, %242 : vector<4x32xf32>
    %245 = arith.divf %243, %244 : vector<4x32xf32>
    %246 = vector.extract_strided_slice %231 {offsets = [0, 32], sizes = [4, 32], strides = [1, 1]} : vector<4x128xf32> to vector<4x32xf32>
    %247 = arith.negf %246 : vector<4x32xf32>
    %248 = math.exp %247 : vector<4x32xf32>
    %cst_121 = arith.constant 1.000000e+00 : f32
    %249 = vector.broadcast %cst_121 : f32 to vector<4x32xf32>
    %250 = arith.addf %249, %248 : vector<4x32xf32>
    %251 = arith.divf %249, %250 : vector<4x32xf32>
    %252 = vector.extract_strided_slice %231 {offsets = [0, 64], sizes = [4, 32], strides = [1, 1]} : vector<4x128xf32> to vector<4x32xf32>
    %253 = math.tanh %252 : vector<4x32xf32>
    %254 = vector.extract_strided_slice %231 {offsets = [0, 96], sizes = [4, 32], strides = [1, 1]} : vector<4x128xf32> to vector<4x32xf32>
    %255 = arith.negf %254 : vector<4x32xf32>
    %256 = math.exp %255 : vector<4x32xf32>
    %cst_122 = arith.constant 1.000000e+00 : f32
    %257 = vector.broadcast %cst_122 : f32 to vector<4x32xf32>
    %258 = arith.addf %257, %256 : vector<4x32xf32>
    %259 = arith.divf %257, %258 : vector<4x32xf32>
    %260 = arith.mulf %251, %239 : vector<4x32xf32>
    %261 = arith.mulf %245, %253 : vector<4x32xf32>
    %262 = arith.addf %260, %261 : vector<4x32xf32>
    %263 = math.tanh %262 : vector<4x32xf32>
    %264 = arith.mulf %259, %263 : vector<4x32xf32>
    %c0_123 = arith.constant 0 : index
    %c0_124 = arith.constant 0 : index
    %265 = vector.load %arg10[%c0_123, %c0_124] : memref<4x32xf32, #tpu.memory_space<vmem>>, vector<4x32xf32>
    %266 = vector.extract_strided_slice %238 {offsets = [0, 0], sizes = [4, 32], strides = [1, 1]} : vector<4x128xf32> to vector<4x32xf32>
    %267 = arith.negf %266 : vector<4x32xf32>
    %268 = math.exp %267 : vector<4x32xf32>
    %cst_125 = arith.constant 1.000000e+00 : f32
    %269 = vector.broadcast %cst_125 : f32 to vector<4x32xf32>
    %270 = arith.addf %269, %268 : vector<4x32xf32>
    %271 = arith.divf %269, %270 : vector<4x32xf32>
    %272 = vector.extract_strided_slice %238 {offsets = [0, 32], sizes = [4, 32], strides = [1, 1]} : vector<4x128xf32> to vector<4x32xf32>
    %273 = arith.negf %272 : vector<4x32xf32>
    %274 = math.exp %273 : vector<4x32xf32>
    %cst_126 = arith.constant 1.000000e+00 : f32
    %275 = vector.broadcast %cst_126 : f32 to vector<4x32xf32>
    %276 = arith.addf %275, %274 : vector<4x32xf32>
    %277 = arith.divf %275, %276 : vector<4x32xf32>
    %278 = vector.extract_strided_slice %238 {offsets = [0, 64], sizes = [4, 32], strides = [1, 1]} : vector<4x128xf32> to vector<4x32xf32>
    %279 = math.tanh %278 : vector<4x32xf32>
    %280 = vector.extract_strided_slice %238 {offsets = [0, 96], sizes = [4, 32], strides = [1, 1]} : vector<4x128xf32> to vector<4x32xf32>
    %281 = arith.negf %280 : vector<4x32xf32>
    %282 = math.exp %281 : vector<4x32xf32>
    %cst_127 = arith.constant 1.000000e+00 : f32
    %283 = vector.broadcast %cst_127 : f32 to vector<4x32xf32>
    %284 = arith.addf %283, %282 : vector<4x32xf32>
    %285 = arith.divf %283, %284 : vector<4x32xf32>
    %286 = arith.mulf %277, %265 : vector<4x32xf32>
    %287 = arith.mulf %271, %279 : vector<4x32xf32>
    %288 = arith.addf %286, %287 : vector<4x32xf32>
    %289 = math.tanh %288 : vector<4x32xf32>
    %290 = arith.mulf %285, %289 : vector<4x32xf32>
    %c0_128 = arith.constant 0 : index
    %c0_129 = arith.constant 0 : index
    %291 = vector.load %arg7[%c0_128, %c0_129] : memref<4x32xf32, #tpu.memory_space<vmem>>, vector<4x32xf32>
    %292 = vector.shape_cast %218 : vector<4x1xi1> to vector<4x1xi1>
    %293 = vector.broadcast %292 : vector<4x1xi1> to vector<4x32xi1>
    %294 = arith.select %293, %264, %291 : vector<4x32xi1>, vector<4x32xf32>
    %c0_130 = arith.constant 0 : index
    %c0_131 = arith.constant 0 : index
    %295 = vector.load %arg7[%c0_130, %c0_131] : memref<4x32xf32, #tpu.memory_space<vmem>>, vector<4x32xf32>
    tpu.vector_store %arg7[%c0_130, %c0_131], %294 {strides = array<i32>} : memref<4x32xf32, #tpu.memory_space<vmem>>, vector<4x32xf32>,
    %c0_132 = arith.constant 0 : index
    %c0_133 = arith.constant 0 : index
    %296 = vector.load %arg8[%c0_132, %c0_133] : memref<4x32xf32, #tpu.memory_space<vmem>>, vector<4x32xf32>
    %297 = vector.shape_cast %218 : vector<4x1xi1> to vector<4x1xi1>
    %298 = vector.broadcast %297 : vector<4x1xi1> to vector<4x32xi1>
    %299 = arith.select %298, %262, %296 : vector<4x32xi1>, vector<4x32xf32>
    %c0_134 = arith.constant 0 : index
    %c0_135 = arith.constant 0 : index
    %300 = vector.load %arg8[%c0_134, %c0_135] : memref<4x32xf32, #tpu.memory_space<vmem>>, vector<4x32xf32>
    tpu.vector_store %arg8[%c0_134, %c0_135], %299 {strides = array<i32>} : memref<4x32xf32, #tpu.memory_space<vmem>>, vector<4x32xf32>,
    %c0_136 = arith.constant 0 : index
    %c0_137 = arith.constant 0 : index
    %301 = vector.load %arg9[%c0_136, %c0_137] : memref<4x32xf32, #tpu.memory_space<vmem>>, vector<4x32xf32>
    %302 = vector.shape_cast %220 : vector<4x1xi1> to vector<4x1xi1>
    %303 = vector.broadcast %302 : vector<4x1xi1> to vector<4x32xi1>
    %304 = arith.select %303, %290, %301 : vector<4x32xi1>, vector<4x32xf32>
    %c0_138 = arith.constant 0 : index
    %c0_139 = arith.constant 0 : index
    %305 = vector.load %arg9[%c0_138, %c0_139] : memref<4x32xf32, #tpu.memory_space<vmem>>, vector<4x32xf32>
    tpu.vector_store %arg9[%c0_138, %c0_139], %304 {strides = array<i32>} : memref<4x32xf32, #tpu.memory_space<vmem>>, vector<4x32xf32>,
    %c0_140 = arith.constant 0 : index
    %c0_141 = arith.constant 0 : index
    %306 = vector.load %arg10[%c0_140, %c0_141] : memref<4x32xf32, #tpu.memory_space<vmem>>, vector<4x32xf32>
    %307 = vector.shape_cast %220 : vector<4x1xi1> to vector<4x1xi1>
    %308 = vector.broadcast %307 : vector<4x1xi1> to vector<4x32xi1>
    %309 = arith.select %308, %288, %306 : vector<4x32xi1>, vector<4x32xf32>
    %c0_142 = arith.constant 0 : index
    %c0_143 = arith.constant 0 : index
    %310 = vector.load %arg10[%c0_142, %c0_143] : memref<4x32xf32, #tpu.memory_space<vmem>>, vector<4x32xf32>
    tpu.vector_store %arg10[%c0_142, %c0_143], %309 {strides = array<i32>} : memref<4x32xf32, #tpu.memory_space<vmem>>, vector<4x32xf32>,
    %311 = vector.broadcast %222 : vector<4x1xf32> to vector<4x32xf32>
    %312 = arith.mulf %264, %311 : vector<4x32xf32>
    %c2_144 = arith.constant 2 : index
    %c0_145 = arith.constant 0 : index
    %c0_146 = arith.constant 0 : index
    %313 = vector.load %arg5[%c2_144, %c0_145, %c0_146] : memref<8x4x32xf32, #tpu.memory_space<vmem>>, vector<1x4x32xf32>
    %314 = vector.shape_cast %313 : vector<1x4x32xf32> to vector<4x32xf32>
    %315 = vector.shape_cast %312 : vector<4x32xf32> to vector<1x4x32xf32>
    tpu.vector_store %arg5[%c2_144, %c0_145, %c0_146], %315 {strides = array<i32>} : memref<8x4x32xf32, #tpu.memory_space<vmem>>, vector<1x4x32xf32>,
    %316 = vector.broadcast %224 : vector<4x1xf32> to vector<4x32xf32>
    %317 = arith.mulf %290, %316 : vector<4x32xf32>
    %c5_147 = arith.constant 5 : index
    %c0_148 = arith.constant 0 : index
    %c0_149 = arith.constant 0 : index
    %318 = vector.load %arg6[%c5_147, %c0_148, %c0_149] : memref<8x4x32xf32, #tpu.memory_space<vmem>>, vector<1x4x32xf32>
    %319 = vector.shape_cast %318 : vector<1x4x32xf32> to vector<4x32xf32>
    %320 = vector.shape_cast %317 : vector<4x32xf32> to vector<1x4x32xf32>
    tpu.vector_store %arg6[%c5_147, %c0_148, %c0_149], %320 {strides = array<i32>} : memref<8x4x32xf32, #tpu.memory_space<vmem>>, vector<1x4x32xf32>,
    %c3_i32 = arith.constant 3 : i32
    %321 = vector.broadcast %c3_i32 : i32 to vector<4x1xi32>
    %322 = arith.cmpi sgt, %0, %321 : vector<4x1xi32>
    %c4_i32 = arith.constant 4 : i32
    %323 = vector.broadcast %c4_i32 : i32 to vector<4x1xi32>
    %324 = arith.cmpi sgt, %0, %323 : vector<4x1xi32>
    %325 = arith.extui %322 : vector<4x1xi1> to vector<4x1xi32>
    %326 = arith.sitofp %325 : vector<4x1xi32> to vector<4x1xf32>
    %327 = arith.extui %324 : vector<4x1xi1> to vector<4x1xi32>
    %328 = arith.sitofp %327 : vector<4x1xi32> to vector<4x1xf32>
    %c3 = arith.constant 3 : index
    %c0_150 = arith.constant 0 : index
    %c0_151 = arith.constant 0 : index
    %329 = vector.load %arg0[%c3, %c0_150, %c0_151] : memref<8x4x256xf32, #tpu.memory_space<vmem>>, vector<1x4x128xf32>
    %330 = vector.shape_cast %329 : vector<1x4x128xf32> to vector<4x128xf32>
    %c0_152 = arith.constant 0 : index
    %c0_153 = arith.constant 0 : index
    %331 = vector.load %arg7[%c0_152, %c0_153] : memref<4x32xf32, #tpu.memory_space<vmem>>, vector<4x32xf32>
    %332 = arith.truncf %331 : vector<4x32xf32> to vector<4x32xbf16>
    %c0_154 = arith.constant 0 : index
    %c0_155 = arith.constant 0 : index
    %333 = vector.load %arg2[%c0_154, %c0_155] : memref<32x128xbf16, #tpu.memory_space<vmem>>, vector<32x128xbf16>
    %cst_156 = arith.constant dense<0.000000e+00> : vector<4x128xf32>
    %334 = tpu.matmul %332, %333, %cst_156 {dimension_numbers = #tpu.dot_dimension_numbers<[1], [0], [0], [1], [0, 0, 1, 1], [], []>} : vector<4x32xbf16>, vector<32x128xbf16>, vector<4x128xf32> -> vector<4x128xf32>
    %335 = arith.addf %330, %334 : vector<4x128xf32>
    %c4 = arith.constant 4 : index
    %c0_157 = arith.constant 0 : index
    %c128_158 = arith.constant 128 : index
    %336 = vector.load %arg0[%c4, %c0_157, %c128_158] : memref<8x4x256xf32, #tpu.memory_space<vmem>>, vector<1x4x128xf32>
    %337 = vector.shape_cast %336 : vector<1x4x128xf32> to vector<4x128xf32>
    %c0_159 = arith.constant 0 : index
    %c0_160 = arith.constant 0 : index
    %338 = vector.load %arg9[%c0_159, %c0_160] : memref<4x32xf32, #tpu.memory_space<vmem>>, vector<4x32xf32>
    %339 = arith.truncf %338 : vector<4x32xf32> to vector<4x32xbf16>
    %c0_161 = arith.constant 0 : index
    %c0_162 = arith.constant 0 : index
    %340 = vector.load %arg3[%c0_161, %c0_162] : memref<32x128xbf16, #tpu.memory_space<vmem>>, vector<32x128xbf16>
    %cst_163 = arith.constant dense<0.000000e+00> : vector<4x128xf32>
    %341 = tpu.matmul %339, %340, %cst_163 {dimension_numbers = #tpu.dot_dimension_numbers<[1], [0], [0], [1], [0, 0, 1, 1], [], []>} : vector<4x32xbf16>, vector<32x128xbf16>, vector<4x128xf32> -> vector<4x128xf32>
    %342 = arith.addf %337, %341 : vector<4x128xf32>
    %c0_164 = arith.constant 0 : index
    %c0_165 = arith.constant 0 : index
    %343 = vector.load %arg8[%c0_164, %c0_165] : memref<4x32xf32, #tpu.memory_space<vmem>>, vector<4x32xf32>
    %344 = vector.extract_strided_slice %335 {offsets = [0, 0], sizes = [4, 32], strides = [1, 1]} : vector<4x128xf32> to vector<4x32xf32>
    %345 = arith.negf %344 : vector<4x32xf32>
    %346 = math.exp %345 : vector<4x32xf32>
    %cst_166 = arith.constant 1.000000e+00 : f32
    %347 = vector.broadcast %cst_166 : f32 to vector<4x32xf32>
    %348 = arith.addf %347, %346 : vector<4x32xf32>
    %349 = arith.divf %347, %348 : vector<4x32xf32>
    %350 = vector.extract_strided_slice %335 {offsets = [0, 32], sizes = [4, 32], strides = [1, 1]} : vector<4x128xf32> to vector<4x32xf32>
    %351 = arith.negf %350 : vector<4x32xf32>
    %352 = math.exp %351 : vector<4x32xf32>
    %cst_167 = arith.constant 1.000000e+00 : f32
    %353 = vector.broadcast %cst_167 : f32 to vector<4x32xf32>
    %354 = arith.addf %353, %352 : vector<4x32xf32>
    %355 = arith.divf %353, %354 : vector<4x32xf32>
    %356 = vector.extract_strided_slice %335 {offsets = [0, 64], sizes = [4, 32], strides = [1, 1]} : vector<4x128xf32> to vector<4x32xf32>
    %357 = math.tanh %356 : vector<4x32xf32>
    %358 = vector.extract_strided_slice %335 {offsets = [0, 96], sizes = [4, 32], strides = [1, 1]} : vector<4x128xf32> to vector<4x32xf32>
    %359 = arith.negf %358 : vector<4x32xf32>
    %360 = math.exp %359 : vector<4x32xf32>
    %cst_168 = arith.constant 1.000000e+00 : f32
    %361 = vector.broadcast %cst_168 : f32 to vector<4x32xf32>
    %362 = arith.addf %361, %360 : vector<4x32xf32>
    %363 = arith.divf %361, %362 : vector<4x32xf32>
    %364 = arith.mulf %355, %343 : vector<4x32xf32>
    %365 = arith.mulf %349, %357 : vector<4x32xf32>
    %366 = arith.addf %364, %365 : vector<4x32xf32>
    %367 = math.tanh %366 : vector<4x32xf32>
    %368 = arith.mulf %363, %367 : vector<4x32xf32>
    %c0_169 = arith.constant 0 : index
    %c0_170 = arith.constant 0 : index
    %369 = vector.load %arg10[%c0_169, %c0_170] : memref<4x32xf32, #tpu.memory_space<vmem>>, vector<4x32xf32>
    %370 = vector.extract_strided_slice %342 {offsets = [0, 0], sizes = [4, 32], strides = [1, 1]} : vector<4x128xf32> to vector<4x32xf32>
    %371 = arith.negf %370 : vector<4x32xf32>
    %372 = math.exp %371 : vector<4x32xf32>
    %cst_171 = arith.constant 1.000000e+00 : f32
    %373 = vector.broadcast %cst_171 : f32 to vector<4x32xf32>
    %374 = arith.addf %373, %372 : vector<4x32xf32>
    %375 = arith.divf %373, %374 : vector<4x32xf32>
    %376 = vector.extract_strided_slice %342 {offsets = [0, 32], sizes = [4, 32], strides = [1, 1]} : vector<4x128xf32> to vector<4x32xf32>
    %377 = arith.negf %376 : vector<4x32xf32>
    %378 = math.exp %377 : vector<4x32xf32>
    %cst_172 = arith.constant 1.000000e+00 : f32
    %379 = vector.broadcast %cst_172 : f32 to vector<4x32xf32>
    %380 = arith.addf %379, %378 : vector<4x32xf32>
    %381 = arith.divf %379, %380 : vector<4x32xf32>
    %382 = vector.extract_strided_slice %342 {offsets = [0, 64], sizes = [4, 32], strides = [1, 1]} : vector<4x128xf32> to vector<4x32xf32>
    %383 = math.tanh %382 : vector<4x32xf32>
    %384 = vector.extract_strided_slice %342 {offsets = [0, 96], sizes = [4, 32], strides = [1, 1]} : vector<4x128xf32> to vector<4x32xf32>
    %385 = arith.negf %384 : vector<4x32xf32>
    %386 = math.exp %385 : vector<4x32xf32>
    %cst_173 = arith.constant 1.000000e+00 : f32
    %387 = vector.broadcast %cst_173 : f32 to vector<4x32xf32>
    %388 = arith.addf %387, %386 : vector<4x32xf32>
    %389 = arith.divf %387, %388 : vector<4x32xf32>
    %390 = arith.mulf %381, %369 : vector<4x32xf32>
    %391 = arith.mulf %375, %383 : vector<4x32xf32>
    %392 = arith.addf %390, %391 : vector<4x32xf32>
    %393 = math.tanh %392 : vector<4x32xf32>
    %394 = arith.mulf %389, %393 : vector<4x32xf32>
    %c0_174 = arith.constant 0 : index
    %c0_175 = arith.constant 0 : index
    %395 = vector.load %arg7[%c0_174, %c0_175] : memref<4x32xf32, #tpu.memory_space<vmem>>, vector<4x32xf32>
    %396 = vector.shape_cast %322 : vector<4x1xi1> to vector<4x1xi1>
    %397 = vector.broadcast %396 : vector<4x1xi1> to vector<4x32xi1>
    %398 = arith.select %397, %368, %395 : vector<4x32xi1>, vector<4x32xf32>
    %c0_176 = arith.constant 0 : index
    %c0_177 = arith.constant 0 : index
    %399 = vector.load %arg7[%c0_176, %c0_177] : memref<4x32xf32, #tpu.memory_space<vmem>>, vector<4x32xf32>
    tpu.vector_store %arg7[%c0_176, %c0_177], %398 {strides = array<i32>} : memref<4x32xf32, #tpu.memory_space<vmem>>, vector<4x32xf32>,
    %c0_178 = arith.constant 0 : index
    %c0_179 = arith.constant 0 : index
    %400 = vector.load %arg8[%c0_178, %c0_179] : memref<4x32xf32, #tpu.memory_space<vmem>>, vector<4x32xf32>
    %401 = vector.shape_cast %322 : vector<4x1xi1> to vector<4x1xi1>
    %402 = vector.broadcast %401 : vector<4x1xi1> to vector<4x32xi1>
    %403 = arith.select %402, %366, %400 : vector<4x32xi1>, vector<4x32xf32>
    %c0_180 = arith.constant 0 : index
    %c0_181 = arith.constant 0 : index
    %404 = vector.load %arg8[%c0_180, %c0_181] : memref<4x32xf32, #tpu.memory_space<vmem>>, vector<4x32xf32>
    tpu.vector_store %arg8[%c0_180, %c0_181], %403 {strides = array<i32>} : memref<4x32xf32, #tpu.memory_space<vmem>>, vector<4x32xf32>,
    %c0_182 = arith.constant 0 : index
    %c0_183 = arith.constant 0 : index
    %405 = vector.load %arg9[%c0_182, %c0_183] : memref<4x32xf32, #tpu.memory_space<vmem>>, vector<4x32xf32>
    %406 = vector.shape_cast %324 : vector<4x1xi1> to vector<4x1xi1>
    %407 = vector.broadcast %406 : vector<4x1xi1> to vector<4x32xi1>
    %408 = arith.select %407, %394, %405 : vector<4x32xi1>, vector<4x32xf32>
    %c0_184 = arith.constant 0 : index
    %c0_185 = arith.constant 0 : index
    %409 = vector.load %arg9[%c0_184, %c0_185] : memref<4x32xf32, #tpu.memory_space<vmem>>, vector<4x32xf32>
    tpu.vector_store %arg9[%c0_184, %c0_185], %408 {strides = array<i32>} : memref<4x32xf32, #tpu.memory_space<vmem>>, vector<4x32xf32>,
    %c0_186 = arith.constant 0 : index
    %c0_187 = arith.constant 0 : index
    %410 = vector.load %arg10[%c0_186, %c0_187] : memref<4x32xf32, #tpu.memory_space<vmem>>, vector<4x32xf32>
    %411 = vector.shape_cast %324 : vector<4x1xi1> to vector<4x1xi1>
    %412 = vector.broadcast %411 : vector<4x1xi1> to vector<4x32xi1>
    %413 = arith.select %412, %392, %410 : vector<4x32xi1>, vector<4x32xf32>
    %c0_188 = arith.constant 0 : index
    %c0_189 = arith.constant 0 : index
    %414 = vector.load %arg10[%c0_188, %c0_189] : memref<4x32xf32, #tpu.memory_space<vmem>>, vector<4x32xf32>
    tpu.vector_store %arg10[%c0_188, %c0_189], %413 {strides = array<i32>} : memref<4x32xf32, #tpu.memory_space<vmem>>, vector<4x32xf32>,
    %415 = vector.broadcast %326 : vector<4x1xf32> to vector<4x32xf32>
    %416 = arith.mulf %368, %415 : vector<4x32xf32>
    %c3_190 = arith.constant 3 : index
    %c0_191 = arith.constant 0 : index
    %c0_192 = arith.constant 0 : index
    %417 = vector.load %arg5[%c3_190, %c0_191, %c0_192] : memref<8x4x32xf32, #tpu.memory_space<vmem>>, vector<1x4x32xf32>
    %418 = vector.shape_cast %417 : vector<1x4x32xf32> to vector<4x32xf32>
    %419 = vector.shape_cast %416 : vector<4x32xf32> to vector<1x4x32xf32>
    tpu.vector_store %arg5[%c3_190, %c0_191, %c0_192], %419 {strides = array<i32>} : memref<8x4x32xf32, #tpu.memory_space<vmem>>, vector<1x4x32xf32>,
    %420 = vector.broadcast %328 : vector<4x1xf32> to vector<4x32xf32>
    %421 = arith.mulf %394, %420 : vector<4x32xf32>
    %c4_193 = arith.constant 4 : index
    %c0_194 = arith.constant 0 : index
    %c0_195 = arith.constant 0 : index
    %422 = vector.load %arg6[%c4_193, %c0_194, %c0_195] : memref<8x4x32xf32, #tpu.memory_space<vmem>>, vector<1x4x32xf32>
    %423 = vector.shape_cast %422 : vector<1x4x32xf32> to vector<4x32xf32>
    %424 = vector.shape_cast %421 : vector<4x32xf32> to vector<1x4x32xf32>
    tpu.vector_store %arg6[%c4_193, %c0_194, %c0_195], %424 {strides = array<i32>} : memref<8x4x32xf32, #tpu.memory_space<vmem>>, vector<1x4x32xf32>,
    %c4_i32_196 = arith.constant 4 : i32
    %425 = vector.broadcast %c4_i32_196 : i32 to vector<4x1xi32>
    %426 = arith.cmpi sgt, %0, %425 : vector<4x1xi32>
    %c3_i32_197 = arith.constant 3 : i32
    %427 = vector.broadcast %c3_i32_197 : i32 to vector<4x1xi32>
    %428 = arith.cmpi sgt, %0, %427 : vector<4x1xi32>
    %429 = arith.extui %426 : vector<4x1xi1> to vector<4x1xi32>
    %430 = arith.sitofp %429 : vector<4x1xi32> to vector<4x1xf32>
    %431 = arith.extui %428 : vector<4x1xi1> to vector<4x1xi32>
    %432 = arith.sitofp %431 : vector<4x1xi32> to vector<4x1xf32>
    %c4_198 = arith.constant 4 : index
    %c0_199 = arith.constant 0 : index
    %c0_200 = arith.constant 0 : index
    %433 = vector.load %arg0[%c4_198, %c0_199, %c0_200] : memref<8x4x256xf32, #tpu.memory_space<vmem>>, vector<1x4x128xf32>
    %434 = vector.shape_cast %433 : vector<1x4x128xf32> to vector<4x128xf32>
    %c0_201 = arith.constant 0 : index
    %c0_202 = arith.constant 0 : index
    %435 = vector.load %arg7[%c0_201, %c0_202] : memref<4x32xf32, #tpu.memory_space<vmem>>, vector<4x32xf32>
    %436 = arith.truncf %435 : vector<4x32xf32> to vector<4x32xbf16>
    %c0_203 = arith.constant 0 : index
    %c0_204 = arith.constant 0 : index
    %437 = vector.load %arg2[%c0_203, %c0_204] : memref<32x128xbf16, #tpu.memory_space<vmem>>, vector<32x128xbf16>
    %cst_205 = arith.constant dense<0.000000e+00> : vector<4x128xf32>
    %438 = tpu.matmul %436, %437, %cst_205 {dimension_numbers = #tpu.dot_dimension_numbers<[1], [0], [0], [1], [0, 0, 1, 1], [], []>} : vector<4x32xbf16>, vector<32x128xbf16>, vector<4x128xf32> -> vector<4x128xf32>
    %439 = arith.addf %434, %438 : vector<4x128xf32>
    %c3_206 = arith.constant 3 : index
    %c0_207 = arith.constant 0 : index
    %c128_208 = arith.constant 128 : index
    %440 = vector.load %arg0[%c3_206, %c0_207, %c128_208] : memref<8x4x256xf32, #tpu.memory_space<vmem>>, vector<1x4x128xf32>
    %441 = vector.shape_cast %440 : vector<1x4x128xf32> to vector<4x128xf32>
    %c0_209 = arith.constant 0 : index
    %c0_210 = arith.constant 0 : index
    %442 = vector.load %arg9[%c0_209, %c0_210] : memref<4x32xf32, #tpu.memory_space<vmem>>, vector<4x32xf32>
    %443 = arith.truncf %442 : vector<4x32xf32> to vector<4x32xbf16>
    %c0_211 = arith.constant 0 : index
    %c0_212 = arith.constant 0 : index
    %444 = vector.load %arg3[%c0_211, %c0_212] : memref<32x128xbf16, #tpu.memory_space<vmem>>, vector<32x128xbf16>
    %cst_213 = arith.constant dense<0.000000e+00> : vector<4x128xf32>
    %445 = tpu.matmul %443, %444, %cst_213 {dimension_numbers = #tpu.dot_dimension_numbers<[1], [0], [0], [1], [0, 0, 1, 1], [], []>} : vector<4x32xbf16>, vector<32x128xbf16>, vector<4x128xf32> -> vector<4x128xf32>
    %446 = arith.addf %441, %445 : vector<4x128xf32>
    %c0_214 = arith.constant 0 : index
    %c0_215 = arith.constant 0 : index
    %447 = vector.load %arg8[%c0_214, %c0_215] : memref<4x32xf32, #tpu.memory_space<vmem>>, vector<4x32xf32>
    %448 = vector.extract_strided_slice %439 {offsets = [0, 0], sizes = [4, 32], strides = [1, 1]} : vector<4x128xf32> to vector<4x32xf32>
    %449 = arith.negf %448 : vector<4x32xf32>
    %450 = math.exp %449 : vector<4x32xf32>
    %cst_216 = arith.constant 1.000000e+00 : f32
    %451 = vector.broadcast %cst_216 : f32 to vector<4x32xf32>
    %452 = arith.addf %451, %450 : vector<4x32xf32>
    %453 = arith.divf %451, %452 : vector<4x32xf32>
    %454 = vector.extract_strided_slice %439 {offsets = [0, 32], sizes = [4, 32], strides = [1, 1]} : vector<4x128xf32> to vector<4x32xf32>
    %455 = arith.negf %454 : vector<4x32xf32>
    %456 = math.exp %455 : vector<4x32xf32>
    %cst_217 = arith.constant 1.000000e+00 : f32
    %457 = vector.broadcast %cst_217 : f32 to vector<4x32xf32>
    %458 = arith.addf %457, %456 : vector<4x32xf32>
    %459 = arith.divf %457, %458 : vector<4x32xf32>
    %460 = vector.extract_strided_slice %439 {offsets = [0, 64], sizes = [4, 32], strides = [1, 1]} : vector<4x128xf32> to vector<4x32xf32>
    %461 = math.tanh %460 : vector<4x32xf32>
    %462 = vector.extract_strided_slice %439 {offsets = [0, 96], sizes = [4, 32], strides = [1, 1]} : vector<4x128xf32> to vector<4x32xf32>
    %463 = arith.negf %462 : vector<4x32xf32>
    %464 = math.exp %463 : vector<4x32xf32>
    %cst_218 = arith.constant 1.000000e+00 : f32
    %465 = vector.broadcast %cst_218 : f32 to vector<4x32xf32>
    %466 = arith.addf %465, %464 : vector<4x32xf32>
    %467 = arith.divf %465, %466 : vector<4x32xf32>
    %468 = arith.mulf %459, %447 : vector<4x32xf32>
    %469 = arith.mulf %453, %461 : vector<4x32xf32>
    %470 = arith.addf %468, %469 : vector<4x32xf32>
    %471 = math.tanh %470 : vector<4x32xf32>
    %472 = arith.mulf %467, %471 : vector<4x32xf32>
    %c0_219 = arith.constant 0 : index
    %c0_220 = arith.constant 0 : index
    %473 = vector.load %arg10[%c0_219, %c0_220] : memref<4x32xf32, #tpu.memory_space<vmem>>, vector<4x32xf32>
    %474 = vector.extract_strided_slice %446 {offsets = [0, 0], sizes = [4, 32], strides = [1, 1]} : vector<4x128xf32> to vector<4x32xf32>
    %475 = arith.negf %474 : vector<4x32xf32>
    %476 = math.exp %475 : vector<4x32xf32>
    %cst_221 = arith.constant 1.000000e+00 : f32
    %477 = vector.broadcast %cst_221 : f32 to vector<4x32xf32>
    %478 = arith.addf %477, %476 : vector<4x32xf32>
    %479 = arith.divf %477, %478 : vector<4x32xf32>
    %480 = vector.extract_strided_slice %446 {offsets = [0, 32], sizes = [4, 32], strides = [1, 1]} : vector<4x128xf32> to vector<4x32xf32>
    %481 = arith.negf %480 : vector<4x32xf32>
    %482 = math.exp %481 : vector<4x32xf32>
    %cst_222 = arith.constant 1.000000e+00 : f32
    %483 = vector.broadcast %cst_222 : f32 to vector<4x32xf32>
    %484 = arith.addf %483, %482 : vector<4x32xf32>
    %485 = arith.divf %483, %484 : vector<4x32xf32>
    %486 = vector.extract_strided_slice %446 {offsets = [0, 64], sizes = [4, 32], strides = [1, 1]} : vector<4x128xf32> to vector<4x32xf32>
    %487 = math.tanh %486 : vector<4x32xf32>
    %488 = vector.extract_strided_slice %446 {offsets = [0, 96], sizes = [4, 32], strides = [1, 1]} : vector<4x128xf32> to vector<4x32xf32>
    %489 = arith.negf %488 : vector<4x32xf32>
    %490 = math.exp %489 : vector<4x32xf32>
    %cst_223 = arith.constant 1.000000e+00 : f32
    %491 = vector.broadcast %cst_223 : f32 to vector<4x32xf32>
    %492 = arith.addf %491, %490 : vector<4x32xf32>
    %493 = arith.divf %491, %492 : vector<4x32xf32>
    %494 = arith.mulf %485, %473 : vector<4x32xf32>
    %495 = arith.mulf %479, %487 : vector<4x32xf32>
    %496 = arith.addf %494, %495 : vector<4x32xf32>
    %497 = math.tanh %496 : vector<4x32xf32>
    %498 = arith.mulf %493, %497 : vector<4x32xf32>
    %c0_224 = arith.constant 0 : index
    %c0_225 = arith.constant 0 : index
    %499 = vector.load %arg7[%c0_224, %c0_225] : memref<4x32xf32, #tpu.memory_space<vmem>>, vector<4x32xf32>
    %500 = vector.shape_cast %426 : vector<4x1xi1> to vector<4x1xi1>
    %501 = vector.broadcast %500 : vector<4x1xi1> to vector<4x32xi1>
    %502 = arith.select %501, %472, %499 : vector<4x32xi1>, vector<4x32xf32>
    %c0_226 = arith.constant 0 : index
    %c0_227 = arith.constant 0 : index
    %503 = vector.load %arg7[%c0_226, %c0_227] : memref<4x32xf32, #tpu.memory_space<vmem>>, vector<4x32xf32>
    tpu.vector_store %arg7[%c0_226, %c0_227], %502 {strides = array<i32>} : memref<4x32xf32, #tpu.memory_space<vmem>>, vector<4x32xf32>,
    %c0_228 = arith.constant 0 : index
    %c0_229 = arith.constant 0 : index
    %504 = vector.load %arg8[%c0_228, %c0_229] : memref<4x32xf32, #tpu.memory_space<vmem>>, vector<4x32xf32>
    %505 = vector.shape_cast %426 : vector<4x1xi1> to vector<4x1xi1>
    %506 = vector.broadcast %505 : vector<4x1xi1> to vector<4x32xi1>
    %507 = arith.select %506, %470, %504 : vector<4x32xi1>, vector<4x32xf32>
    %c0_230 = arith.constant 0 : index
    %c0_231 = arith.constant 0 : index
    %508 = vector.load %arg8[%c0_230, %c0_231] : memref<4x32xf32, #tpu.memory_space<vmem>>, vector<4x32xf32>
    tpu.vector_store %arg8[%c0_230, %c0_231], %507 {strides = array<i32>} : memref<4x32xf32, #tpu.memory_space<vmem>>, vector<4x32xf32>,
    %c0_232 = arith.constant 0 : index
    %c0_233 = arith.constant 0 : index
    %509 = vector.load %arg9[%c0_232, %c0_233] : memref<4x32xf32, #tpu.memory_space<vmem>>, vector<4x32xf32>
    %510 = vector.shape_cast %428 : vector<4x1xi1> to vector<4x1xi1>
    %511 = vector.broadcast %510 : vector<4x1xi1> to vector<4x32xi1>
    %512 = arith.select %511, %498, %509 : vector<4x32xi1>, vector<4x32xf32>
    %c0_234 = arith.constant 0 : index
    %c0_235 = arith.constant 0 : index
    %513 = vector.load %arg9[%c0_234, %c0_235] : memref<4x32xf32, #tpu.memory_space<vmem>>, vector<4x32xf32>
    tpu.vector_store %arg9[%c0_234, %c0_235], %512 {strides = array<i32>} : memref<4x32xf32, #tpu.memory_space<vmem>>, vector<4x32xf32>,
    %c0_236 = arith.constant 0 : index
    %c0_237 = arith.constant 0 : index
    %514 = vector.load %arg10[%c0_236, %c0_237] : memref<4x32xf32, #tpu.memory_space<vmem>>, vector<4x32xf32>
    %515 = vector.shape_cast %428 : vector<4x1xi1> to vector<4x1xi1>
    %516 = vector.broadcast %515 : vector<4x1xi1> to vector<4x32xi1>
    %517 = arith.select %516, %496, %514 : vector<4x32xi1>, vector<4x32xf32>
    %c0_238 = arith.constant 0 : index
    %c0_239 = arith.constant 0 : index
    %518 = vector.load %arg10[%c0_238, %c0_239] : memref<4x32xf32, #tpu.memory_space<vmem>>, vector<4x32xf32>
    tpu.vector_store %arg10[%c0_238, %c0_239], %517 {strides = array<i32>} : memref<4x32xf32, #tpu.memory_space<vmem>>, vector<4x32xf32>,
    %519 = vector.broadcast %430 : vector<4x1xf32> to vector<4x32xf32>
    %520 = arith.mulf %472, %519 : vector<4x32xf32>
    %c4_240 = arith.constant 4 : index
    %c0_241 = arith.constant 0 : index
    %c0_242 = arith.constant 0 : index
    %521 = vector.load %arg5[%c4_240, %c0_241, %c0_242] : memref<8x4x32xf32, #tpu.memory_space<vmem>>, vector<1x4x32xf32>
    %522 = vector.shape_cast %521 : vector<1x4x32xf32> to vector<4x32xf32>
    %523 = vector.shape_cast %520 : vector<4x32xf32> to vector<1x4x32xf32>
    tpu.vector_store %arg5[%c4_240, %c0_241, %c0_242], %523 {strides = array<i32>} : memref<8x4x32xf32, #tpu.memory_space<vmem>>, vector<1x4x32xf32>,
    %524 = vector.broadcast %432 : vector<4x1xf32> to vector<4x32xf32>
    %525 = arith.mulf %498, %524 : vector<4x32xf32>
    %c3_243 = arith.constant 3 : index
    %c0_244 = arith.constant 0 : index
    %c0_245 = arith.constant 0 : index
    %526 = vector.load %arg6[%c3_243, %c0_244, %c0_245] : memref<8x4x32xf32, #tpu.memory_space<vmem>>, vector<1x4x32xf32>
    %527 = vector.shape_cast %526 : vector<1x4x32xf32> to vector<4x32xf32>
    %528 = vector.shape_cast %525 : vector<4x32xf32> to vector<1x4x32xf32>
    tpu.vector_store %arg6[%c3_243, %c0_244, %c0_245], %528 {strides = array<i32>} : memref<8x4x32xf32, #tpu.memory_space<vmem>>, vector<1x4x32xf32>,
    %c5_i32_246 = arith.constant 5 : i32
    %529 = vector.broadcast %c5_i32_246 : i32 to vector<4x1xi32>
    %530 = arith.cmpi sgt, %0, %529 : vector<4x1xi32>
    %c2_i32_247 = arith.constant 2 : i32
    %531 = vector.broadcast %c2_i32_247 : i32 to vector<4x1xi32>
    %532 = arith.cmpi sgt, %0, %531 : vector<4x1xi32>
    %533 = arith.extui %530 : vector<4x1xi1> to vector<4x1xi32>
    %534 = arith.sitofp %533 : vector<4x1xi32> to vector<4x1xf32>
    %535 = arith.extui %532 : vector<4x1xi1> to vector<4x1xi32>
    %536 = arith.sitofp %535 : vector<4x1xi32> to vector<4x1xf32>
    %c5_248 = arith.constant 5 : index
    %c0_249 = arith.constant 0 : index
    %c0_250 = arith.constant 0 : index
    %537 = vector.load %arg0[%c5_248, %c0_249, %c0_250] : memref<8x4x256xf32, #tpu.memory_space<vmem>>, vector<1x4x128xf32>
    %538 = vector.shape_cast %537 : vector<1x4x128xf32> to vector<4x128xf32>
    %c0_251 = arith.constant 0 : index
    %c0_252 = arith.constant 0 : index
    %539 = vector.load %arg7[%c0_251, %c0_252] : memref<4x32xf32, #tpu.memory_space<vmem>>, vector<4x32xf32>
    %540 = arith.truncf %539 : vector<4x32xf32> to vector<4x32xbf16>
    %c0_253 = arith.constant 0 : index
    %c0_254 = arith.constant 0 : index
    %541 = vector.load %arg2[%c0_253, %c0_254] : memref<32x128xbf16, #tpu.memory_space<vmem>>, vector<32x128xbf16>
    %cst_255 = arith.constant dense<0.000000e+00> : vector<4x128xf32>
    %542 = tpu.matmul %540, %541, %cst_255 {dimension_numbers = #tpu.dot_dimension_numbers<[1], [0], [0], [1], [0, 0, 1, 1], [], []>} : vector<4x32xbf16>, vector<32x128xbf16>, vector<4x128xf32> -> vector<4x128xf32>
    %543 = arith.addf %538, %542 : vector<4x128xf32>
    %c2_256 = arith.constant 2 : index
    %c0_257 = arith.constant 0 : index
    %c128_258 = arith.constant 128 : index
    %544 = vector.load %arg0[%c2_256, %c0_257, %c128_258] : memref<8x4x256xf32, #tpu.memory_space<vmem>>, vector<1x4x128xf32>
    %545 = vector.shape_cast %544 : vector<1x4x128xf32> to vector<4x128xf32>
    %c0_259 = arith.constant 0 : index
    %c0_260 = arith.constant 0 : index
    %546 = vector.load %arg9[%c0_259, %c0_260] : memref<4x32xf32, #tpu.memory_space<vmem>>, vector<4x32xf32>
    %547 = arith.truncf %546 : vector<4x32xf32> to vector<4x32xbf16>
    %c0_261 = arith.constant 0 : index
    %c0_262 = arith.constant 0 : index
    %548 = vector.load %arg3[%c0_261, %c0_262] : memref<32x128xbf16, #tpu.memory_space<vmem>>, vector<32x128xbf16>
    %cst_263 = arith.constant dense<0.000000e+00> : vector<4x128xf32>
    %549 = tpu.matmul %547, %548, %cst_263 {dimension_numbers = #tpu.dot_dimension_numbers<[1], [0], [0], [1], [0, 0, 1, 1], [], []>} : vector<4x32xbf16>, vector<32x128xbf16>, vector<4x128xf32> -> vector<4x128xf32>
    %550 = arith.addf %545, %549 : vector<4x128xf32>
    %c0_264 = arith.constant 0 : index
    %c0_265 = arith.constant 0 : index
    %551 = vector.load %arg8[%c0_264, %c0_265] : memref<4x32xf32, #tpu.memory_space<vmem>>, vector<4x32xf32>
    %552 = vector.extract_strided_slice %543 {offsets = [0, 0], sizes = [4, 32], strides = [1, 1]} : vector<4x128xf32> to vector<4x32xf32>
    %553 = arith.negf %552 : vector<4x32xf32>
    %554 = math.exp %553 : vector<4x32xf32>
    %cst_266 = arith.constant 1.000000e+00 : f32
    %555 = vector.broadcast %cst_266 : f32 to vector<4x32xf32>
    %556 = arith.addf %555, %554 : vector<4x32xf32>
    %557 = arith.divf %555, %556 : vector<4x32xf32>
    %558 = vector.extract_strided_slice %543 {offsets = [0, 32], sizes = [4, 32], strides = [1, 1]} : vector<4x128xf32> to vector<4x32xf32>
    %559 = arith.negf %558 : vector<4x32xf32>
    %560 = math.exp %559 : vector<4x32xf32>
    %cst_267 = arith.constant 1.000000e+00 : f32
    %561 = vector.broadcast %cst_267 : f32 to vector<4x32xf32>
    %562 = arith.addf %561, %560 : vector<4x32xf32>
    %563 = arith.divf %561, %562 : vector<4x32xf32>
    %564 = vector.extract_strided_slice %543 {offsets = [0, 64], sizes = [4, 32], strides = [1, 1]} : vector<4x128xf32> to vector<4x32xf32>
    %565 = math.tanh %564 : vector<4x32xf32>
    %566 = vector.extract_strided_slice %543 {offsets = [0, 96], sizes = [4, 32], strides = [1, 1]} : vector<4x128xf32> to vector<4x32xf32>
    %567 = arith.negf %566 : vector<4x32xf32>
    %568 = math.exp %567 : vector<4x32xf32>
    %cst_268 = arith.constant 1.000000e+00 : f32
    %569 = vector.broadcast %cst_268 : f32 to vector<4x32xf32>
    %570 = arith.addf %569, %568 : vector<4x32xf32>
    %571 = arith.divf %569, %570 : vector<4x32xf32>
    %572 = arith.mulf %563, %551 : vector<4x32xf32>
    %573 = arith.mulf %557, %565 : vector<4x32xf32>
    %574 = arith.addf %572, %573 : vector<4x32xf32>
    %575 = math.tanh %574 : vector<4x32xf32>
    %576 = arith.mulf %571, %575 : vector<4x32xf32>
    %c0_269 = arith.constant 0 : index
    %c0_270 = arith.constant 0 : index
    %577 = vector.load %arg10[%c0_269, %c0_270] : memref<4x32xf32, #tpu.memory_space<vmem>>, vector<4x32xf32>
    %578 = vector.extract_strided_slice %550 {offsets = [0, 0], sizes = [4, 32], strides = [1, 1]} : vector<4x128xf32> to vector<4x32xf32>
    %579 = arith.negf %578 : vector<4x32xf32>
    %580 = math.exp %579 : vector<4x32xf32>
    %cst_271 = arith.constant 1.000000e+00 : f32
    %581 = vector.broadcast %cst_271 : f32 to vector<4x32xf32>
    %582 = arith.addf %581, %580 : vector<4x32xf32>
    %583 = arith.divf %581, %582 : vector<4x32xf32>
    %584 = vector.extract_strided_slice %550 {offsets = [0, 32], sizes = [4, 32], strides = [1, 1]} : vector<4x128xf32> to vector<4x32xf32>
    %585 = arith.negf %584 : vector<4x32xf32>
    %586 = math.exp %585 : vector<4x32xf32>
    %cst_272 = arith.constant 1.000000e+00 : f32
    %587 = vector.broadcast %cst_272 : f32 to vector<4x32xf32>
    %588 = arith.addf %587, %586 : vector<4x32xf32>
    %589 = arith.divf %587, %588 : vector<4x32xf32>
    %590 = vector.extract_strided_slice %550 {offsets = [0, 64], sizes = [4, 32], strides = [1, 1]} : vector<4x128xf32> to vector<4x32xf32>
    %591 = math.tanh %590 : vector<4x32xf32>
    %592 = vector.extract_strided_slice %550 {offsets = [0, 96], sizes = [4, 32], strides = [1, 1]} : vector<4x128xf32> to vector<4x32xf32>
    %593 = arith.negf %592 : vector<4x32xf32>
    %594 = math.exp %593 : vector<4x32xf32>
    %cst_273 = arith.constant 1.000000e+00 : f32
    %595 = vector.broadcast %cst_273 : f32 to vector<4x32xf32>
    %596 = arith.addf %595, %594 : vector<4x32xf32>
    %597 = arith.divf %595, %596 : vector<4x32xf32>
    %598 = arith.mulf %589, %577 : vector<4x32xf32>
    %599 = arith.mulf %583, %591 : vector<4x32xf32>
    %600 = arith.addf %598, %599 : vector<4x32xf32>
    %601 = math.tanh %600 : vector<4x32xf32>
    %602 = arith.mulf %597, %601 : vector<4x32xf32>
    %c0_274 = arith.constant 0 : index
    %c0_275 = arith.constant 0 : index
    %603 = vector.load %arg7[%c0_274, %c0_275] : memref<4x32xf32, #tpu.memory_space<vmem>>, vector<4x32xf32>
    %604 = vector.shape_cast %530 : vector<4x1xi1> to vector<4x1xi1>
    %605 = vector.broadcast %604 : vector<4x1xi1> to vector<4x32xi1>
    %606 = arith.select %605, %576, %603 : vector<4x32xi1>, vector<4x32xf32>
    %c0_276 = arith.constant 0 : index
    %c0_277 = arith.constant 0 : index
    %607 = vector.load %arg7[%c0_276, %c0_277] : memref<4x32xf32, #tpu.memory_space<vmem>>, vector<4x32xf32>
    tpu.vector_store %arg7[%c0_276, %c0_277], %606 {strides = array<i32>} : memref<4x32xf32, #tpu.memory_space<vmem>>, vector<4x32xf32>,
    %c0_278 = arith.constant 0 : index
    %c0_279 = arith.constant 0 : index
    %608 = vector.load %arg8[%c0_278, %c0_279] : memref<4x32xf32, #tpu.memory_space<vmem>>, vector<4x32xf32>
    %609 = vector.shape_cast %530 : vector<4x1xi1> to vector<4x1xi1>
    %610 = vector.broadcast %609 : vector<4x1xi1> to vector<4x32xi1>
    %611 = arith.select %610, %574, %608 : vector<4x32xi1>, vector<4x32xf32>
    %c0_280 = arith.constant 0 : index
    %c0_281 = arith.constant 0 : index
    %612 = vector.load %arg8[%c0_280, %c0_281] : memref<4x32xf32, #tpu.memory_space<vmem>>, vector<4x32xf32>
    tpu.vector_store %arg8[%c0_280, %c0_281], %611 {strides = array<i32>} : memref<4x32xf32, #tpu.memory_space<vmem>>, vector<4x32xf32>,
    %c0_282 = arith.constant 0 : index
    %c0_283 = arith.constant 0 : index
    %613 = vector.load %arg9[%c0_282, %c0_283] : memref<4x32xf32, #tpu.memory_space<vmem>>, vector<4x32xf32>
    %614 = vector.shape_cast %532 : vector<4x1xi1> to vector<4x1xi1>
    %615 = vector.broadcast %614 : vector<4x1xi1> to vector<4x32xi1>
    %616 = arith.select %615, %602, %613 : vector<4x32xi1>, vector<4x32xf32>
    %c0_284 = arith.constant 0 : index
    %c0_285 = arith.constant 0 : index
    %617 = vector.load %arg9[%c0_284, %c0_285] : memref<4x32xf32, #tpu.memory_space<vmem>>, vector<4x32xf32>
    tpu.vector_store %arg9[%c0_284, %c0_285], %616 {strides = array<i32>} : memref<4x32xf32, #tpu.memory_space<vmem>>, vector<4x32xf32>,
    %c0_286 = arith.constant 0 : index
    %c0_287 = arith.constant 0 : index
    %618 = vector.load %arg10[%c0_286, %c0_287] : memref<4x32xf32, #tpu.memory_space<vmem>>, vector<4x32xf32>
    %619 = vector.shape_cast %532 : vector<4x1xi1> to vector<4x1xi1>
    %620 = vector.broadcast %619 : vector<4x1xi1> to vector<4x32xi1>
    %621 = arith.select %620, %600, %618 : vector<4x32xi1>, vector<4x32xf32>
    %c0_288 = arith.constant 0 : index
    %c0_289 = arith.constant 0 : index
    %622 = vector.load %arg10[%c0_288, %c0_289] : memref<4x32xf32, #tpu.memory_space<vmem>>, vector<4x32xf32>
    tpu.vector_store %arg10[%c0_288, %c0_289], %621 {strides = array<i32>} : memref<4x32xf32, #tpu.memory_space<vmem>>, vector<4x32xf32>,
    %623 = vector.broadcast %534 : vector<4x1xf32> to vector<4x32xf32>
    %624 = arith.mulf %576, %623 : vector<4x32xf32>
    %c5_290 = arith.constant 5 : index
    %c0_291 = arith.constant 0 : index
    %c0_292 = arith.constant 0 : index
    %625 = vector.load %arg5[%c5_290, %c0_291, %c0_292] : memref<8x4x32xf32, #tpu.memory_space<vmem>>, vector<1x4x32xf32>
    %626 = vector.shape_cast %625 : vector<1x4x32xf32> to vector<4x32xf32>
    %627 = vector.shape_cast %624 : vector<4x32xf32> to vector<1x4x32xf32>
    tpu.vector_store %arg5[%c5_290, %c0_291, %c0_292], %627 {strides = array<i32>} : memref<8x4x32xf32, #tpu.memory_space<vmem>>, vector<1x4x32xf32>,
    %628 = vector.broadcast %536 : vector<4x1xf32> to vector<4x32xf32>
    %629 = arith.mulf %602, %628 : vector<4x32xf32>
    %c2_293 = arith.constant 2 : index
    %c0_294 = arith.constant 0 : index
    %c0_295 = arith.constant 0 : index
    %630 = vector.load %arg6[%c2_293, %c0_294, %c0_295] : memref<8x4x32xf32, #tpu.memory_space<vmem>>, vector<1x4x32xf32>
    %631 = vector.shape_cast %630 : vector<1x4x32xf32> to vector<4x32xf32>
    %632 = vector.shape_cast %629 : vector<4x32xf32> to vector<1x4x32xf32>
    tpu.vector_store %arg6[%c2_293, %c0_294, %c0_295], %632 {strides = array<i32>} : memref<8x4x32xf32, #tpu.memory_space<vmem>>, vector<1x4x32xf32>,
    %c6_i32_296 = arith.constant 6 : i32
    %633 = vector.broadcast %c6_i32_296 : i32 to vector<4x1xi32>
    %634 = arith.cmpi sgt, %0, %633 : vector<4x1xi32>
    %c1_i32_297 = arith.constant 1 : i32
    %635 = vector.broadcast %c1_i32_297 : i32 to vector<4x1xi32>
    %636 = arith.cmpi sgt, %0, %635 : vector<4x1xi32>
    %637 = arith.extui %634 : vector<4x1xi1> to vector<4x1xi32>
    %638 = arith.sitofp %637 : vector<4x1xi32> to vector<4x1xf32>
    %639 = arith.extui %636 : vector<4x1xi1> to vector<4x1xi32>
    %640 = arith.sitofp %639 : vector<4x1xi32> to vector<4x1xf32>
    %c6_298 = arith.constant 6 : index
    %c0_299 = arith.constant 0 : index
    %c0_300 = arith.constant 0 : index
    %641 = vector.load %arg0[%c6_298, %c0_299, %c0_300] : memref<8x4x256xf32, #tpu.memory_space<vmem>>, vector<1x4x128xf32>
    %642 = vector.shape_cast %641 : vector<1x4x128xf32> to vector<4x128xf32>
    %c0_301 = arith.constant 0 : index
    %c0_302 = arith.constant 0 : index
    %643 = vector.load %arg7[%c0_301, %c0_302] : memref<4x32xf32, #tpu.memory_space<vmem>>, vector<4x32xf32>
    %644 = arith.truncf %643 : vector<4x32xf32> to vector<4x32xbf16>
    %c0_303 = arith.constant 0 : index
    %c0_304 = arith.constant 0 : index
    %645 = vector.load %arg2[%c0_303, %c0_304] : memref<32x128xbf16, #tpu.memory_space<vmem>>, vector<32x128xbf16>
    %cst_305 = arith.constant dense<0.000000e+00> : vector<4x128xf32>
    %646 = tpu.matmul %644, %645, %cst_305 {dimension_numbers = #tpu.dot_dimension_numbers<[1], [0], [0], [1], [0, 0, 1, 1], [], []>} : vector<4x32xbf16>, vector<32x128xbf16>, vector<4x128xf32> -> vector<4x128xf32>
    %647 = arith.addf %642, %646 : vector<4x128xf32>
    %c1_306 = arith.constant 1 : index
    %c0_307 = arith.constant 0 : index
    %c128_308 = arith.constant 128 : index
    %648 = vector.load %arg0[%c1_306, %c0_307, %c128_308] : memref<8x4x256xf32, #tpu.memory_space<vmem>>, vector<1x4x128xf32>
    %649 = vector.shape_cast %648 : vector<1x4x128xf32> to vector<4x128xf32>
    %c0_309 = arith.constant 0 : index
    %c0_310 = arith.constant 0 : index
    %650 = vector.load %arg9[%c0_309, %c0_310] : memref<4x32xf32, #tpu.memory_space<vmem>>, vector<4x32xf32>
    %651 = arith.truncf %650 : vector<4x32xf32> to vector<4x32xbf16>
    %c0_311 = arith.constant 0 : index
    %c0_312 = arith.constant 0 : index
    %652 = vector.load %arg3[%c0_311, %c0_312] : memref<32x128xbf16, #tpu.memory_space<vmem>>, vector<32x128xbf16>
    %cst_313 = arith.constant dense<0.000000e+00> : vector<4x128xf32>
    %653 = tpu.matmul %651, %652, %cst_313 {dimension_numbers = #tpu.dot_dimension_numbers<[1], [0], [0], [1], [0, 0, 1, 1], [], []>} : vector<4x32xbf16>, vector<32x128xbf16>, vector<4x128xf32> -> vector<4x128xf32>
    %654 = arith.addf %649, %653 : vector<4x128xf32>
    %c0_314 = arith.constant 0 : index
    %c0_315 = arith.constant 0 : index
    %655 = vector.load %arg8[%c0_314, %c0_315] : memref<4x32xf32, #tpu.memory_space<vmem>>, vector<4x32xf32>
    %656 = vector.extract_strided_slice %647 {offsets = [0, 0], sizes = [4, 32], strides = [1, 1]} : vector<4x128xf32> to vector<4x32xf32>
    %657 = arith.negf %656 : vector<4x32xf32>
    %658 = math.exp %657 : vector<4x32xf32>
    %cst_316 = arith.constant 1.000000e+00 : f32
    %659 = vector.broadcast %cst_316 : f32 to vector<4x32xf32>
    %660 = arith.addf %659, %658 : vector<4x32xf32>
    %661 = arith.divf %659, %660 : vector<4x32xf32>
    %662 = vector.extract_strided_slice %647 {offsets = [0, 32], sizes = [4, 32], strides = [1, 1]} : vector<4x128xf32> to vector<4x32xf32>
    %663 = arith.negf %662 : vector<4x32xf32>
    %664 = math.exp %663 : vector<4x32xf32>
    %cst_317 = arith.constant 1.000000e+00 : f32
    %665 = vector.broadcast %cst_317 : f32 to vector<4x32xf32>
    %666 = arith.addf %665, %664 : vector<4x32xf32>
    %667 = arith.divf %665, %666 : vector<4x32xf32>
    %668 = vector.extract_strided_slice %647 {offsets = [0, 64], sizes = [4, 32], strides = [1, 1]} : vector<4x128xf32> to vector<4x32xf32>
    %669 = math.tanh %668 : vector<4x32xf32>
    %670 = vector.extract_strided_slice %647 {offsets = [0, 96], sizes = [4, 32], strides = [1, 1]} : vector<4x128xf32> to vector<4x32xf32>
    %671 = arith.negf %670 : vector<4x32xf32>
    %672 = math.exp %671 : vector<4x32xf32>
    %cst_318 = arith.constant 1.000000e+00 : f32
    %673 = vector.broadcast %cst_318 : f32 to vector<4x32xf32>
    %674 = arith.addf %673, %672 : vector<4x32xf32>
    %675 = arith.divf %673, %674 : vector<4x32xf32>
    %676 = arith.mulf %667, %655 : vector<4x32xf32>
    %677 = arith.mulf %661, %669 : vector<4x32xf32>
    %678 = arith.addf %676, %677 : vector<4x32xf32>
    %679 = math.tanh %678 : vector<4x32xf32>
    %680 = arith.mulf %675, %679 : vector<4x32xf32>
    %c0_319 = arith.constant 0 : index
    %c0_320 = arith.constant 0 : index
    %681 = vector.load %arg10[%c0_319, %c0_320] : memref<4x32xf32, #tpu.memory_space<vmem>>, vector<4x32xf32>
    %682 = vector.extract_strided_slice %654 {offsets = [0, 0], sizes = [4, 32], strides = [1, 1]} : vector<4x128xf32> to vector<4x32xf32>
    %683 = arith.negf %682 : vector<4x32xf32>
    %684 = math.exp %683 : vector<4x32xf32>
    %cst_321 = arith.constant 1.000000e+00 : f32
    %685 = vector.broadcast %cst_321 : f32 to vector<4x32xf32>
    %686 = arith.addf %685, %684 : vector<4x32xf32>
    %687 = arith.divf %685, %686 : vector<4x32xf32>
    %688 = vector.extract_strided_slice %654 {offsets = [0, 32], sizes = [4, 32], strides = [1, 1]} : vector<4x128xf32> to vector<4x32xf32>
    %689 = arith.negf %688 : vector<4x32xf32>
    %690 = math.exp %689 : vector<4x32xf32>
    %cst_322 = arith.constant 1.000000e+00 : f32
    %691 = vector.broadcast %cst_322 : f32 to vector<4x32xf32>
    %692 = arith.addf %691, %690 : vector<4x32xf32>
    %693 = arith.divf %691, %692 : vector<4x32xf32>
    %694 = vector.extract_strided_slice %654 {offsets = [0, 64], sizes = [4, 32], strides = [1, 1]} : vector<4x128xf32> to vector<4x32xf32>
    %695 = math.tanh %694 : vector<4x32xf32>
    %696 = vector.extract_strided_slice %654 {offsets = [0, 96], sizes = [4, 32], strides = [1, 1]} : vector<4x128xf32> to vector<4x32xf32>
    %697 = arith.negf %696 : vector<4x32xf32>
    %698 = math.exp %697 : vector<4x32xf32>
    %cst_323 = arith.constant 1.000000e+00 : f32
    %699 = vector.broadcast %cst_323 : f32 to vector<4x32xf32>
    %700 = arith.addf %699, %698 : vector<4x32xf32>
    %701 = arith.divf %699, %700 : vector<4x32xf32>
    %702 = arith.mulf %693, %681 : vector<4x32xf32>
    %703 = arith.mulf %687, %695 : vector<4x32xf32>
    %704 = arith.addf %702, %703 : vector<4x32xf32>
    %705 = math.tanh %704 : vector<4x32xf32>
    %706 = arith.mulf %701, %705 : vector<4x32xf32>
    %c0_324 = arith.constant 0 : index
    %c0_325 = arith.constant 0 : index
    %707 = vector.load %arg7[%c0_324, %c0_325] : memref<4x32xf32, #tpu.memory_space<vmem>>, vector<4x32xf32>
    %708 = vector.shape_cast %634 : vector<4x1xi1> to vector<4x1xi1>
    %709 = vector.broadcast %708 : vector<4x1xi1> to vector<4x32xi1>
    %710 = arith.select %709, %680, %707 : vector<4x32xi1>, vector<4x32xf32>
    %c0_326 = arith.constant 0 : index
    %c0_327 = arith.constant 0 : index
    %711 = vector.load %arg7[%c0_326, %c0_327] : memref<4x32xf32, #tpu.memory_space<vmem>>, vector<4x32xf32>
    tpu.vector_store %arg7[%c0_326, %c0_327], %710 {strides = array<i32>} : memref<4x32xf32, #tpu.memory_space<vmem>>, vector<4x32xf32>,
    %c0_328 = arith.constant 0 : index
    %c0_329 = arith.constant 0 : index
    %712 = vector.load %arg8[%c0_328, %c0_329] : memref<4x32xf32, #tpu.memory_space<vmem>>, vector<4x32xf32>
    %713 = vector.shape_cast %634 : vector<4x1xi1> to vector<4x1xi1>
    %714 = vector.broadcast %713 : vector<4x1xi1> to vector<4x32xi1>
    %715 = arith.select %714, %678, %712 : vector<4x32xi1>, vector<4x32xf32>
    %c0_330 = arith.constant 0 : index
    %c0_331 = arith.constant 0 : index
    %716 = vector.load %arg8[%c0_330, %c0_331] : memref<4x32xf32, #tpu.memory_space<vmem>>, vector<4x32xf32>
    tpu.vector_store %arg8[%c0_330, %c0_331], %715 {strides = array<i32>} : memref<4x32xf32, #tpu.memory_space<vmem>>, vector<4x32xf32>,
    %c0_332 = arith.constant 0 : index
    %c0_333 = arith.constant 0 : index
    %717 = vector.load %arg9[%c0_332, %c0_333] : memref<4x32xf32, #tpu.memory_space<vmem>>, vector<4x32xf32>
    %718 = vector.shape_cast %636 : vector<4x1xi1> to vector<4x1xi1>
    %719 = vector.broadcast %718 : vector<4x1xi1> to vector<4x32xi1>
    %720 = arith.select %719, %706, %717 : vector<4x32xi1>, vector<4x32xf32>
    %c0_334 = arith.constant 0 : index
    %c0_335 = arith.constant 0 : index
    %721 = vector.load %arg9[%c0_334, %c0_335] : memref<4x32xf32, #tpu.memory_space<vmem>>, vector<4x32xf32>
    tpu.vector_store %arg9[%c0_334, %c0_335], %720 {strides = array<i32>} : memref<4x32xf32, #tpu.memory_space<vmem>>, vector<4x32xf32>,
    %c0_336 = arith.constant 0 : index
    %c0_337 = arith.constant 0 : index
    %722 = vector.load %arg10[%c0_336, %c0_337] : memref<4x32xf32, #tpu.memory_space<vmem>>, vector<4x32xf32>
    %723 = vector.shape_cast %636 : vector<4x1xi1> to vector<4x1xi1>
    %724 = vector.broadcast %723 : vector<4x1xi1> to vector<4x32xi1>
    %725 = arith.select %724, %704, %722 : vector<4x32xi1>, vector<4x32xf32>
    %c0_338 = arith.constant 0 : index
    %c0_339 = arith.constant 0 : index
    %726 = vector.load %arg10[%c0_338, %c0_339] : memref<4x32xf32, #tpu.memory_space<vmem>>, vector<4x32xf32>
    tpu.vector_store %arg10[%c0_338, %c0_339], %725 {strides = array<i32>} : memref<4x32xf32, #tpu.memory_space<vmem>>, vector<4x32xf32>,
    %727 = vector.broadcast %638 : vector<4x1xf32> to vector<4x32xf32>
    %728 = arith.mulf %680, %727 : vector<4x32xf32>
    %c6_340 = arith.constant 6 : index
    %c0_341 = arith.constant 0 : index
    %c0_342 = arith.constant 0 : index
    %729 = vector.load %arg5[%c6_340, %c0_341, %c0_342] : memref<8x4x32xf32, #tpu.memory_space<vmem>>, vector<1x4x32xf32>
    %730 = vector.shape_cast %729 : vector<1x4x32xf32> to vector<4x32xf32>
    %731 = vector.shape_cast %728 : vector<4x32xf32> to vector<1x4x32xf32>
    tpu.vector_store %arg5[%c6_340, %c0_341, %c0_342], %731 {strides = array<i32>} : memref<8x4x32xf32, #tpu.memory_space<vmem>>, vector<1x4x32xf32>,
    %732 = vector.broadcast %640 : vector<4x1xf32> to vector<4x32xf32>
    %733 = arith.mulf %706, %732 : vector<4x32xf32>
    %c1_343 = arith.constant 1 : index
    %c0_344 = arith.constant 0 : index
    %c0_345 = arith.constant 0 : index
    %734 = vector.load %arg6[%c1_343, %c0_344, %c0_345] : memref<8x4x32xf32, #tpu.memory_space<vmem>>, vector<1x4x32xf32>
    %735 = vector.shape_cast %734 : vector<1x4x32xf32> to vector<4x32xf32>
    %736 = vector.shape_cast %733 : vector<4x32xf32> to vector<1x4x32xf32>
    tpu.vector_store %arg6[%c1_343, %c0_344, %c0_345], %736 {strides = array<i32>} : memref<8x4x32xf32, #tpu.memory_space<vmem>>, vector<1x4x32xf32>,
    %c7_i32_346 = arith.constant 7 : i32
    %737 = vector.broadcast %c7_i32_346 : i32 to vector<4x1xi32>
    %738 = arith.cmpi sgt, %0, %737 : vector<4x1xi32>
    %c0_i32_347 = arith.constant 0 : i32
    %739 = vector.broadcast %c0_i32_347 : i32 to vector<4x1xi32>
    %740 = arith.cmpi sgt, %0, %739 : vector<4x1xi32>
    %741 = arith.extui %738 : vector<4x1xi1> to vector<4x1xi32>
    %742 = arith.sitofp %741 : vector<4x1xi32> to vector<4x1xf32>
    %743 = arith.extui %740 : vector<4x1xi1> to vector<4x1xi32>
    %744 = arith.sitofp %743 : vector<4x1xi32> to vector<4x1xf32>
    %c7_348 = arith.constant 7 : index
    %c0_349 = arith.constant 0 : index
    %c0_350 = arith.constant 0 : index
    %745 = vector.load %arg0[%c7_348, %c0_349, %c0_350] : memref<8x4x256xf32, #tpu.memory_space<vmem>>, vector<1x4x128xf32>
    %746 = vector.shape_cast %745 : vector<1x4x128xf32> to vector<4x128xf32>
    %c0_351 = arith.constant 0 : index
    %c0_352 = arith.constant 0 : index
    %747 = vector.load %arg7[%c0_351, %c0_352] : memref<4x32xf32, #tpu.memory_space<vmem>>, vector<4x32xf32>
    %748 = arith.truncf %747 : vector<4x32xf32> to vector<4x32xbf16>
    %c0_353 = arith.constant 0 : index
    %c0_354 = arith.constant 0 : index
    %749 = vector.load %arg2[%c0_353, %c0_354] : memref<32x128xbf16, #tpu.memory_space<vmem>>, vector<32x128xbf16>
    %cst_355 = arith.constant dense<0.000000e+00> : vector<4x128xf32>
    %750 = tpu.matmul %748, %749, %cst_355 {dimension_numbers = #tpu.dot_dimension_numbers<[1], [0], [0], [1], [0, 0, 1, 1], [], []>} : vector<4x32xbf16>, vector<32x128xbf16>, vector<4x128xf32> -> vector<4x128xf32>
    %751 = arith.addf %746, %750 : vector<4x128xf32>
    %c0_356 = arith.constant 0 : index
    %c0_357 = arith.constant 0 : index
    %c128_358 = arith.constant 128 : index
    %752 = vector.load %arg0[%c0_356, %c0_357, %c128_358] : memref<8x4x256xf32, #tpu.memory_space<vmem>>, vector<1x4x128xf32>
    %753 = vector.shape_cast %752 : vector<1x4x128xf32> to vector<4x128xf32>
    %c0_359 = arith.constant 0 : index
    %c0_360 = arith.constant 0 : index
    %754 = vector.load %arg9[%c0_359, %c0_360] : memref<4x32xf32, #tpu.memory_space<vmem>>, vector<4x32xf32>
    %755 = arith.truncf %754 : vector<4x32xf32> to vector<4x32xbf16>
    %c0_361 = arith.constant 0 : index
    %c0_362 = arith.constant 0 : index
    %756 = vector.load %arg3[%c0_361, %c0_362] : memref<32x128xbf16, #tpu.memory_space<vmem>>, vector<32x128xbf16>
    %cst_363 = arith.constant dense<0.000000e+00> : vector<4x128xf32>
    %757 = tpu.matmul %755, %756, %cst_363 {dimension_numbers = #tpu.dot_dimension_numbers<[1], [0], [0], [1], [0, 0, 1, 1], [], []>} : vector<4x32xbf16>, vector<32x128xbf16>, vector<4x128xf32> -> vector<4x128xf32>
    %758 = arith.addf %753, %757 : vector<4x128xf32>
    %c0_364 = arith.constant 0 : index
    %c0_365 = arith.constant 0 : index
    %759 = vector.load %arg8[%c0_364, %c0_365] : memref<4x32xf32, #tpu.memory_space<vmem>>, vector<4x32xf32>
    %760 = vector.extract_strided_slice %751 {offsets = [0, 0], sizes = [4, 32], strides = [1, 1]} : vector<4x128xf32> to vector<4x32xf32>
    %761 = arith.negf %760 : vector<4x32xf32>
    %762 = math.exp %761 : vector<4x32xf32>
    %cst_366 = arith.constant 1.000000e+00 : f32
    %763 = vector.broadcast %cst_366 : f32 to vector<4x32xf32>
    %764 = arith.addf %763, %762 : vector<4x32xf32>
    %765 = arith.divf %763, %764 : vector<4x32xf32>
    %766 = vector.extract_strided_slice %751 {offsets = [0, 32], sizes = [4, 32], strides = [1, 1]} : vector<4x128xf32> to vector<4x32xf32>
    %767 = arith.negf %766 : vector<4x32xf32>
    %768 = math.exp %767 : vector<4x32xf32>
    %cst_367 = arith.constant 1.000000e+00 : f32
    %769 = vector.broadcast %cst_367 : f32 to vector<4x32xf32>
    %770 = arith.addf %769, %768 : vector<4x32xf32>
    %771 = arith.divf %769, %770 : vector<4x32xf32>
    %772 = vector.extract_strided_slice %751 {offsets = [0, 64], sizes = [4, 32], strides = [1, 1]} : vector<4x128xf32> to vector<4x32xf32>
    %773 = math.tanh %772 : vector<4x32xf32>
    %774 = vector.extract_strided_slice %751 {offsets = [0, 96], sizes = [4, 32], strides = [1, 1]} : vector<4x128xf32> to vector<4x32xf32>
    %775 = arith.negf %774 : vector<4x32xf32>
    %776 = math.exp %775 : vector<4x32xf32>
    %cst_368 = arith.constant 1.000000e+00 : f32
    %777 = vector.broadcast %cst_368 : f32 to vector<4x32xf32>
    %778 = arith.addf %777, %776 : vector<4x32xf32>
    %779 = arith.divf %777, %778 : vector<4x32xf32>
    %780 = arith.mulf %771, %759 : vector<4x32xf32>
    %781 = arith.mulf %765, %773 : vector<4x32xf32>
    %782 = arith.addf %780, %781 : vector<4x32xf32>
    %783 = math.tanh %782 : vector<4x32xf32>
    %784 = arith.mulf %779, %783 : vector<4x32xf32>
    %c0_369 = arith.constant 0 : index
    %c0_370 = arith.constant 0 : index
    %785 = vector.load %arg10[%c0_369, %c0_370] : memref<4x32xf32, #tpu.memory_space<vmem>>, vector<4x32xf32>
    %786 = vector.extract_strided_slice %758 {offsets = [0, 0], sizes = [4, 32], strides = [1, 1]} : vector<4x128xf32> to vector<4x32xf32>
    %787 = arith.negf %786 : vector<4x32xf32>
    %788 = math.exp %787 : vector<4x32xf32>
    %cst_371 = arith.constant 1.000000e+00 : f32
    %789 = vector.broadcast %cst_371 : f32 to vector<4x32xf32>
    %790 = arith.addf %789, %788 : vector<4x32xf32>
    %791 = arith.divf %789, %790 : vector<4x32xf32>
    %792 = vector.extract_strided_slice %758 {offsets = [0, 32], sizes = [4, 32], strides = [1, 1]} : vector<4x128xf32> to vector<4x32xf32>
    %793 = arith.negf %792 : vector<4x32xf32>
    %794 = math.exp %793 : vector<4x32xf32>
    %cst_372 = arith.constant 1.000000e+00 : f32
    %795 = vector.broadcast %cst_372 : f32 to vector<4x32xf32>
    %796 = arith.addf %795, %794 : vector<4x32xf32>
    %797 = arith.divf %795, %796 : vector<4x32xf32>
    %798 = vector.extract_strided_slice %758 {offsets = [0, 64], sizes = [4, 32], strides = [1, 1]} : vector<4x128xf32> to vector<4x32xf32>
    %799 = math.tanh %798 : vector<4x32xf32>
    %800 = vector.extract_strided_slice %758 {offsets = [0, 96], sizes = [4, 32], strides = [1, 1]} : vector<4x128xf32> to vector<4x32xf32>
    %801 = arith.negf %800 : vector<4x32xf32>
    %802 = math.exp %801 : vector<4x32xf32>
    %cst_373 = arith.constant 1.000000e+00 : f32
    %803 = vector.broadcast %cst_373 : f32 to vector<4x32xf32>
    %804 = arith.addf %803, %802 : vector<4x32xf32>
    %805 = arith.divf %803, %804 : vector<4x32xf32>
    %806 = arith.mulf %797, %785 : vector<4x32xf32>
    %807 = arith.mulf %791, %799 : vector<4x32xf32>
    %808 = arith.addf %806, %807 : vector<4x32xf32>
    %809 = math.tanh %808 : vector<4x32xf32>
    %810 = arith.mulf %805, %809 : vector<4x32xf32>
    %c0_374 = arith.constant 0 : index
    %c0_375 = arith.constant 0 : index
    %811 = vector.load %arg7[%c0_374, %c0_375] : memref<4x32xf32, #tpu.memory_space<vmem>>, vector<4x32xf32>
    %812 = vector.shape_cast %738 : vector<4x1xi1> to vector<4x1xi1>
    %813 = vector.broadcast %812 : vector<4x1xi1> to vector<4x32xi1>
    %814 = arith.select %813, %784, %811 : vector<4x32xi1>, vector<4x32xf32>
    %c0_376 = arith.constant 0 : index
    %c0_377 = arith.constant 0 : index
    %815 = vector.load %arg7[%c0_376, %c0_377] : memref<4x32xf32, #tpu.memory_space<vmem>>, vector<4x32xf32>
    tpu.vector_store %arg7[%c0_376, %c0_377], %814 {strides = array<i32>} : memref<4x32xf32, #tpu.memory_space<vmem>>, vector<4x32xf32>,
    %c0_378 = arith.constant 0 : index
    %c0_379 = arith.constant 0 : index
    %816 = vector.load %arg8[%c0_378, %c0_379] : memref<4x32xf32, #tpu.memory_space<vmem>>, vector<4x32xf32>
    %817 = vector.shape_cast %738 : vector<4x1xi1> to vector<4x1xi1>
    %818 = vector.broadcast %817 : vector<4x1xi1> to vector<4x32xi1>
    %819 = arith.select %818, %782, %816 : vector<4x32xi1>, vector<4x32xf32>
    %c0_380 = arith.constant 0 : index
    %c0_381 = arith.constant 0 : index
    %820 = vector.load %arg8[%c0_380, %c0_381] : memref<4x32xf32, #tpu.memory_space<vmem>>, vector<4x32xf32>
    tpu.vector_store %arg8[%c0_380, %c0_381], %819 {strides = array<i32>} : memref<4x32xf32, #tpu.memory_space<vmem>>, vector<4x32xf32>,
    %c0_382 = arith.constant 0 : index
    %c0_383 = arith.constant 0 : index
    %821 = vector.load %arg9[%c0_382, %c0_383] : memref<4x32xf32, #tpu.memory_space<vmem>>, vector<4x32xf32>
    %822 = vector.shape_cast %740 : vector<4x1xi1> to vector<4x1xi1>
    %823 = vector.broadcast %822 : vector<4x1xi1> to vector<4x32xi1>
    %824 = arith.select %823, %810, %821 : vector<4x32xi1>, vector<4x32xf32>
    %c0_384 = arith.constant 0 : index
    %c0_385 = arith.constant 0 : index
    %825 = vector.load %arg9[%c0_384, %c0_385] : memref<4x32xf32, #tpu.memory_space<vmem>>, vector<4x32xf32>
    tpu.vector_store %arg9[%c0_384, %c0_385], %824 {strides = array<i32>} : memref<4x32xf32, #tpu.memory_space<vmem>>, vector<4x32xf32>,
    %c0_386 = arith.constant 0 : index
    %c0_387 = arith.constant 0 : index
    %826 = vector.load %arg10[%c0_386, %c0_387] : memref<4x32xf32, #tpu.memory_space<vmem>>, vector<4x32xf32>
    %827 = vector.shape_cast %740 : vector<4x1xi1> to vector<4x1xi1>
    %828 = vector.broadcast %827 : vector<4x1xi1> to vector<4x32xi1>
    %829 = arith.select %828, %808, %826 : vector<4x32xi1>, vector<4x32xf32>
    %c0_388 = arith.constant 0 : index
    %c0_389 = arith.constant 0 : index
    %830 = vector.load %arg10[%c0_388, %c0_389] : memref<4x32xf32, #tpu.memory_space<vmem>>, vector<4x32xf32>
    tpu.vector_store %arg10[%c0_388, %c0_389], %829 {strides = array<i32>} : memref<4x32xf32, #tpu.memory_space<vmem>>, vector<4x32xf32>,
    %831 = vector.broadcast %742 : vector<4x1xf32> to vector<4x32xf32>
    %832 = arith.mulf %784, %831 : vector<4x32xf32>
    %c7_390 = arith.constant 7 : index
    %c0_391 = arith.constant 0 : index
    %c0_392 = arith.constant 0 : index
    %833 = vector.load %arg5[%c7_390, %c0_391, %c0_392] : memref<8x4x32xf32, #tpu.memory_space<vmem>>, vector<1x4x32xf32>
    %834 = vector.shape_cast %833 : vector<1x4x32xf32> to vector<4x32xf32>
    %835 = vector.shape_cast %832 : vector<4x32xf32> to vector<1x4x32xf32>
    tpu.vector_store %arg5[%c7_390, %c0_391, %c0_392], %835 {strides = array<i32>} : memref<8x4x32xf32, #tpu.memory_space<vmem>>, vector<1x4x32xf32>,
    %836 = vector.broadcast %744 : vector<4x1xf32> to vector<4x32xf32>
    %837 = arith.mulf %810, %836 : vector<4x32xf32>
    %c0_393 = arith.constant 0 : index
    %c0_394 = arith.constant 0 : index
    %c0_395 = arith.constant 0 : index
    %838 = vector.load %arg6[%c0_393, %c0_394, %c0_395] : memref<8x4x32xf32, #tpu.memory_space<vmem>>, vector<1x4x32xf32>
    %839 = vector.shape_cast %838 : vector<1x4x32xf32> to vector<4x32xf32>
    %840 = vector.shape_cast %837 : vector<4x32xf32> to vector<1x4x32xf32>
    tpu.vector_store %arg6[%c0_393, %c0_394, %c0_395], %840 {strides = array<i32>} : memref<8x4x32xf32, #tpu.memory_space<vmem>>, vector<1x4x32xf32>,
    %c0_396 = arith.constant 0 : index
    %c0_397 = arith.constant 0 : index
    %c0_398 = arith.constant 0 : index
    %841 = vector.load %arg5[%c0_396, %c0_397, %c0_398] : memref<8x4x32xf32, #tpu.memory_space<vmem>>, vector<8x4x32xf32>
    %c0_399 = arith.constant 0 : index
    %c0_400 = arith.constant 0 : index
    %c0_401 = arith.constant 0 : index
    %842 = vector.load %arg4[%c0_399, %c0_400, %c0_401] : memref<8x4x64xf32, #tpu.memory_space<vmem>>, vector<8x4x32xf32>
    tpu.vector_store %arg4[%c0_399, %c0_400, %c0_401], %841 {strides = array<i32>} : memref<8x4x64xf32, #tpu.memory_space<vmem>>, vector<8x4x32xf32>,
    %c0_402 = arith.constant 0 : index
    %c0_403 = arith.constant 0 : index
    %c0_404 = arith.constant 0 : index
    %843 = vector.load %arg6[%c0_402, %c0_403, %c0_404] : memref<8x4x32xf32, #tpu.memory_space<vmem>>, vector<8x4x32xf32>
    %c0_405 = arith.constant 0 : index
    %c0_406 = arith.constant 0 : index
    %c32 = arith.constant 32 : index
    %844 = vector.load %arg4[%c0_405, %c0_406, %c32] : memref<8x4x64xf32, #tpu.memory_space<vmem>>, vector<8x4x32xf32>
    tpu.vector_store %arg4[%c0_405, %c0_406, %c32], %843 {strides = array<i32>} : memref<8x4x64xf32, #tpu.memory_space<vmem>>, vector<8x4x32xf32>,
    return
  }
}

</mosaic_0001>

<llo_original>
// kernel: _lambda_.7
$region0: #{_lambda_.7}
  #allocation0 [shape = 'u32[]', space=smem, size = 0x4, offset = 0x4, fixed_abs, tag = 'smem constant byte address 0x4 - core index']
  #allocation1 [shape = 'u32[144,128]{1,0:T(1,128)}', space=vmem, size = 0x12000, scoped, tag = 'internal scratch']
  %s0 = inlined_call_operand.vmem [shape: f32[32,64], index: 0, kind: input, shape index: {}]
  %s1 = inlined_call_operand.vmem [shape: bf16[64,256], index: 1, kind: input, shape index: {}]
  %s2 = inlined_call_operand.vmem [shape: f32[1,256], index: 2, kind: input, shape index: {}]
  %s3 = inlined_call_operand.vmem [shape: f32[32,256], index: 3, kind: output, shape index: {}]
  %s4 = sld [smem:[#allocation0]]
  $region22: #{_lambda_.7} parent=0
    _
  %s6 = ssub.s32 1, %s4
  %s7 = scalar_select 0, %s6, %s4
  // Predicated region
  $region2: #{_lambda_.7} parent=0 // pred_check
    _
  $region3: #{_lambda_.7} parent=0 // pred_check_branch
    %9 = sbr.rel (0) target = $region5
  $region4: #{_lambda_.7} parent=0 // pred_region
    _
  $region5: #{_lambda_.7} parent=0 // pred_fallthru
    _
  // Predicated region
  $region6: #{_lambda_.7} parent=0 // pred_check
    _
  $region7: #{_lambda_.7} parent=0 // pred_check_branch
    %11 = sbr.rel (0) target = $region9
  $region8: #{_lambda_.7} parent=0 // pred_region
    _
  $region9: #{_lambda_.7} parent=0 // pred_fallthru
    _
  // Predicated region
  $region10: #{_lambda_.7} parent=0 // pred_check
    _
  $region11: #{_lambda_.7} parent=0 // pred_check_branch
    %13 = sbr.rel (0) target = $region13
  $region12: #{_lambda_.7} parent=0 // pred_region
    _
  $region13: #{_lambda_.7} parent=0 // pred_fallthru
    _
  %v15 = vld [vmem:[%s0] sm:$0xff]
  %v16 = vld [vmem:[%s0 + $0x8] sm:$0xff]
  %v17 = vld [vmem:[%s0 + $0x10] sm:$0xff]
  %v18 = vld [vmem:[%s0 + $0x18] sm:$0xff]
  %v19 = vpack.c.bf16 %v16, %v15
  %v20 = vpack.c.bf16 %v18, %v17
  %v21 = vld [vmem:[%s1] sm:$0xff]
  %v22 = vld [vmem:[%s1 + $0x8] sm:$0xff]
  %v23 = vld [vmem:[%s1 + $0x10] sm:$0xff]
  %v24 = vld [vmem:[%s1 + $0x18] sm:$0xff]
  %v25 = vld [vmem:[%s1 + $0x20] sm:$0xff]
  %v26 = vld [vmem:[%s1 + $0x28] sm:$0xff]
  %v27 = vld [vmem:[%s1 + $0x30] sm:$0xff]
  %v28 = vld [vmem:[%s1 + $0x38] sm:$0xff]
  %v29 = vld [vmem:[%s2] sm:$0x3]
  %v31 = vlaneseq
  %v32 = vshrl.u32 %v31, 7
  %v33 = vsub.s32 0, %v32
  %v34 = vrot.slane %v29, %v33
  %v35 = vlaneseq
  %v36 = vshrl.u32 %v35, 7
  %v37 = vsub.s32 1, %v36
  %v38 = vrot.slane %v29, %v37
  %v49 = vunpack.c.l.b16 %v21
  %v50 = vunpack.c.h.b16 %v21
  %v51 = vunpack.c.l.b16 %v22
  %v52 = vunpack.c.h.b16 %v22
  %v53 = vunpack.c.l.b16 %v23
  %v54 = vunpack.c.h.b16 %v23
  %v55 = vunpack.c.l.b16 %v24
  %v56 = vunpack.c.h.b16 %v24
  %v57 = vunpack.c.l.b16 %v25
  %v58 = vunpack.c.h.b16 %v25
  %v59 = vunpack.c.l.b16 %v26
  %v60 = vunpack.c.h.b16 %v26
  %v61 = vunpack.c.l.b16 %v27
  %v62 = vunpack.c.h.b16 %v27
  %v63 = vunpack.c.l.b16 %v28
  %v64 = vunpack.c.h.b16 %v28
  %v65 = vpack.c.b16 %v51, %v49
  %v66 = vpack.c.b16 %v52, %v50
  %v67 = vpack.c.b16 %v55, %v53
  %v68 = vpack.c.b16 %v56, %v54
  %v69 = vpack.c.b16 %v59, %v57
  %v70 = vpack.c.b16 %v60, %v58
  %v71 = vpack.c.b16 %v63, %v61
  %v72 = vpack.c.b16 %v64, %v62
  %vm81 = vcmask 523264
  %v83 = vsel %vm81, %v19, 0
  %v86 = vsel %vm81, %v20, 0
  %88 = vmatprep.subr.bf16.mxu0 %v66
  %89 = vmatpush1.bf16.msra.mxu0 %v65
  %90 = vmatprep.subr.bf16.mxu0 %v68
  %91 = vmatpush1.bf16.msra.mxu0 %v67
  %92 = vmatprep.subr.bf16.mxu0 %v70
  %93 = vmatpush1.bf16.msra.mxu0 %v69
  %94 = vmatprep.subr.bf16.mxu0 %v72
  %95 = vmatpush1.bf16.msra.mxu0 %v71
  %96 = vmatprep.subr.bf16.mxu0 0
  %97 = vmatpush1.bf16.msra.mxu0 0
  %98 = vmatprep.subr.bf16.mxu0 0
  %99 = vmatpush1.bf16.msra.mxu0 0
  %100 = vmatprep.subr.bf16.mxu0 0
  %101 = vmatpush1.bf16.msra.mxu0 0
  %102 = vmatprep.subr.bf16.mxu0 0
  %103 = vmatpush1.bf16.msra.mxu0 0
  %104 = vmatprep.subr.bf16.mxu0 0
  %105 = vmatpush1.bf16.msra.mxu0 0
  %106 = vmatprep.subr.bf16.mxu0 0
  %107 = vmatpush1.bf16.msra.mxu0 0
  %108 = vmatprep.subr.bf16.mxu0 0
  %109 = vmatpush1.bf16.msra.mxu0 0
  %110 = vmatprep.subr.bf16.mxu0 0
  %111 = vmatpush1.bf16.msra.mxu0 0
  %112 = vmatprep.subr.bf16.mxu0 0
  %113 = vmatpush1.bf16.msra.mxu0 0
  %114 = vmatprep.subr.bf16.mxu0 0
  %115 = vmatpush1.bf16.msra.mxu0 0
  %116 = vmatprep.subr.bf16.mxu0 0
  %117 = vmatpush1.bf16.msra.mxu0 0
  %118 = vmatprep.subr.bf16.mxu0 0
  %119 = vmatpush1.bf16.msra.mxu0 0
  %120 = vmatprep.mubr.bf16.mxu0 0
  %121 = vmatmul.mubr.bf16.gmra.mrb[0].mxu0 %v83
  %v122 = vpop.f32.mrb[0].mxu0
  %v123 = vadd.f32 %v34, %v122
  %v124 = vpop.f32.mrb[0].mxu0
  %v125 = vadd.f32 %v38, %v124
  %v126 = vpop.f32.mrb[0].mxu0
  %v127 = vadd.f32 %v34, %v126
  %v128 = vpop.f32.mrb[0].mxu0
  %v129 = vadd.f32 %v38, %v128
  %130 = vmatprep.mubr.bf16.mxu0 0
  %131 = vmatmul.mubr.bf16.gmra.mrb[0].mxu0 %v86
  %v132 = vpop.f32.mrb[0].mxu0
  %v133 = vadd.f32 %v34, %v132
  %v134 = vpop.f32.mrb[0].mxu0
  %v135 = vadd.f32 %v38, %v134
  %v136 = vpop.f32.mrb[0].mxu0
  %v137 = vadd.f32 %v34, %v136
  %v138 = vpop.f32.mrb[0].mxu0
  %v139 = vadd.f32 %v38, %v138
  %140 = vdwg.mxu0
  %141 = vst [vmem:[%s3] sm:$0xff] %v123
  %142 = vst [vmem:[%s3 + $0x8] sm:$0xff] %v125
  %143 = vst [vmem:[%s3 + $0x10] sm:$0xff] %v127
  %144 = vst [vmem:[%s3 + $0x18] sm:$0xff] %v129
  %145 = vst [vmem:[%s3 + $0x20] sm:$0xff] %v133
  %146 = vst [vmem:[%s3 + $0x28] sm:$0xff] %v135
  %147 = vst [vmem:[%s3 + $0x30] sm:$0xff] %v137
  %148 = vst [vmem:[%s3 + $0x38] sm:$0xff] %v139
  // Predicated region
  $region14: #{_lambda_.7} parent=0 // pred_check
    _
  $region15: #{_lambda_.7} parent=0 // pred_check_branch
    %150 = sbr.rel (0) target = $region17
  $region16: #{_lambda_.7} parent=0 // pred_region
    _
  $region17: #{_lambda_.7} parent=0 // pred_fallthru
    _
  // Predicated region
  $region18: #{_lambda_.7} parent=0 // pred_check
    _
  $region19: #{_lambda_.7} parent=0 // pred_check_branch
    %152 = sbr.rel (0) target = $region21
  $region20: #{_lambda_.7} parent=0 // pred_region
    _
  $region21: #{_lambda_.7} parent=0 // pred_fallthru
    _

// kernel: _lambda_.5
$region0: #{_lambda_.5}
  #allocation0 [shape = 'u32[]', space=smem, size = 0x4, offset = 0x4, fixed_abs, tag = 'smem constant byte address 0x4 - core index']
  #allocation1 [shape = 'u32[144,128]{1,0:T(1,128)}', space=vmem, size = 0x12000, scoped, tag = 'internal scratch']
  %s0 = inlined_call_operand.vmem [shape: f32[32,16], index: 0, kind: input, shape index: {}]
  %s1 = inlined_call_operand.vmem [shape: bf16[16,256], index: 1, kind: input, shape index: {}]
  %s2 = inlined_call_operand.vmem [shape: f32[1,256], index: 2, kind: input, shape index: {}]
  %s3 = inlined_call_operand.vmem [shape: f32[32,256], index: 3, kind: output, shape index: {}]
  %s4 = sld [smem:[#allocation0]]
  $region22: #{_lambda_.5} parent=0
    _
  %s6 = ssub.s32 1, %s4
  %s7 = scalar_select 0, %s6, %s4
  // Predicated region
  $region2: #{_lambda_.5} parent=0 // pred_check
    _
  $region3: #{_lambda_.5} parent=0 // pred_check_branch
    %9 = sbr.rel (0) target = $region5
  $region4: #{_lambda_.5} parent=0 // pred_region
    _
  $region5: #{_lambda_.5} parent=0 // pred_fallthru
    _
  // Predicated region
  $region6: #{_lambda_.5} parent=0 // pred_check
    _
  $region7: #{_lambda_.5} parent=0 // pred_check_branch
    %11 = sbr.rel (0) target = $region9
  $region8: #{_lambda_.5} parent=0 // pred_region
    _
  $region9: #{_lambda_.5} parent=0 // pred_fallthru
    _
  // Predicated region
  $region10: #{_lambda_.5} parent=0 // pred_check
    _
  $region11: #{_lambda_.5} parent=0 // pred_check_branch
    %13 = sbr.rel (0) target = $region13
  $region12: #{_lambda_.5} parent=0 // pred_region
    _
  $region13: #{_lambda_.5} parent=0 // pred_fallthru
    _
  %v15 = vld [vmem:[%s0] sm:$0xff]
  %v16 = vld [vmem:[%s0 + $0x8] sm:$0xff]
  %v17 = vld [vmem:[%s0 + $0x10] sm:$0xff]
  %v18 = vld [vmem:[%s0 + $0x18] sm:$0xff]
  %v19 = vpack.c.bf16 %v16, %v15
  %v20 = vpack.c.bf16 %v18, %v17
  %v21 = vld [vmem:[%s1] sm:$0xff]
  %v22 = vld [vmem:[%s1 + $0x8] sm:$0xff]
  %v23 = vld [vmem:[%s2] sm:$0x3]
  %v25 = vlaneseq
  %v26 = vshrl.u32 %v25, 7
  %v27 = vsub.s32 0, %v26
  %v28 = vrot.slane %v23, %v27
  %v29 = vlaneseq
  %v30 = vshrl.u32 %v29, 7
  %v31 = vsub.s32 1, %v30
  %v32 = vrot.slane %v23, %v31
  %v37 = vunpack.c.l.b16 %v21
  %v38 = vunpack.c.h.b16 %v21
  %v39 = vunpack.c.l.b16 %v22
  %v40 = vunpack.c.h.b16 %v22
  %v41 = vpack.c.b16 %v39, %v37
  %v42 = vpack.c.b16 %v40, %v38
  %vm45 = vcmask 130048
  %v47 = vsel %vm45, %v19, 0
  %v50 = vsel %vm45, %v20, 0
  %52 = vmatprep.subr.bf16.mxu0 %v42
  %53 = vmatpush1.bf16.msra.mxu0 %v41
  %54 = vmatprep.subr.bf16.mxu0 0
  %55 = vmatpush1.bf16.msra.mxu0 0
  %56 = vmatprep.subr.bf16.mxu0 0
  %57 = vmatpush1.bf16.msra.mxu0 0
  %58 = vmatprep.subr.bf16.mxu0 0
  %59 = vmatpush1.bf16.msra.mxu0 0
  %60 = vmatprep.subr.bf16.mxu0 0
  %61 = vmatpush1.bf16.msra.mxu0 0
  %62 = vmatprep.subr.bf16.mxu0 0
  %63 = vmatpush1.bf16.msra.mxu0 0
  %64 = vmatprep.subr.bf16.mxu0 0
  %65 = vmatpush1.bf16.msra.mxu0 0
  %66 = vmatprep.subr.bf16.mxu0 0
  %67 = vmatpush1.bf16.msra.mxu0 0
  %68 = vmatprep.subr.bf16.mxu0 0
  %69 = vmatpush1.bf16.msra.mxu0 0
  %70 = vmatprep.subr.bf16.mxu0 0
  %71 = vmatpush1.bf16.msra.mxu0 0
  %72 = vmatprep.subr.bf16.mxu0 0
  %73 = vmatpush1.bf16.msra.mxu0 0
  %74 = vmatprep.subr.bf16.mxu0 0
  %75 = vmatpush1.bf16.msra.mxu0 0
  %76 = vmatprep.subr.bf16.mxu0 0
  %77 = vmatpush1.bf16.msra.mxu0 0
  %78 = vmatprep.subr.bf16.mxu0 0
  %79 = vmatpush1.bf16.msra.mxu0 0
  %80 = vmatprep.subr.bf16.mxu0 0
  %81 = vmatpush1.bf16.msra.mxu0 0
  %82 = vmatprep.subr.bf16.mxu0 0
  %83 = vmatpush1.bf16.msra.mxu0 0
  %84 = vmatprep.mubr.bf16.mxu0 0
  %85 = vmatmul.mubr.bf16.gmra.mrb[0].mxu0 %v47
  %v86 = vpop.f32.mrb[0].mxu0
  %v87 = vadd.f32 %v28, %v86
  %v88 = vpop.f32.mrb[0].mxu0
  %v89 = vadd.f32 %v32, %v88
  %v90 = vpop.f32.mrb[0].mxu0
  %v91 = vadd.f32 %v28, %v90
  %v92 = vpop.f32.mrb[0].mxu0
  %v93 = vadd.f32 %v32, %v92
  %94 = vmatprep.mubr.bf16.mxu0 0
  %95 = vmatmul.mubr.bf16.gmra.mrb[0].mxu0 %v50
  %v96 = vpop.f32.mrb[0].mxu0
  %v97 = vadd.f32 %v28, %v96
  %v98 = vpop.f32.mrb[0].mxu0
  %v99 = vadd.f32 %v32, %v98
  %v100 = vpop.f32.mrb[0].mxu0
  %v101 = vadd.f32 %v28, %v100
  %v102 = vpop.f32.mrb[0].mxu0
  %v103 = vadd.f32 %v32, %v102
  %104 = vdwg.mxu0
  %105 = vst [vmem:[%s3] sm:$0xff] %v87
  %106 = vst [vmem:[%s3 + $0x8] sm:$0xff] %v89
  %107 = vst [vmem:[%s3 + $0x10] sm:$0xff] %v91
  %108 = vst [vmem:[%s3 + $0x18] sm:$0xff] %v93
  %109 = vst [vmem:[%s3 + $0x20] sm:$0xff] %v97
  %110 = vst [vmem:[%s3 + $0x28] sm:$0xff] %v99
  %111 = vst [vmem:[%s3 + $0x30] sm:$0xff] %v101
  %112 = vst [vmem:[%s3 + $0x38] sm:$0xff] %v103
  // Predicated region
  $region14: #{_lambda_.5} parent=0 // pred_check
    _
  $region15: #{_lambda_.5} parent=0 // pred_check_branch
    %114 = sbr.rel (0) target = $region17
  $region16: #{_lambda_.5} parent=0 // pred_region
    _
  $region17: #{_lambda_.5} parent=0 // pred_fallthru
    _
  // Predicated region
  $region18: #{_lambda_.5} parent=0 // pred_check
    _
  $region19: #{_lambda_.5} parent=0 // pred_check_branch
    %116 = sbr.rel (0) target = $region21
  $region20: #{_lambda_.5} parent=0 // pred_region
    _
  $region21: #{_lambda_.5} parent=0 // pred_fallthru
    _

// kernel: _lambda_.9
$region0: #{_lambda_.9}
  #allocation0 [shape = 'u32[]', space=smem, size = 0x4, offset = 0x4, fixed_abs, tag = 'smem constant byte address 0x4 - core index']
  #allocation1 [shape = 'u32[144,128]{1,0:T(1,128)}', space=vmem, size = 0x12000, scoped, tag = 'internal scratch']
  %s0 = inlined_call_operand.vmem [shape: f32[32,64], index: 0, kind: input, shape index: {}]
  %s1 = inlined_call_operand.vmem [shape: bf16[64,16], index: 1, kind: input, shape index: {}]
  %s2 = inlined_call_operand.vmem [shape: f32[1,16], index: 2, kind: input, shape index: {}]
  %s3 = inlined_call_operand.hbm [shape: f32[32,16], index: 3, kind: output, shape index: {}]
  %s4 = sld [smem:[#allocation0]]
  $region22: #{_lambda_.9} parent=0
    _
  %s6 = ssub.s32 1, %s4
  %s7 = scalar_select 0, %s6, %s4
  $region1: #{_lambda_.9} parent=0
    #allocation2 [shape = 'u8[16384]{0}', space=vmem, size = 0x4000, scoped, tag = 'output window, operand 0, single buffered']
    #allocation3 [shape = 's32[1]{0}', space=sflag, size = 0x4, scoped, tag = 'scoped memory for _lambda_.9']
    %8 = vsyncpa [#allocation3], 0
    // Predicated region
    $region2: #{_lambda_.9} parent=1 // pred_check
      _
    $region3: #{_lambda_.9} parent=1 // pred_check_branch
      %10 = sbr.rel (0) target = $region5
    $region4: #{_lambda_.9} parent=1 // pred_region
      _
    $region5: #{_lambda_.9} parent=1 // pred_fallthru
      _
    // Predicated region
    $region6: #{_lambda_.9} parent=1 // pred_check
      _
    $region7: #{_lambda_.9} parent=1 // pred_check_branch
      %12 = sbr.rel (0) target = $region9
    $region8: #{_lambda_.9} parent=1 // pred_region
      _
    $region9: #{_lambda_.9} parent=1 // pred_fallthru
      _
    // Predicated region
    $region10: #{_lambda_.9} parent=1 // pred_check
      _
    $region11: #{_lambda_.9} parent=1 // pred_check_branch
      %14 = sbr.rel (0) target = $region13
    $region12: #{_lambda_.9} parent=1 // pred_region
      _
    $region13: #{_lambda_.9} parent=1 // pred_fallthru
      _
    %v16 = vld [vmem:[%s0] sm:$0xff]
    %v17 = vld [vmem:[%s0 + $0x8] sm:$0xff]
    %v18 = vld [vmem:[%s0 + $0x10] sm:$0xff]
    %v19 = vld [vmem:[%s0 + $0x18] sm:$0xff]
    %v20 = vpack.c.bf16 %v17, %v16
    %v21 = vpack.c.bf16 %v19, %v18
    %v22 = vld [vmem:[%s1] sm:$0xf]
    %v23 = vld [vmem:[%s1 + $0x4] sm:$0xf]
    %v24 = vld [vmem:[%s1 + $0x8] sm:$0xf]
    %v25 = vld [vmem:[%s1 + $0xc] sm:$0xf]
    %v26 = vld [vmem:[%s1 + $0x10] sm:$0xf]
    %v27 = vld [vmem:[%s1 + $0x14] sm:$0xf]
    %v28 = vld [vmem:[%s1 + $0x18] sm:$0xf]
    %v29 = vld [vmem:[%s1 + $0x1c] sm:$0xf]
    %v30 = vld [vmem:[%s2] sm:$0x1]
    %v32 = vlaneseq
    %v33 = vshrl.u32 %v32, 7
    %v34 = vsub.s32 0, %v33
    %v35 = vrot.slane %v30, %v34
    %v45 = vunpack.c.l.b16 %v22
    %v46 = vunpack.c.l.b16 %v23
    %v47 = vunpack.c.l.b16 %v24
    %v48 = vunpack.c.l.b16 %v25
    %v49 = vunpack.c.l.b16 %v26
    %v50 = vunpack.c.l.b16 %v27
    %v51 = vunpack.c.l.b16 %v28
    %v52 = vunpack.c.l.b16 %v29
    %v53 = vpack.c.b16 %v46, %v45
    %v54 = vpack.c.b16 %v48, %v47
    %v55 = vpack.c.b16 %v50, %v49
    %v56 = vpack.c.b16 %v52, %v51
    %vm61 = vcmask 523264
    %v63 = vsel %vm61, %v20, 0
    %v66 = vsel %vm61, %v21, 0
    %68 = vmatprep.subr.bf16.mxu0 0
    %69 = vmatpush1.bf16.msra.mxu0 %v53
    %70 = vmatprep.subr.bf16.mxu0 0
    %71 = vmatpush1.bf16.msra.mxu0 %v54
    %72 = vmatprep.subr.bf16.mxu0 0
    %73 = vmatpush1.bf16.msra.mxu0 %v55
    %74 = vmatprep.subr.bf16.mxu0 0
    %75 = vmatpush1.bf16.msra.mxu0 %v56
    %76 = vmatprep.subr.bf16.mxu0 0
    %77 = vmatpush1.bf16.msra.mxu0 0
    %78 = vmatprep.subr.bf16.mxu0 0
    %79 = vmatpush1.bf16.msra.mxu0 0
    %80 = vmatprep.subr.bf16.mxu0 0
    %81 = vmatpush1.bf16.msra.mxu0 0
    %82 = vmatprep.subr.bf16.mxu0 0
    %83 = vmatpush1.bf16.msra.mxu0 0
    %84 = vmatprep.subr.bf16.mxu0 0
    %85 = vmatpush1.bf16.msra.mxu0 0
    %86 = vmatprep.subr.bf16.mxu0 0
    %87 = vmatpush1.bf16.msra.mxu0 0
    %88 = vmatprep.subr.bf16.mxu0 0
    %89 = vmatpush1.bf16.msra.mxu0 0
    %90 = vmatprep.subr.bf16.mxu0 0
    %91 = vmatpush1.bf16.msra.mxu0 0
    %92 = vmatprep.subr.bf16.mxu0 0
    %93 = vmatpush1.bf16.msra.mxu0 0
    %94 = vmatprep.subr.bf16.mxu0 0
    %95 = vmatpush1.bf16.msra.mxu0 0
    %96 = vmatprep.subr.bf16.mxu0 0
    %97 = vmatpush1.bf16.msra.mxu0 0
    %98 = vmatprep.subr.bf16.mxu0 0
    %99 = vmatpush1.bf16.msra.mxu0 0
    %100 = vmatprep.mubr.bf16.mxu0 0
    %101 = vmatmul.mubr.bf16.gmra.mrb[0].mxu0 %v63
    %v102 = vpop.f32.mrb[0].mxu0
    %v103 = vadd.f32 %v35, %v102
    %v104 = vpop.f32.mrb[0].mxu0
    %v105 = vpop.f32.mrb[0].mxu0
    %v106 = vadd.f32 %v35, %v105
    %v107 = vpop.f32.mrb[0].mxu0
    %108 = vmatprep.mubr.bf16.mxu0 0
    %109 = vmatmul.mubr.bf16.gmra.mrb[0].mxu0 %v66
    %v110 = vpop.f32.mrb[0].mxu0
    %v111 = vadd.f32 %v35, %v110
    %v112 = vpop.f32.mrb[0].mxu0
    %v113 = vpop.f32.mrb[0].mxu0
    %v114 = vadd.f32 %v35, %v113
    %v115 = vpop.f32.mrb[0].mxu0
    %116 = vdwg.mxu0
    %vm117 = vcmask 130048
    %118 = vst.msk [vmem:[#allocation2] sm:$0xff] %vm117, %v103
    %119 = vst.msk [vmem:[#allocation2 + $0x8] sm:$0xff] %vm117, %v106
    %120 = vst.msk [vmem:[#allocation2 + $0x10] sm:$0xff] %vm117, %v111
    %121 = vst.msk [vmem:[#allocation2 + $0x18] sm:$0xff] %vm117, %v114
    // Predicated region
    $region14: #{_lambda_.9} parent=1 // pred_check
      _
    $region15: #{_lambda_.9} parent=1 // pred_check_branch
      %123 = sbr.rel (0) target = $region17
    $region16: #{_lambda_.9} parent=1 // pred_region
      %s125 = ssub.s32 512, 512
      %126 = vsyncadd [#allocation3], %s125
      %s127 = sshll.u32 [#allocation2], 4
      %s128 = int_to_ptr.vmem [resolvable:$true] %s127
      %133 = dma.vmem_to_hbm [thread:$0]  %s128, 512, %s3, [#allocation3], 128, 128, 8
    $region17: #{_lambda_.9} parent=1 // pred_fallthru
      _
    // Predicated region
    $region18: #{_lambda_.9} parent=1 // pred_check
      _
    $region19: #{_lambda_.9} parent=1 // pred_check_branch
      %135 = sbr.rel (0) target = $region21
    $region20: #{_lambda_.9} parent=1 // pred_region
      %136 = dma.done [#allocation3], 512
    $region21: #{_lambda_.9} parent=1 // pred_fallthru
      _
    %137 = vsyncpa [#allocation3], 1

// kernel: _lambda_.6
$region0: #{_lambda_.6}
  #allocation0 [shape = 'u32[]', space=smem, size = 0x4, offset = 0x4, fixed_abs, tag = 'smem constant byte address 0x4 - core index']
  #allocation1 [shape = 'u32[144,128]{1,0:T(1,128)}', space=vmem, size = 0x12000, scoped, tag = 'internal scratch']
  #allocation2 [shape = 'f32[8,4,32]{2,1,0:T(4,128)}', space=vmem, size = 0x4000, scoped, tag = 'scratch operand']
  #allocation3 [shape = 'f32[8,4,32]{2,1,0:T(4,128)}', space=vmem, size = 0x4000, scoped, tag = 'scratch operand']
  #allocation4 [shape = 'f32[4,32]{1,0:T(4,128)}', space=vmem, size = 0x800, scoped, tag = 'scratch operand']
  #allocation5 [shape = 'f32[4,32]{1,0:T(4,128)}', space=vmem, size = 0x800, scoped, tag = 'scratch operand']
  #allocation6 [shape = 'f32[4,32]{1,0:T(4,128)}', space=vmem, size = 0x800, scoped, tag = 'scratch operand']
  #allocation7 [shape = 'f32[4,32]{1,0:T(4,128)}', space=vmem, size = 0x800, scoped, tag = 'scratch operand']
  %s0 = inlined_call_operand.vmem [shape: f32[8,4,256], index: 0, kind: input, shape index: {}]
  %s1 = inlined_call_operand.vmem [shape: s32[4,1], index: 1, kind: input, shape index: {}]
  %s2 = inlined_call_operand.vmem [shape: bf16[32,128], index: 2, kind: input, shape index: {}]
  %s3 = inlined_call_operand.vmem [shape: bf16[32,128], index: 3, kind: input, shape index: {}]
  %s4 = inlined_call_operand.vmem [shape: f32[8,4,64], index: 4, kind: output, shape index: {}]
  %s5 = sld [smem:[#allocation0]]
  $region26: #{_lambda_.6} parent=0
    _
  %s7 = ssub.s32 1, %s5
  %s8 = scalar_select 0, %s7, %s5
  // Predicated region
  $region2: #{_lambda_.6} parent=0 // pred_check
    _
  $region3: #{_lambda_.6} parent=0 // pred_check_branch
    %10 = sbr.rel (0) target = $region5
  $region4: #{_lambda_.6} parent=0 // pred_region
    _
  $region5: #{_lambda_.6} parent=0 // pred_fallthru
    _
  // Predicated region
  $region6: #{_lambda_.6} parent=0 // pred_check
    _
  $region7: #{_lambda_.6} parent=0 // pred_check_branch
    %12 = sbr.rel (0) target = $region9
  $region8: #{_lambda_.6} parent=0 // pred_region
    _
  $region9: #{_lambda_.6} parent=0 // pred_fallthru
    _
  // Predicated region
  $region10: #{_lambda_.6} parent=0 // pred_check
    _
  $region11: #{_lambda_.6} parent=0 // pred_check_branch
    %14 = sbr.rel (0) target = $region13
  $region12: #{_lambda_.6} parent=0 // pred_region
    _
  $region13: #{_lambda_.6} parent=0 // pred_fallthru
    _
  // Predicated region
  $region14: #{_lambda_.6} parent=0 // pred_check
    _
  $region15: #{_lambda_.6} parent=0 // pred_check_branch
    %16 = sbr.rel (0) target = $region17
  $region16: #{_lambda_.6} parent=0 // pred_region
    _
  $region17: #{_lambda_.6} parent=0 // pred_fallthru
    _
  %v18 = vld [vmem:[%s1] sm:$0xf]
  %vm19 = vcmask 257024
  %20 = vst.msk [vmem:[#allocation4] sm:$0xf] %vm19, 0.0
  %21 = vst.msk [vmem:[#allocation5] sm:$0xf] %vm19, 0.0
  %22 = vst.msk [vmem:[#allocation6] sm:$0xf] %vm19, 0.0
  %23 = vst.msk [vmem:[#allocation7] sm:$0xf] %vm19, 0.0
  %vm24 = vcmp.gt.s32.totalorder %v18, 0
  %vm25 = vcmp.gt.s32.totalorder %v18, 7
  %v26 = vsel %vm24, 1, 0
  %v27 = vcvt.s32.f32 %v26
  %v28 = vsel %vm25, 1, 0
  %v29 = vcvt.s32.f32 %v28
  %v30 = vld [vmem:[%s0] sm:$0xf]
  %v31 = vld [vmem:[#allocation4] sm:$0xf]
  %v32 = vpack.c.bf16 %v31, %v31
  %v33 = vld [vmem:[%s2] sm:$0xf]
  %v34 = vld [vmem:[%s2 + $0x4] sm:$0xf]
  %v35 = vld [vmem:[%s2 + $0x8] sm:$0xf]
  %v36 = vld [vmem:[%s2 + $0xc] sm:$0xf]
  %v41 = vunpack.c.l.b16 %v33
  %v42 = vunpack.c.l.b16 %v34
  %v43 = vunpack.c.l.b16 %v35
  %v44 = vunpack.c.l.b16 %v36
  %v45 = vpack.c.b16 %v42, %v41
  %v46 = vpack.c.b16 %v44, %v43
  %vm49 = vcmask 261120
  %v51 = vsel %vm49, %v32, 0
  %53 = vmatprep.subr.bf16.mxu0 0
  %54 = vmatpush1.bf16.msra.mxu0 %v45
  %55 = vmatprep.subr.bf16.mxu0 0
  %56 = vmatpush1.bf16.msra.mxu0 %v46
  %57 = vmatprep.subr.bf16.mxu0 0
  %58 = vmatpush1.bf16.msra.mxu0 0
  %59 = vmatprep.subr.bf16.mxu0 0
  %60 = vmatpush1.bf16.msra.mxu0 0
  %61 = vmatprep.subr.bf16.mxu0 0
  %62 = vmatpush1.bf16.msra.mxu0 0
  %63 = vmatprep.subr.bf16.mxu0 0
  %64 = vmatpush1.bf16.msra.mxu0 0
  %65 = vmatprep.subr.bf16.mxu0 0
  %66 = vmatpush1.bf16.msra.mxu0 0
  %67 = vmatprep.subr.bf16.mxu0 0
  %68 = vmatpush1.bf16.msra.mxu0 0
  %69 = vmatprep.subr.bf16.mxu0 0
  %70 = vmatpush1.bf16.msra.mxu0 0
  %71 = vmatprep.subr.bf16.mxu0 0
  %72 = vmatpush1.bf16.msra.mxu0 0
  %73 = vmatprep.subr.bf16.mxu0 0
  %74 = vmatpush1.bf16.msra.mxu0 0
  %75 = vmatprep.subr.bf16.mxu0 0
  %76 = vmatpush1.bf16.msra.mxu0 0
  %77 = vmatprep.subr.bf16.mxu0 0
  %78 = vmatpush1.bf16.msra.mxu0 0
  %79 = vmatprep.subr.bf16.mxu0 0
  %80 = vmatpush1.bf16.msra.mxu0 0
  %81 = vmatprep.subr.bf16.mxu0 0
  %82 = vmatpush1.bf16.msra.mxu0 0
  %83 = vmatprep.subr.bf16.mxu0 0
  %84 = vmatpush1.bf16.msra.mxu0 0
  %85 = vmatprep.mubr.bf16.mxu0 0
  %86 = vmatmul.mubr.bf16.gmra.mrb[0].mxu0 %v51
  %v87 = vpop.f32.mrb[0].mxu0
  %v88 = vadd.f32 0.0, %v87
  %v89 = vpop.f32.mrb[0].mxu0
  %v90 = vpop.f32.mrb[0].mxu0
  %v91 = vpop.f32.mrb[0].mxu0
  %92 = vdwg.mxu0
  %v93 = vadd.f32 %v30, %v88
  %s94 = scalar_lea.vmem %s0, 56
  %v95 = vld [vmem:[%s94 + $0x4] sm:$0xf]
  %v96 = vld [vmem:[#allocation6] sm:$0xf]
  %v97 = vpack.c.bf16 %v96, %v96
  %v98 = vld [vmem:[%s3] sm:$0xf]
  %v99 = vld [vmem:[%s3 + $0x4] sm:$0xf]
  %v100 = vld [vmem:[%s3 + $0x8] sm:$0xf]
  %v101 = vld [vmem:[%s3 + $0xc] sm:$0xf]
  %v106 = vunpack.c.l.b16 %v98
  %v107 = vunpack.c.l.b16 %v99
  %v108 = vunpack.c.l.b16 %v100
  %v109 = vunpack.c.l.b16 %v101
  %v110 = vpack.c.b16 %v107, %v106
  %v111 = vpack.c.b16 %v109, %v108
  %v115 = vsel %vm49, %v97, 0
  %117 = vmatprep.subr.bf16.mxu0 0
  %118 = vmatpush1.bf16.msra.mxu0 %v110
  %119 = vmatprep.subr.bf16.mxu0 0
  %120 = vmatpush1.bf16.msra.mxu0 %v111
  %121 = vmatprep.subr.bf16.mxu0 0
  %122 = vmatpush1.bf16.msra.mxu0 0
  %123 = vmatprep.subr.bf16.mxu0 0
  %124 = vmatpush1.bf16.msra.mxu0 0
  %125 = vmatprep.subr.bf16.mxu0 0
  %126 = vmatpush1.bf16.msra.mxu0 0
  %127 = vmatprep.subr.bf16.mxu0 0
  %128 = vmatpush1.bf16.msra.mxu0 0
  %129 = vmatprep.subr.bf16.mxu0 0
  %130 = vmatpush1.bf16.msra.mxu0 0
  %131 = vmatprep.subr.bf16.mxu0 0
  %132 = vmatpush1.bf16.msra.mxu0 0
  %133 = vmatprep.subr.bf16.mxu0 0
  %134 = vmatpush1.bf16.msra.mxu0 0
  %135 = vmatprep.subr.bf16.mxu0 0
  %136 = vmatpush1.bf16.msra.mxu0 0
  %137 = vmatprep.subr.bf16.mxu0 0
  %138 = vmatpush1.bf16.msra.mxu0 0
  %139 = vmatprep.subr.bf16.mxu0 0
  %140 = vmatpush1.bf16.msra.mxu0 0
  %141 = vmatprep.subr.bf16.mxu0 0
  %142 = vmatpush1.bf16.msra.mxu0 0
  %143 = vmatprep.subr.bf16.mxu0 0
  %144 = vmatpush1.bf16.msra.mxu0 0
  %145 = vmatprep.subr.bf16.mxu0 0
  %146 = vmatpush1.bf16.msra.mxu0 0
  %147 = vmatprep.subr.bf16.mxu0 0
  %148 = vmatpush1.bf16.msra.mxu0 0
  %149 = vmatprep.mubr.bf16.mxu0 0
  %150 = vmatmul.mubr.bf16.gmra.mrb[0].mxu0 %v115
  %v151 = vpop.f32.mrb[0].mxu0
  %v152 = vadd.f32 0.0, %v151
  %v153 = vpop.f32.mrb[0].mxu0
  %v154 = vpop.f32.mrb[0].mxu0
  %v155 = vpop.f32.mrb[0].mxu0
  %156 = vdwg.mxu0
  %v157 = vadd.f32 %v95, %v152
  %v158 = vld [vmem:[#allocation5] sm:$0xf]
  %v159 = vxor.u32 %v93, 2147483648
  %v160 = vmul.f32 %v159, 1.442695
  %v161 = vpow.pop %v160
  %v162 = vadd.f32 %v161, 1.0
  %v163 = vrcp.pop %v162
  %v164 = vmul.f32 1.0, %v163
  %v165 = vtanh.pop %v93
  %167 = vrot.lane.b32.xlu0 %v158, 32
  %v168 = vpop.permute.xlu0 %167
  %v170 = vmul.f32 %v164, %v168
  %172 = vrot.lane.b32.xlu0 %v165, 64
  %v173 = vpop.permute.xlu0 %172
  %v175 = vmul.f32 %v164, %v173
  %177 = vrot.lane.b32.xlu0 %v175, 32
  %v178 = vpop.permute.xlu0 %177
  %v180 = vadd.f32 %v170, %v178
  %v181 = vtanh.pop %v180
  %183 = vrot.lane.b32.xlu0 %v181, 64
  %v184 = vpop.permute.xlu0 %183
  %v186 = vmul.f32 %v164, %v184
  %v187 = vld [vmem:[#allocation7] sm:$0xf]
  %v188 = vxor.u32 %v157, 2147483648
  %v189 = vmul.f32 %v188, 1.442695
  %v190 = vpow.pop %v189
  %v191 = vadd.f32 %v190, 1.0
  %v192 = vrcp.pop %v191
  %v193 = vmul.f32 1.0, %v192
  %v194 = vtanh.pop %v157
  %196 = vrot.lane.b32.xlu0 %v187, 32
  %v197 = vpop.permute.xlu0 %196
  %v199 = vmul.f32 %v193, %v197
  %201 = vrot.lane.b32.xlu0 %v194, 64
  %v202 = vpop.permute.xlu0 %201
  %v204 = vmul.f32 %v193, %v202
  %206 = vrot.lane.b32.xlu0 %v204, 32
  %v207 = vpop.permute.xlu0 %206
  %v209 = vadd.f32 %v199, %v207
  %v210 = vtanh.pop %v209
  %212 = vrot.lane.b32.xlu0 %v210, 64
  %v213 = vpop.permute.xlu0 %212
  %v215 = vmul.f32 %v193, %v213
  %216 = vset.pattern.permute.xlu0 0
  %217 = vperm.xlu0 %216, %v26
  %v218 = vpop.permute.xlu0 %217
  %vm219 = vcmp.eq.s32.totalorder %v218, 1
  %221 = vrot.lane.b32.xlu0 %v186, 32
  %v222 = vpop.permute.xlu0 %221
  %v224 = vsel %vm219, %v222, %v31
  %225 = vst.msk [vmem:[#allocation4] sm:$0xf] %vm19, %v224
  %v226 = vld [vmem:[#allocation5] sm:$0xf]
  %228 = vrot.lane.b32.xlu0 %v180, 96
  %v229 = vpop.permute.xlu0 %228
  %v231 = vsel %vm219, %v229, %v226
  %232 = vst.msk [vmem:[#allocation5] sm:$0xf] %vm19, %v231
  %v233 = vld [vmem:[#allocation6] sm:$0xf]
  %234 = vset.pattern.permute.xlu0 0
  %235 = vperm.xlu0 %234, %v28
  %v236 = vpop.permute.xlu0 %235
  %vm237 = vcmp.eq.s32.totalorder %v236, 1
  %239 = vrot.lane.b32.xlu0 %v215, 32
  %v240 = vpop.permute.xlu0 %239
  %v242 = vsel %vm237, %v240, %v233
  %243 = vst.msk [vmem:[#allocation6] sm:$0xf] %vm19, %v242
  %v244 = vld [vmem:[#allocation7] sm:$0xf]
  %246 = vrot.lane.b32.xlu0 %v209, 96
  %v247 = vpop.permute.xlu0 %246
  %v249 = vsel %vm237, %v247, %v244
  %250 = vst.msk [vmem:[#allocation7] sm:$0xf] %vm19, %v249
  %252 = vset.pattern.permute.xlu0 0
  %253 = vperm.xlu0 %252, %v27
  %v254 = vpop.permute.xlu0 %253
  %v256 = vmul.f32 %v186, %v254
  %258 = vrot.lane.b32.xlu0 %v256, 32
  %v259 = vpop.permute.xlu0 %258
  %261 = vst.msk [vmem:[#allocation2] sm:$0xf] %vm19, %v259
  %263 = vset.pattern.permute.xlu0 0
  %264 = vperm.xlu0 %263, %v29
  %v265 = vpop.permute.xlu0 %264
  %v267 = vmul.f32 %v215, %v265
  %269 = vrot.lane.b32.xlu0 %v267, 32
  %v270 = vpop.permute.xlu0 %269
  %s272 = scalar_lea.vmem [#allocation3], 28
  %273 = vst.msk [vmem:[%s272] sm:$0xf] %vm19, %v270
  %vm274 = vcmp.gt.s32.totalorder %v18, 1
  %vm275 = vcmp.gt.s32.totalorder %v18, 6
  %v276 = vsel %vm274, 1, 0
  %v277 = vcvt.s32.f32 %v276
  %v278 = vsel %vm275, 1, 0
  %v279 = vcvt.s32.f32 %v278
  %s280 = scalar_lea.vmem %s0, 8
  %v281 = vld [vmem:[%s280] sm:$0xf]
  %v282 = vld [vmem:[#allocation4] sm:$0xf]
  %v283 = vpack.c.bf16 %v282, %v282
  %v284 = vld [vmem:[%s2] sm:$0xf]
  %v285 = vld [vmem:[%s2 + $0x4] sm:$0xf]
  %v286 = vld [vmem:[%s2 + $0x8] sm:$0xf]
  %v287 = vld [vmem:[%s2 + $0xc] sm:$0xf]
  %v292 = vunpack.c.l.b16 %v284
  %v293 = vunpack.c.l.b16 %v285
  %v294 = vunpack.c.l.b16 %v286
  %v295 = vunpack.c.l.b16 %v287
  %v296 = vpack.c.b16 %v293, %v292
  %v297 = vpack.c.b16 %v295, %v294
  %v301 = vsel %vm49, %v283, 0
  %303 = vmatprep.subr.bf16.mxu0 0
  %304 = vmatpush1.bf16.msra.mxu0 %v296
  %305 = vmatprep.subr.bf16.mxu0 0
  %306 = vmatpush1.bf16.msra.mxu0 %v297
  %307 = vmatprep.subr.bf16.mxu0 0
  %308 = vmatpush1.bf16.msra.mxu0 0
  %309 = vmatprep.subr.bf16.mxu0 0
  %310 = vmatpush1.bf16.msra.mxu0 0
  %311 = vmatprep.subr.bf16.mxu0 0
  %312 = vmatpush1.bf16.msra.mxu0 0
  %313 = vmatprep.subr.bf16.mxu0 0
  %314 = vmatpush1.bf16.msra.mxu0 0
  %315 = vmatprep.subr.bf16.mxu0 0
  %316 = vmatpush1.bf16.msra.mxu0 0
  %317 = vmatprep.subr.bf16.mxu0 0
  %318 = vmatpush1.bf16.msra.mxu0 0
  %319 = vmatprep.subr.bf16.mxu0 0
  %320 = vmatpush1.bf16.msra.mxu0 0
  %321 = vmatprep.subr.bf16.mxu0 0
  %322 = vmatpush1.bf16.msra.mxu0 0
  %323 = vmatprep.subr.bf16.mxu0 0
  %324 = vmatpush1.bf16.msra.mxu0 0
  %325 = vmatprep.subr.bf16.mxu0 0
  %326 = vmatpush1.bf16.msra.mxu0 0
  %327 = vmatprep.subr.bf16.mxu0 0
  %328 = vmatpush1.bf16.msra.mxu0 0
  %329 = vmatprep.subr.bf16.mxu0 0
  %330 = vmatpush1.bf16.msra.mxu0 0
  %331 = vmatprep.subr.bf16.mxu0 0
  %332 = vmatpush1.bf16.msra.mxu0 0
  %333 = vmatprep.subr.bf16.mxu0 0
  %334 = vmatpush1.bf16.msra.mxu0 0
  %335 = vmatprep.mubr.bf16.mxu0 0
  %336 = vmatmul.mubr.bf16.gmra.mrb[0].mxu0 %v301
  %v337 = vpop.f32.mrb[0].mxu0
  %v338 = vadd.f32 0.0, %v337
  %v339 = vpop.f32.mrb[0].mxu0
  %v340 = vpop.f32.mrb[0].mxu0
  %v341 = vpop.f32.mrb[0].mxu0
  %342 = vdwg.mxu0
  %v343 = vadd.f32 %v281, %v338
  %s344 = scalar_lea.vmem %s0, 48
  %v345 = vld [vmem:[%s344 + $0x4] sm:$0xf]
  %v346 = vld [vmem:[#allocation6] sm:$0xf]
  %v347 = vpack.c.bf16 %v346, %v346
  %v348 = vld [vmem:[%s3] sm:$0xf]
  %v349 = vld [vmem:[%s3 + $0x4] sm:$0xf]
  %v350 = vld [vmem:[%s3 + $0x8] sm:$0xf]
  %v351 = vld [vmem:[%s3 + $0xc] sm:$0xf]
  %v356 = vunpack.c.l.b16 %v348
  %v357 = vunpack.c.l.b16 %v349
  %v358 = vunpack.c.l.b16 %v350
  %v359 = vunpack.c.l.b16 %v351
  %v360 = vpack.c.b16 %v357, %v356
  %v361 = vpack.c.b16 %v359, %v358
  %v365 = vsel %vm49, %v347, 0
  %367 = vmatprep.subr.bf16.mxu0 0
  %368 = vmatpush1.bf16.msra.mxu0 %v360
  %369 = vmatprep.subr.bf16.mxu0 0
  %370 = vmatpush1.bf16.msra.mxu0 %v361
  %371 = vmatprep.subr.bf16.mxu0 0
  %372 = vmatpush1.bf16.msra.mxu0 0
  %373 = vmatprep.subr.bf16.mxu0 0
  %374 = vmatpush1.bf16.msra.mxu0 0
  %375 = vmatprep.subr.bf16.mxu0 0
  %376 = vmatpush1.bf16.msra.mxu0 0
  %377 = vmatprep.subr.bf16.mxu0 0
  %378 = vmatpush1.bf16.msra.mxu0 0
  %379 = vmatprep.subr.bf16.mxu0 0
  %380 = vmatpush1.bf16.msra.mxu0 0
  %381 = vmatprep.subr.bf16.mxu0 0
  %382 = vmatpush1.bf16.msra.mxu0 0
  %383 = vmatprep.subr.bf16.mxu0 0
  %384 = vmatpush1.bf16.msra.mxu0 0
  %385 = vmatprep.subr.bf16.mxu0 0
  %386 = vmatpush1.bf16.msra.mxu0 0
  %387 = vmatprep.subr.bf16.mxu0 0
  %388 = vmatpush1.bf16.msra.mxu0 0
  %389 = vmatprep.subr.bf16.mxu0 0
  %390 = vmatpush1.bf16.msra.mxu0 0
  %391 = vmatprep.subr.bf16.mxu0 0
  %392 = vmatpush1.bf16.msra.mxu0 0
  %393 = vmatprep.subr.bf16.mxu0 0
  %394 = vmatpush1.bf16.msra.mxu0 0
  %395 = vmatprep.subr.bf16.mxu0 0
  %396 = vmatpush1.bf16.msra.mxu0 0
  %397 = vmatprep.subr.bf16.mxu0 0
  %398 = vmatpush1.bf16.msra.mxu0 0
  %399 = vmatprep.mubr.bf16.mxu0 0
  %400 = vmatmul.mubr.bf16.gmra.mrb[0].mxu0 %v365
  %v401 = vpop.f32.mrb[0].mxu0
  %v402 = vadd.f32 0.0, %v401
  %v403 = vpop.f32.mrb[0].mxu0
  %v404 = vpop.f32.mrb[0].mxu0
  %v405 = vpop.f32.mrb[0].mxu0
  %406 = vdwg.mxu0
  %v407 = vadd.f32 %v345, %v402
  %v408 = vld [vmem:[#allocation5] sm:$0xf]
  %v409 = vxor.u32 %v343, 2147483648
  %v410 = vmul.f32 %v409, 1.442695
  %v411 = vpow.pop %v410
  %v412 = vadd.f32 %v411, 1.0
  %v413 = vrcp.pop %v412
  %v414 = vmul.f32 1.0, %v413
  %v415 = vtanh.pop %v343
  %417 = vrot.lane.b32.xlu0 %v408, 32
  %v418 = vpop.permute.xlu0 %417
  %v420 = vmul.f32 %v414, %v418
  %422 = vrot.lane.b32.xlu0 %v415, 64
  %v423 = vpop.permute.xlu0 %422
  %v425 = vmul.f32 %v414, %v423
  %427 = vrot.lane.b32.xlu0 %v425, 32
  %v428 = vpop.permute.xlu0 %427
  %v430 = vadd.f32 %v420, %v428
  %v431 = vtanh.pop %v430
  %433 = vrot.lane.b32.xlu0 %v431, 64
  %v434 = vpop.permute.xlu0 %433
  %v436 = vmul.f32 %v414, %v434
  %v437 = vld [vmem:[#allocation7] sm:$0xf]
  %v438 = vxor.u32 %v407, 2147483648
  %v439 = vmul.f32 %v438, 1.442695
  %v440 = vpow.pop %v439
  %v441 = vadd.f32 %v440, 1.0
  %v442 = vrcp.pop %v441
  %v443 = vmul.f32 1.0, %v442
  %v444 = vtanh.pop %v407
  %446 = vrot.lane.b32.xlu0 %v437, 32
  %v447 = vpop.permute.xlu0 %446
  %v449 = vmul.f32 %v443, %v447
  %451 = vrot.lane.b32.xlu0 %v444, 64
  %v452 = vpop.permute.xlu0 %451
  %v454 = vmul.f32 %v443, %v452
  %456 = vrot.lane.b32.xlu0 %v454, 32
  %v457 = vpop.permute.xlu0 %456
  %v459 = vadd.f32 %v449, %v457
  %v460 = vtanh.pop %v459
  %462 = vrot.lane.b32.xlu0 %v460, 64
  %v463 = vpop.permute.xlu0 %462
  %v465 = vmul.f32 %v443, %v463
  %466 = vset.pattern.permute.xlu0 0
  %467 = vperm.xlu0 %466, %v276
  %v468 = vpop.permute.xlu0 %467
  %vm469 = vcmp.eq.s32.totalorder %v468, 1
  %471 = vrot.lane.b32.xlu0 %v436, 32
  %v472 = vpop.permute.xlu0 %471
  %v474 = vsel %vm469, %v472, %v282
  %475 = vst.msk [vmem:[#allocation4] sm:$0xf] %vm19, %v474
  %v476 = vld [vmem:[#allocation5] sm:$0xf]
  %478 = vrot.lane.b32.xlu0 %v430, 96
  %v479 = vpop.permute.xlu0 %478
  %v481 = vsel %vm469, %v479, %v476
  %482 = vst.msk [vmem:[#allocation5] sm:$0xf] %vm19, %v481
  %v483 = vld [vmem:[#allocation6] sm:$0xf]
  %484 = vset.pattern.permute.xlu0 0
  %485 = vperm.xlu0 %484, %v278
  %v486 = vpop.permute.xlu0 %485
  %vm487 = vcmp.eq.s32.totalorder %v486, 1
  %489 = vrot.lane.b32.xlu0 %v465, 32
  %v490 = vpop.permute.xlu0 %489
  %v492 = vsel %vm487, %v490, %v483
  %493 = vst.msk [vmem:[#allocation6] sm:$0xf] %vm19, %v492
  %v494 = vld [vmem:[#allocation7] sm:$0xf]
  %496 = vrot.lane.b32.xlu0 %v459, 96
  %v497 = vpop.permute.xlu0 %496
  %v499 = vsel %vm487, %v497, %v494
  %500 = vst.msk [vmem:[#allocation7] sm:$0xf] %vm19, %v499
  %502 = vset.pattern.permute.xlu0 0
  %503 = vperm.xlu0 %502, %v277
  %v504 = vpop.permute.xlu0 %503
  %v506 = vmul.f32 %v436, %v504
  %508 = vrot.lane.b32.xlu0 %v506, 32
  %v509 = vpop.permute.xlu0 %508
  %s511 = scalar_lea.vmem [#allocation2], 4
  %512 = vst.msk [vmem:[%s511] sm:$0xf] %vm19, %v509
  %514 = vset.pattern.permute.xlu0 0
  %515 = vperm.xlu0 %514, %v279
  %v516 = vpop.permute.xlu0 %515
  %v518 = vmul.f32 %v465, %v516
  %520 = vrot.lane.b32.xlu0 %v518, 32
  %v521 = vpop.permute.xlu0 %520
  %s523 = scalar_lea.vmem [#allocation3], 24
  %524 = vst.msk [vmem:[%s523] sm:$0xf] %vm19, %v521
  %vm525 = vcmp.gt.s32.totalorder %v18, 2
  %vm526 = vcmp.gt.s32.totalorder %v18, 5
  %v527 = vsel %vm525, 1, 0
  %v528 = vcvt.s32.f32 %v527
  %v529 = vsel %vm526, 1, 0
  %v530 = vcvt.s32.f32 %v529
  %s531 = scalar_lea.vmem %s0, 16
  %v532 = vld [vmem:[%s531] sm:$0xf]
  %v533 = vld [vmem:[#allocation4] sm:$0xf]
  %v534 = vpack.c.bf16 %v533, %v533
  %v535 = vld [vmem:[%s2] sm:$0xf]
  %v536 = vld [vmem:[%s2 + $0x4] sm:$0xf]
  %v537 = vld [vmem:[%s2 + $0x8] sm:$0xf]
  %v538 = vld [vmem:[%s2 + $0xc] sm:$0xf]
  %v543 = vunpack.c.l.b16 %v535
  %v544 = vunpack.c.l.b16 %v536
  %v545 = vunpack.c.l.b16 %v537
  %v546 = vunpack.c.l.b16 %v538
  %v547 = vpack.c.b16 %v544, %v543
  %v548 = vpack.c.b16 %v546, %v545
  %v552 = vsel %vm49, %v534, 0
  %554 = vmatprep.subr.bf16.mxu0 0
  %555 = vmatpush1.bf16.msra.mxu0 %v547
  %556 = vmatprep.subr.bf16.mxu0 0
  %557 = vmatpush1.bf16.msra.mxu0 %v548
  %558 = vmatprep.subr.bf16.mxu0 0
  %559 = vmatpush1.bf16.msra.mxu0 0
  %560 = vmatprep.subr.bf16.mxu0 0
  %561 = vmatpush1.bf16.msra.mxu0 0
  %562 = vmatprep.subr.bf16.mxu0 0
  %563 = vmatpush1.bf16.msra.mxu0 0
  %564 = vmatprep.subr.bf16.mxu0 0
  %565 = vmatpush1.bf16.msra.mxu0 0
  %566 = vmatprep.subr.bf16.mxu0 0
  %567 = vmatpush1.bf16.msra.mxu0 0
  %568 = vmatprep.subr.bf16.mxu0 0
  %569 = vmatpush1.bf16.msra.mxu0 0
  %570 = vmatprep.subr.bf16.mxu0 0
  %571 = vmatpush1.bf16.msra.mxu0 0
  %572 = vmatprep.subr.bf16.mxu0 0
  %573 = vmatpush1.bf16.msra.mxu0 0
  %574 = vmatprep.subr.bf16.mxu0 0
  %575 = vmatpush1.bf16.msra.mxu0 0
  %576 = vmatprep.subr.bf16.mxu0 0
  %577 = vmatpush1.bf16.msra.mxu0 0
  %578 = vmatprep.subr.bf16.mxu0 0
  %579 = vmatpush1.bf16.msra.mxu0 0
  %580 = vmatprep.subr.bf16.mxu0 0
  %581 = vmatpush1.bf16.msra.mxu0 0
  %582 = vmatprep.subr.bf16.mxu0 0
  %583 = vmatpush1.bf16.msra.mxu0 0
  %584 = vmatprep.subr.bf16.mxu0 0
  %585 = vmatpush1.bf16.msra.mxu0 0
  %586 = vmatprep.mubr.bf16.mxu0 0
  %587 = vmatmul.mubr.bf16.gmra.mrb[0].mxu0 %v552
  %v588 = vpop.f32.mrb[0].mxu0
  %v589 = vadd.f32 0.0, %v588
  %v590 = vpop.f32.mrb[0].mxu0
  %v591 = vpop.f32.mrb[0].mxu0
  %v592 = vpop.f32.mrb[0].mxu0
  %593 = vdwg.mxu0
  %v594 = vadd.f32 %v532, %v589
  %s595 = scalar_lea.vmem %s0, 40
  %v596 = vld [vmem:[%s595 + $0x4] sm:$0xf]
  %v597 = vld [vmem:[#allocation6] sm:$0xf]
  %v598 = vpack.c.bf16 %v597, %v597
  %v599 = vld [vmem:[%s3] sm:$0xf]
  %v600 = vld [vmem:[%s3 + $0x4] sm:$0xf]
  %v601 = vld [vmem:[%s3 + $0x8] sm:$0xf]
  %v602 = vld [vmem:[%s3 + $0xc] sm:$0xf]
  %v607 = vunpack.c.l.b16 %v599
  %v608 = vunpack.c.l.b16 %v600
  %v609 = vunpack.c.l.b16 %v601
  %v610 = vunpack.c.l.b16 %v602
  %v611 = vpack.c.b16 %v608, %v607
  %v612 = vpack.c.b16 %v610, %v609
  %v616 = vsel %vm49, %v598, 0
  %618 = vmatprep.subr.bf16.mxu0 0
  %619 = vmatpush1.bf16.msra.mxu0 %v611
  %620 = vmatprep.subr.bf16.mxu0 0
  %621 = vmatpush1.bf16.msra.mxu0 %v612
  %622 = vmatprep.subr.bf16.mxu0 0
  %623 = vmatpush1.bf16.msra.mxu0 0
  %624 = vmatprep.subr.bf16.mxu0 0
  %625 = vmatpush1.bf16.msra.mxu0 0
  %626 = vmatprep.subr.bf16.mxu0 0
  %627 = vmatpush1.bf16.msra.mxu0 0
  %628 = vmatprep.subr.bf16.mxu0 0
  %629 = vmatpush1.bf16.msra.mxu0 0
  %630 = vmatprep.subr.bf16.mxu0 0
  %631 = vmatpush1.bf16.msra.mxu0 0
  %632 = vmatprep.subr.bf16.mxu0 0
  %633 = vmatpush1.bf16.msra.mxu0 0
  %634 = vmatprep.subr.bf16.mxu0 0
  %635 = vmatpush1.bf16.msra.mxu0 0
  %636 = vmatprep.subr.bf16.mxu0 0
  %637 = vmatpush1.bf16.msra.mxu0 0
  %638 = vmatprep.subr.bf16.mxu0 0
  %639 = vmatpush1.bf16.msra.mxu0 0
  %640 = vmatprep.subr.bf16.mxu0 0
  %641 = vmatpush1.bf16.msra.mxu0 0
  %642 = vmatprep.subr.bf16.mxu0 0
  %643 = vmatpush1.bf16.msra.mxu0 0
  %644 = vmatprep.subr.bf16.mxu0 0
  %645 = vmatpush1.bf16.msra.mxu0 0
  %646 = vmatprep.subr.bf16.mxu0 0
  %647 = vmatpush1.bf16.msra.mxu0 0
  %648 = vmatprep.subr.bf16.mxu0 0
  %649 = vmatpush1.bf16.msra.mxu0 0
  %650 = vmatprep.mubr.bf16.mxu0 0
  %651 = vmatmul.mubr.bf16.gmra.mrb[0].mxu0 %v616
  %v652 = vpop.f32.mrb[0].mxu0
  %v653 = vadd.f32 0.0, %v652
  %v654 = vpop.f32.mrb[0].mxu0
  %v655 = vpop.f32.mrb[0].mxu0
  %v656 = vpop.f32.mrb[0].mxu0
  %657 = vdwg.mxu0
  %v658 = vadd.f32 %v596, %v653
  %v659 = vld [vmem:[#allocation5] sm:$0xf]
  %v660 = vxor.u32 %v594, 2147483648
  %v661 = vmul.f32 %v660, 1.442695
  %v662 = vpow.pop %v661
  %v663 = vadd.f32 %v662, 1.0
  %v664 = vrcp.pop %v663
  %v665 = vmul.f32 1.0, %v664
  %v666 = vtanh.pop %v594
  %668 = vrot.lane.b32.xlu0 %v659, 32
  %v669 = vpop.permute.xlu0 %668
  %v671 = vmul.f32 %v665, %v669
  %673 = vrot.lane.b32.xlu0 %v666, 64
  %v674 = vpop.permute.xlu0 %673
  %v676 = vmul.f32 %v665, %v674
  %678 = vrot.lane.b32.xlu0 %v676, 32
  %v679 = vpop.permute.xlu0 %678
  %v681 = vadd.f32 %v671, %v679
  %v682 = vtanh.pop %v681
  %684 = vrot.lane.b32.xlu0 %v682, 64
  %v685 = vpop.permute.xlu0 %684
  %v687 = vmul.f32 %v665, %v685
  %v688 = vld [vmem:[#allocation7] sm:$0xf]
  %v689 = vxor.u32 %v658, 2147483648
  %v690 = vmul.f32 %v689, 1.442695
  %v691 = vpow.pop %v690
  %v692 = vadd.f32 %v691, 1.0
  %v693 = vrcp.pop %v692
  %v694 = vmul.f32 1.0, %v693
  %v695 = vtanh.pop %v658
  %697 = vrot.lane.b32.xlu0 %v688, 32
  %v698 = vpop.permute.xlu0 %697
  %v700 = vmul.f32 %v694, %v698
  %702 = vrot.lane.b32.xlu0 %v695, 64
  %v703 = vpop.permute.xlu0 %702
  %v705 = vmul.f32 %v694, %v703
  %707 = vrot.lane.b32.xlu0 %v705, 32
  %v708 = vpop.permute.xlu0 %707
  %v710 = vadd.f32 %v700, %v708
  %v711 = vtanh.pop %v710
  %713 = vrot.lane.b32.xlu0 %v711, 64
  %v714 = vpop.permute.xlu0 %713
  %v716 = vmul.f32 %v694, %v714
  %717 = vset.pattern.permute.xlu0 0
  %718 = vperm.xlu0 %717, %v527
  %v719 = vpop.permute.xlu0 %718
  %vm720 = vcmp.eq.s32.totalorder %v719, 1
  %722 = vrot.lane.b32.xlu0 %v687, 32
  %v723 = vpop.permute.xlu0 %722
  %v725 = vsel %vm720, %v723, %v533
  %726 = vst.msk [vmem:[#allocation4] sm:$0xf] %vm19, %v725
  %v727 = vld [vmem:[#allocation5] sm:$0xf]
  %729 = vrot.lane.b32.xlu0 %v681, 96
  %v730 = vpop.permute.xlu0 %729
  %v732 = vsel %vm720, %v730, %v727
  %733 = vst.msk [vmem:[#allocation5] sm:$0xf] %vm19, %v732
  %v734 = vld [vmem:[#allocation6] sm:$0xf]
  %735 = vset.pattern.permute.xlu0 0
  %736 = vperm.xlu0 %735, %v529
  %v737 = vpop.permute.xlu0 %736
  %vm738 = vcmp.eq.s32.totalorder %v737, 1
  %740 = vrot.lane.b32.xlu0 %v716, 32
  %v741 = vpop.permute.xlu0 %740
  %v743 = vsel %vm738, %v741, %v734
  %744 = vst.msk [vmem:[#allocation6] sm:$0xf] %vm19, %v743
  %v745 = vld [vmem:[#allocation7] sm:$0xf]
  %747 = vrot.lane.b32.xlu0 %v710, 96
  %v748 = vpop.permute.xlu0 %747
  %v750 = vsel %vm738, %v748, %v745
  %751 = vst.msk [vmem:[#allocation7] sm:$0xf] %vm19, %v750
  %753 = vset.pattern.permute.xlu0 0
  %754 = vperm.xlu0 %753, %v528
  %v755 = vpop.permute.xlu0 %754
  %v757 = vmul.f32 %v687, %v755
  %759 = vrot.lane.b32.xlu0 %v757, 32
  %v760 = vpop.permute.xlu0 %759
  %s762 = scalar_lea.vmem [#allocation2], 8
  %763 = vst.msk [vmem:[%s762] sm:$0xf] %vm19, %v760
  %765 = vset.pattern.permute.xlu0 0
  %766 = vperm.xlu0 %765, %v530
  %v767 = vpop.permute.xlu0 %766
  %v769 = vmul.f32 %v716, %v767
  %771 = vrot.lane.b32.xlu0 %v769, 32
  %v772 = vpop.permute.xlu0 %771
  %s774 = scalar_lea.vmem [#allocation3], 20
  %775 = vst.msk [vmem:[%s774] sm:$0xf] %vm19, %v772
  %vm776 = vcmp.gt.s32.totalorder %v18, 3
  %vm777 = vcmp.gt.s32.totalorder %v18, 4
  %v778 = vsel %vm776, 1, 0
  %v779 = vcvt.s32.f32 %v778
  %v780 = vsel %vm777, 1, 0
  %v781 = vcvt.s32.f32 %v780
  %s782 = scalar_lea.vmem %s0, 24
  %v783 = vld [vmem:[%s782] sm:$0xf]
  %v784 = vld [vmem:[#allocation4] sm:$0xf]
  %v785 = vpack.c.bf16 %v784, %v784
  %v786 = vld [vmem:[%s2] sm:$0xf]
  %v787 = vld [vmem:[%s2 + $0x4] sm:$0xf]
  %v788 = vld [vmem:[%s2 + $0x8] sm:$0xf]
  %v789 = vld [vmem:[%s2 + $0xc] sm:$0xf]
  %v794 = vunpack.c.l.b16 %v786
  %v795 = vunpack.c.l.b16 %v787
  %v796 = vunpack.c.l.b16 %v788
  %v797 = vunpack.c.l.b16 %v789
  %v798 = vpack.c.b16 %v795, %v794
  %v799 = vpack.c.b16 %v797, %v796
  %v803 = vsel %vm49, %v785, 0
  %805 = vmatprep.subr.bf16.mxu0 0
  %806 = vmatpush1.bf16.msra.mxu0 %v798
  %807 = vmatprep.subr.bf16.mxu0 0
  %808 = vmatpush1.bf16.msra.mxu0 %v799
  %809 = vmatprep.subr.bf16.mxu0 0
  %810 = vmatpush1.bf16.msra.mxu0 0
  %811 = vmatprep.subr.bf16.mxu0 0
  %812 = vmatpush1.bf16.msra.mxu0 0
  %813 = vmatprep.subr.bf16.mxu0 0
  %814 = vmatpush1.bf16.msra.mxu0 0
  %815 = vmatprep.subr.bf16.mxu0 0
  %816 = vmatpush1.bf16.msra.mxu0 0
  %817 = vmatprep.subr.bf16.mxu0 0
  %818 = vmatpush1.bf16.msra.mxu0 0
  %819 = vmatprep.subr.bf16.mxu0 0
  %820 = vmatpush1.bf16.msra.mxu0 0
  %821 = vmatprep.subr.bf16.mxu0 0
  %822 = vmatpush1.bf16.msra.mxu0 0
  %823 = vmatprep.subr.bf16.mxu0 0
  %824 = vmatpush1.bf16.msra.mxu0 0
  %825 = vmatprep.subr.bf16.mxu0 0
  %826 = vmatpush1.bf16.msra.mxu0 0
  %827 = vmatprep.subr.bf16.mxu0 0
  %828 = vmatpush1.bf16.msra.mxu0 0
  %829 = vmatprep.subr.bf16.mxu0 0
  %830 = vmatpush1.bf16.msra.mxu0 0
  %831 = vmatprep.subr.bf16.mxu0 0
  %832 = vmatpush1.bf16.msra.mxu0 0
  %833 = vmatprep.subr.bf16.mxu0 0
  %834 = vmatpush1.bf16.msra.mxu0 0
  %835 = vmatprep.subr.bf16.mxu0 0
  %836 = vmatpush1.bf16.msra.mxu0 0
  %837 = vmatprep.mubr.bf16.mxu0 0
  %838 = vmatmul.mubr.bf16.gmra.mrb[0].mxu0 %v803
  %v839 = vpop.f32.mrb[0].mxu0
  %v840 = vadd.f32 0.0, %v839
  %v841 = vpop.f32.mrb[0].mxu0
  %v842 = vpop.f32.mrb[0].mxu0
  %v843 = vpop.f32.mrb[0].mxu0
  %844 = vdwg.mxu0
  %v845 = vadd.f32 %v783, %v840
  %s846 = scalar_lea.vmem %s0, 32
  %v847 = vld [vmem:[%s846 + $0x4] sm:$0xf]
  %v848 = vld [vmem:[#allocation6] sm:$0xf]
  %v849 = vpack.c.bf16 %v848, %v848
  %v850 = vld [vmem:[%s3] sm:$0xf]
  %v851 = vld [vmem:[%s3 + $0x4] sm:$0xf]
  %v852 = vld [vmem:[%s3 + $0x8] sm:$0xf]
  %v853 = vld [vmem:[%s3 + $0xc] sm:$0xf]
  %v858 = vunpack.c.l.b16 %v850
  %v859 = vunpack.c.l.b16 %v851
  %v860 = vunpack.c.l.b16 %v852
  %v861 = vunpack.c.l.b16 %v853
  %v862 = vpack.c.b16 %v859, %v858
  %v863 = vpack.c.b16 %v861, %v860
  %v867 = vsel %vm49, %v849, 0
  %869 = vmatprep.subr.bf16.mxu0 0
  %870 = vmatpush1.bf16.msra.mxu0 %v862
  %871 = vmatprep.subr.bf16.mxu0 0
  %872 = vmatpush1.bf16.msra.mxu0 %v863
  %873 = vmatprep.subr.bf16.mxu0 0
  %874 = vmatpush1.bf16.msra.mxu0 0
  %875 = vmatprep.subr.bf16.mxu0 0
  %876 = vmatpush1.bf16.msra.mxu0 0
  %877 = vmatprep.subr.bf16.mxu0 0
  %878 = vmatpush1.bf16.msra.mxu0 0
  %879 = vmatprep.subr.bf16.mxu0 0
  %880 = vmatpush1.bf16.msra.mxu0 0
  %881 = vmatprep.subr.bf16.mxu0 0
  %882 = vmatpush1.bf16.msra.mxu0 0
  %883 = vmatprep.subr.bf16.mxu0 0
  %884 = vmatpush1.bf16.msra.mxu0 0
  %885 = vmatprep.subr.bf16.mxu0 0
  %886 = vmatpush1.bf16.msra.mxu0 0
  %887 = vmatprep.subr.bf16.mxu0 0
  %888 = vmatpush1.bf16.msra.mxu0 0
  %889 = vmatprep.subr.bf16.mxu0 0
  %890 = vmatpush1.bf16.msra.mxu0 0
  %891 = vmatprep.subr.bf16.mxu0 0
  %892 = vmatpush1.bf16.msra.mxu0 0
  %893 = vmatprep.subr.bf16.mxu0 0
  %894 = vmatpush1.bf16.msra.mxu0 0
  %895 = vmatprep.subr.bf16.mxu0 0
  %896 = vmatpush1.bf16.msra.mxu0 0
  %897 = vmatprep.subr.bf16.mxu0 0
  %898 = vmatpush1.bf16.msra.mxu0 0
  %899 = vmatprep.subr.bf16.mxu0 0
  %900 = vmatpush1.bf16.msra.mxu0 0
  %901 = vmatprep.mubr.bf16.mxu0 0
  %902 = vmatmul.mubr.bf16.gmra.mrb[0].mxu0 %v867
  %v903 = vpop.f32.mrb[0].mxu0
  %v904 = vadd.f32 0.0, %v903
  %v905 = vpop.f32.mrb[0].mxu0
  %v906 = vpop.f32.mrb[0].mxu0
  %v907 = vpop.f32.mrb[0].mxu0
  %908 = vdwg.mxu0
  %v909 = vadd.f32 %v847, %v904
  %v910 = vld [vmem:[#allocation5] sm:$0xf]
  %v911 = vxor.u32 %v845, 2147483648
  %v912 = vmul.f32 %v911, 1.442695
  %v913 = vpow.pop %v912
  %v914 = vadd.f32 %v913, 1.0
  %v915 = vrcp.pop %v914
  %v916 = vmul.f32 1.0, %v915
  %v917 = vtanh.pop %v845
  %919 = vrot.lane.b32.xlu0 %v910, 32
  %v920 = vpop.permute.xlu0 %919
  %v922 = vmul.f32 %v916, %v920
  %924 = vrot.lane.b32.xlu0 %v917, 64
  %v925 = vpop.permute.xlu0 %924
  %v927 = vmul.f32 %v916, %v925
  %929 = vrot.lane.b32.xlu0 %v927, 32
  %v930 = vpop.permute.xlu0 %929
  %v932 = vadd.f32 %v922, %v930
  %v933 = vtanh.pop %v932
  %935 = vrot.lane.b32.xlu0 %v933, 64
  %v936 = vpop.permute.xlu0 %935
  %v938 = vmul.f32 %v916, %v936
  %v939 = vld [vmem:[#allocation7] sm:$0xf]
  %v940 = vxor.u32 %v909, 2147483648
  %v941 = vmul.f32 %v940, 1.442695
  %v942 = vpow.pop %v941
  %v943 = vadd.f32 %v942, 1.0
  %v944 = vrcp.pop %v943
  %v945 = vmul.f32 1.0, %v944
  %v946 = vtanh.pop %v909
  %948 = vrot.lane.b32.xlu0 %v939, 32
  %v949 = vpop.permute.xlu0 %948
  %v951 = vmul.f32 %v945, %v949
  %953 = vrot.lane.b32.xlu0 %v946, 64
  %v954 = vpop.permute.xlu0 %953
  %v956 = vmul.f32 %v945, %v954
  %958 = vrot.lane.b32.xlu0 %v956, 32
  %v959 = vpop.permute.xlu0 %958
  %v961 = vadd.f32 %v951, %v959
  %v962 = vtanh.pop %v961
  %964 = vrot.lane.b32.xlu0 %v962, 64
  %v965 = vpop.permute.xlu0 %964
  %v967 = vmul.f32 %v945, %v965
  %968 = vset.pattern.permute.xlu0 0
  %969 = vperm.xlu0 %968, %v778
  %v970 = vpop.permute.xlu0 %969
  %vm971 = vcmp.eq.s32.totalorder %v970, 1
  %973 = vrot.lane.b32.xlu0 %v938, 32
  %v974 = vpop.permute.xlu0 %973
  %v976 = vsel %vm971, %v974, %v784
  %977 = vst.msk [vmem:[#allocation4] sm:$0xf] %vm19, %v976
  %v978 = vld [vmem:[#allocation5] sm:$0xf]
  %980 = vrot.lane.b32.xlu0 %v932, 96
  %v981 = vpop.permute.xlu0 %980
  %v983 = vsel %vm971, %v981, %v978
  %984 = vst.msk [vmem:[#allocation5] sm:$0xf] %vm19, %v983
  %v985 = vld [vmem:[#allocation6] sm:$0xf]
  %986 = vset.pattern.permute.xlu0 0
  %987 = vperm.xlu0 %986, %v780
  %v988 = vpop.permute.xlu0 %987
  %vm989 = vcmp.eq.s32.totalorder %v988, 1
  %991 = vrot.lane.b32.xlu0 %v967, 32
  %v992 = vpop.permute.xlu0 %991
  %v994 = vsel %vm989, %v992, %v985
  %995 = vst.msk [vmem:[#allocation6] sm:$0xf] %vm19, %v994
  %v996 = vld [vmem:[#allocation7] sm:$0xf]
  %998 = vrot.lane.b32.xlu0 %v961, 96
  %v999 = vpop.permute.xlu0 %998
  %v1001 = vsel %vm989, %v999, %v996
  %1002 = vst.msk [vmem:[#allocation7] sm:$0xf] %vm19, %v1001
  %1004 = vset.pattern.permute.xlu0 0
  %1005 = vperm.xlu0 %1004, %v779
  %v1006 = vpop.permute.xlu0 %1005
  %v1008 = vmul.f32 %v938, %v1006
  %1010 = vrot.lane.b32.xlu0 %v1008, 32
  %v1011 = vpop.permute.xlu0 %1010
  %s1013 = scalar_lea.vmem [#allocation2], 12
  %1014 = vst.msk [vmem:[%s1013] sm:$0xf] %vm19, %v1011
  %1016 = vset.pattern.permute.xlu0 0
  %1017 = vperm.xlu0 %1016, %v781
  %v1018 = vpop.permute.xlu0 %1017
  %v1020 = vmul.f32 %v967, %v1018
  %1022 = vrot.lane.b32.xlu0 %v1020, 32
  %v1023 = vpop.permute.xlu0 %1022
  %s1025 = scalar_lea.vmem [#allocation3], 16
  %1026 = vst.msk [vmem:[%s1025] sm:$0xf] %vm19, %v1023
  %v1027 = vld [vmem:[%s846] sm:$0xf]
  %v1028 = vld [vmem:[#allocation4] sm:$0xf]
  %v1029 = vpack.c.bf16 %v1028, %v1028
  %v1030 = vld [vmem:[%s2] sm:$0xf]
  %v1031 = vld [vmem:[%s2 + $0x4] sm:$0xf]
  %v1032 = vld [vmem:[%s2 + $0x8] sm:$0xf]
  %v1033 = vld [vmem:[%s2 + $0xc] sm:$0xf]
  %v1038 = vunpack.c.l.b16 %v1030
  %v1039 = vunpack.c.l.b16 %v1031
  %v1040 = vunpack.c.l.b16 %v1032
  %v1041 = vunpack.c.l.b16 %v1033
  %v1042 = vpack.c.b16 %v1039, %v1038
  %v1043 = vpack.c.b16 %v1041, %v1040
  %v1047 = vsel %vm49, %v1029, 0
  %1049 = vmatprep.subr.bf16.mxu0 0
  %1050 = vmatpush1.bf16.msra.mxu0 %v1042
  %1051 = vmatprep.subr.bf16.mxu0 0
  %1052 = vmatpush1.bf16.msra.mxu0 %v1043
  %1053 = vmatprep.subr.bf16.mxu0 0
  %1054 = vmatpush1.bf16.msra.mxu0 0
  %1055 = vmatprep.subr.bf16.mxu0 0
  %1056 = vmatpush1.bf16.msra.mxu0 0
  %1057 = vmatprep.subr.bf16.mxu0 0
  %1058 = vmatpush1.bf16.msra.mxu0 0
  %1059 = vmatprep.subr.bf16.mxu0 0
  %1060 = vmatpush1.bf16.msra.mxu0 0
  %1061 = vmatprep.subr.bf16.mxu0 0
  %1062 = vmatpush1.bf16.msra.mxu0 0
  %1063 = vmatprep.subr.bf16.mxu0 0
  %1064 = vmatpush1.bf16.msra.mxu0 0
  %1065 = vmatprep.subr.bf16.mxu0 0
  %1066 = vmatpush1.bf16.msra.mxu0 0
  %1067 = vmatprep.subr.bf16.mxu0 0
  %1068 = vmatpush1.bf16.msra.mxu0 0
  %1069 = vmatprep.subr.bf16.mxu0 0
  %1070 = vmatpush1.bf16.msra.mxu0 0
  %1071 = vmatprep.subr.bf16.mxu0 0
  %1072 = vmatpush1.bf16.msra.mxu0 0
  %1073 = vmatprep.subr.bf16.mxu0 0
  %1074 = vmatpush1.bf16.msra.mxu0 0
  %1075 = vmatprep.subr.bf16.mxu0 0
  %1076 = vmatpush1.bf16.msra.mxu0 0
  %1077 = vmatprep.subr.bf16.mxu0 0
  %1078 = vmatpush1.bf16.msra.mxu0 0
  %1079 = vmatprep.subr.bf16.mxu0 0
  %1080 = vmatpush1.bf16.msra.mxu0 0
  %1081 = vmatprep.mubr.bf16.mxu0 0
  %1082 = vmatmul.mubr.bf16.gmra.mrb[0].mxu0 %v1047
  %v1083 = vpop.f32.mrb[0].mxu0
  %v1084 = vadd.f32 0.0, %v1083
  %v1085 = vpop.f32.mrb[0].mxu0
  %v1086 = vpop.f32.mrb[0].mxu0
  %v1087 = vpop.f32.mrb[0].mxu0
  %1088 = vdwg.mxu0
  %v1089 = vadd.f32 %v1027, %v1084
  %v1090 = vld [vmem:[%s782 + $0x4] sm:$0xf]
  %v1091 = vld [vmem:[#allocation6] sm:$0xf]
  %v1092 = vpack.c.bf16 %v1091, %v1091
  %v1093 = vld [vmem:[%s3] sm:$0xf]
  %v1094 = vld [vmem:[%s3 + $0x4] sm:$0xf]
  %v1095 = vld [vmem:[%s3 + $0x8] sm:$0xf]
  %v1096 = vld [vmem:[%s3 + $0xc] sm:$0xf]
  %v1101 = vunpack.c.l.b16 %v1093
  %v1102 = vunpack.c.l.b16 %v1094
  %v1103 = vunpack.c.l.b16 %v1095
  %v1104 = vunpack.c.l.b16 %v1096
  %v1105 = vpack.c.b16 %v1102, %v1101
  %v1106 = vpack.c.b16 %v1104, %v1103
  %v1110 = vsel %vm49, %v1092, 0
  %1112 = vmatprep.subr.bf16.mxu0 0
  %1113 = vmatpush1.bf16.msra.mxu0 %v1105
  %1114 = vmatprep.subr.bf16.mxu0 0
  %1115 = vmatpush1.bf16.msra.mxu0 %v1106
  %1116 = vmatprep.subr.bf16.mxu0 0
  %1117 = vmatpush1.bf16.msra.mxu0 0
  %1118 = vmatprep.subr.bf16.mxu0 0
  %1119 = vmatpush1.bf16.msra.mxu0 0
  %1120 = vmatprep.subr.bf16.mxu0 0
  %1121 = vmatpush1.bf16.msra.mxu0 0
  %1122 = vmatprep.subr.bf16.mxu0 0
  %1123 = vmatpush1.bf16.msra.mxu0 0
  %1124 = vmatprep.subr.bf16.mxu0 0
  %1125 = vmatpush1.bf16.msra.mxu0 0
  %1126 = vmatprep.subr.bf16.mxu0 0
  %1127 = vmatpush1.bf16.msra.mxu0 0
  %1128 = vmatprep.subr.bf16.mxu0 0
  %1129 = vmatpush1.bf16.msra.mxu0 0
  %1130 = vmatprep.subr.bf16.mxu0 0
  %1131 = vmatpush1.bf16.msra.mxu0 0
  %1132 = vmatprep.subr.bf16.mxu0 0
  %1133 = vmatpush1.bf16.msra.mxu0 0
  %1134 = vmatprep.subr.bf16.mxu0 0
  %1135 = vmatpush1.bf16.msra.mxu0 0
  %1136 = vmatprep.subr.bf16.mxu0 0
  %1137 = vmatpush1.bf16.msra.mxu0 0
  %1138 = vmatprep.subr.bf16.mxu0 0
  %1139 = vmatpush1.bf16.msra.mxu0 0
  %1140 = vmatprep.subr.bf16.mxu0 0
  %1141 = vmatpush1.bf16.msra.mxu0 0
  %1142 = vmatprep.subr.bf16.mxu0 0
  %1143 = vmatpush1.bf16.msra.mxu0 0
  %1144 = vmatprep.mubr.bf16.mxu0 0
  %1145 = vmatmul.mubr.bf16.gmra.mrb[0].mxu0 %v1110
  %v1146 = vpop.f32.mrb[0].mxu0
  %v1147 = vadd.f32 0.0, %v1146
  %v1148 = vpop.f32.mrb[0].mxu0
  %v1149 = vpop.f32.mrb[0].mxu0
  %v1150 = vpop.f32.mrb[0].mxu0
  %1151 = vdwg.mxu0
  %v1152 = vadd.f32 %v1090, %v1147
  %v1153 = vld [vmem:[#allocation5] sm:$0xf]
  %v1154 = vxor.u32 %v1089, 2147483648
  %v1155 = vmul.f32 %v1154, 1.442695
  %v1156 = vpow.pop %v1155
  %v1157 = vadd.f32 %v1156, 1.0
  %v1158 = vrcp.pop %v1157
  %v1159 = vmul.f32 1.0, %v1158
  %v1160 = vtanh.pop %v1089
  %1162 = vrot.lane.b32.xlu0 %v1153, 32
  %v1163 = vpop.permute.xlu0 %1162
  %v1165 = vmul.f32 %v1159, %v1163
  %1167 = vrot.lane.b32.xlu0 %v1160, 64
  %v1168 = vpop.permute.xlu0 %1167
  %v1170 = vmul.f32 %v1159, %v1168
  %1172 = vrot.lane.b32.xlu0 %v1170, 32
  %v1173 = vpop.permute.xlu0 %1172
  %v1175 = vadd.f32 %v1165, %v1173
  %v1176 = vtanh.pop %v1175
  %1178 = vrot.lane.b32.xlu0 %v1176, 64
  %v1179 = vpop.permute.xlu0 %1178
  %v1181 = vmul.f32 %v1159, %v1179
  %v1182 = vld [vmem:[#allocation7] sm:$0xf]
  %v1183 = vxor.u32 %v1152, 2147483648
  %v1184 = vmul.f32 %v1183, 1.442695
  %v1185 = vpow.pop %v1184
  %v1186 = vadd.f32 %v1185, 1.0
  %v1187 = vrcp.pop %v1186
  %v1188 = vmul.f32 1.0, %v1187
  %v1189 = vtanh.pop %v1152
  %1191 = vrot.lane.b32.xlu0 %v1182, 32
  %v1192 = vpop.permute.xlu0 %1191
  %v1194 = vmul.f32 %v1188, %v1192
  %1196 = vrot.lane.b32.xlu0 %v1189, 64
  %v1197 = vpop.permute.xlu0 %1196
  %v1199 = vmul.f32 %v1188, %v1197
  %1201 = vrot.lane.b32.xlu0 %v1199, 32
  %v1202 = vpop.permute.xlu0 %1201
  %v1204 = vadd.f32 %v1194, %v1202
  %v1205 = vtanh.pop %v1204
  %1207 = vrot.lane.b32.xlu0 %v1205, 64
  %v1208 = vpop.permute.xlu0 %1207
  %v1210 = vmul.f32 %v1188, %v1208
  %1212 = vrot.lane.b32.xlu0 %v1181, 32
  %v1213 = vpop.permute.xlu0 %1212
  %v1215 = vsel %vm989, %v1213, %v1028
  %1216 = vst.msk [vmem:[#allocation4] sm:$0xf] %vm19, %v1215
  %v1217 = vld [vmem:[#allocation5] sm:$0xf]
  %1219 = vrot.lane.b32.xlu0 %v1175, 96
  %v1220 = vpop.permute.xlu0 %1219
  %v1222 = vsel %vm989, %v1220, %v1217
  %1223 = vst.msk [vmem:[#allocation5] sm:$0xf] %vm19, %v1222
  %v1224 = vld [vmem:[#allocation6] sm:$0xf]
  %1226 = vrot.lane.b32.xlu0 %v1210, 32
  %v1227 = vpop.permute.xlu0 %1226
  %v1229 = vsel %vm971, %v1227, %v1224
  %1230 = vst.msk [vmem:[#allocation6] sm:$0xf] %vm19, %v1229
  %v1231 = vld [vmem:[#allocation7] sm:$0xf]
  %1233 = vrot.lane.b32.xlu0 %v1204, 96
  %v1234 = vpop.permute.xlu0 %1233
  %v1236 = vsel %vm971, %v1234, %v1231
  %1237 = vst.msk [vmem:[#allocation7] sm:$0xf] %vm19, %v1236
  %v1238 = vmul.f32 %v1181, %v1018
  %1240 = vrot.lane.b32.xlu0 %v1238, 32
  %v1241 = vpop.permute.xlu0 %1240
  %s1243 = scalar_lea.vmem [#allocation2], 16
  %1244 = vst.msk [vmem:[%s1243] sm:$0xf] %vm19, %v1241
  %v1245 = vmul.f32 %v1210, %v1006
  %1247 = vrot.lane.b32.xlu0 %v1245, 32
  %v1248 = vpop.permute.xlu0 %1247
  %s1250 = scalar_lea.vmem [#allocation3], 12
  %1251 = vst.msk [vmem:[%s1250] sm:$0xf] %vm19, %v1248
  %v1252 = vld [vmem:[%s595] sm:$0xf]
  %v1253 = vld [vmem:[#allocation4] sm:$0xf]
  %v1254 = vpack.c.bf16 %v1253, %v1253
  %v1255 = vld [vmem:[%s2] sm:$0xf]
  %v1256 = vld [vmem:[%s2 + $0x4] sm:$0xf]
  %v1257 = vld [vmem:[%s2 + $0x8] sm:$0xf]
  %v1258 = vld [vmem:[%s2 + $0xc] sm:$0xf]
  %v1263 = vunpack.c.l.b16 %v1255
  %v1264 = vunpack.c.l.b16 %v1256
  %v1265 = vunpack.c.l.b16 %v1257
  %v1266 = vunpack.c.l.b16 %v1258
  %v1267 = vpack.c.b16 %v1264, %v1263
  %v1268 = vpack.c.b16 %v1266, %v1265
  %v1272 = vsel %vm49, %v1254, 0
  %1274 = vmatprep.subr.bf16.mxu0 0
  %1275 = vmatpush1.bf16.msra.mxu0 %v1267
  %1276 = vmatprep.subr.bf16.mxu0 0
  %1277 = vmatpush1.bf16.msra.mxu0 %v1268
  %1278 = vmatprep.subr.bf16.mxu0 0
  %1279 = vmatpush1.bf16.msra.mxu0 0
  %1280 = vmatprep.subr.bf16.mxu0 0
  %1281 = vmatpush1.bf16.msra.mxu0 0
  %1282 = vmatprep.subr.bf16.mxu0 0
  %1283 = vmatpush1.bf16.msra.mxu0 0
  %1284 = vmatprep.subr.bf16.mxu0 0
  %1285 = vmatpush1.bf16.msra.mxu0 0
  %1286 = vmatprep.subr.bf16.mxu0 0
  %1287 = vmatpush1.bf16.msra.mxu0 0
  %1288 = vmatprep.subr.bf16.mxu0 0
  %1289 = vmatpush1.bf16.msra.mxu0 0
  %1290 = vmatprep.subr.bf16.mxu0 0
  %1291 = vmatpush1.bf16.msra.mxu0 0
  %1292 = vmatprep.subr.bf16.mxu0 0
  %1293 = vmatpush1.bf16.msra.mxu0 0
  %1294 = vmatprep.subr.bf16.mxu0 0
  %1295 = vmatpush1.bf16.msra.mxu0 0
  %1296 = vmatprep.subr.bf16.mxu0 0
  %1297 = vmatpush1.bf16.msra.mxu0 0
  %1298 = vmatprep.subr.bf16.mxu0 0
  %1299 = vmatpush1.bf16.msra.mxu0 0
  %1300 = vmatprep.subr.bf16.mxu0 0
  %1301 = vmatpush1.bf16.msra.mxu0 0
  %1302 = vmatprep.subr.bf16.mxu0 0
  %1303 = vmatpush1.bf16.msra.mxu0 0
  %1304 = vmatprep.subr.bf16.mxu0 0
  %1305 = vmatpush1.bf16.msra.mxu0 0
  %1306 = vmatprep.mubr.bf16.mxu0 0
  %1307 = vmatmul.mubr.bf16.gmra.mrb[0].mxu0 %v1272
  %v1308 = vpop.f32.mrb[0].mxu0
  %v1309 = vadd.f32 0.0, %v1308
  %v1310 = vpop.f32.mrb[0].mxu0
  %v1311 = vpop.f32.mrb[0].mxu0
  %v1312 = vpop.f32.mrb[0].mxu0
  %1313 = vdwg.mxu0
  %v1314 = vadd.f32 %v1252, %v1309
  %v1315 = vld [vmem:[%s531 + $0x4] sm:$0xf]
  %v1316 = vld [vmem:[#allocation6] sm:$0xf]
  %v1317 = vpack.c.bf16 %v1316, %v1316
  %v1318 = vld [vmem:[%s3] sm:$0xf]
  %v1319 = vld [vmem:[%s3 + $0x4] sm:$0xf]
  %v1320 = vld [vmem:[%s3 + $0x8] sm:$0xf]
  %v1321 = vld [vmem:[%s3 + $0xc] sm:$0xf]
  %v1326 = vunpack.c.l.b16 %v1318
  %v1327 = vunpack.c.l.b16 %v1319
  %v1328 = vunpack.c.l.b16 %v1320
  %v1329 = vunpack.c.l.b16 %v1321
  %v1330 = vpack.c.b16 %v1327, %v1326
  %v1331 = vpack.c.b16 %v1329, %v1328
  %v1335 = vsel %vm49, %v1317, 0
  %1337 = vmatprep.subr.bf16.mxu0 0
  %1338 = vmatpush1.bf16.msra.mxu0 %v1330
  %1339 = vmatprep.subr.bf16.mxu0 0
  %1340 = vmatpush1.bf16.msra.mxu0 %v1331
  %1341 = vmatprep.subr.bf16.mxu0 0
  %1342 = vmatpush1.bf16.msra.mxu0 0
  %1343 = vmatprep.subr.bf16.mxu0 0
  %1344 = vmatpush1.bf16.msra.mxu0 0
  %1345 = vmatprep.subr.bf16.mxu0 0
  %1346 = vmatpush1.bf16.msra.mxu0 0
  %1347 = vmatprep.subr.bf16.mxu0 0
  %1348 = vmatpush1.bf16.msra.mxu0 0
  %1349 = vmatprep.subr.bf16.mxu0 0
  %1350 = vmatpush1.bf16.msra.mxu0 0
  %1351 = vmatprep.subr.bf16.mxu0 0
  %1352 = vmatpush1.bf16.msra.mxu0 0
  %1353 = vmatprep.subr.bf16.mxu0 0
  %1354 = vmatpush1.bf16.msra.mxu0 0
  %1355 = vmatprep.subr.bf16.mxu0 0
  %1356 = vmatpush1.bf16.msra.mxu0 0
  %1357 = vmatprep.subr.bf16.mxu0 0
  %1358 = vmatpush1.bf16.msra.mxu0 0
  %1359 = vmatprep.subr.bf16.mxu0 0
  %1360 = vmatpush1.bf16.msra.mxu0 0
  %1361 = vmatprep.subr.bf16.mxu0 0
  %1362 = vmatpush1.bf16.msra.mxu0 0
  %1363 = vmatprep.subr.bf16.mxu0 0
  %1364 = vmatpush1.bf16.msra.mxu0 0
  %1365 = vmatprep.subr.bf16.mxu0 0
  %1366 = vmatpush1.bf16.msra.mxu0 0
  %1367 = vmatprep.subr.bf16.mxu0 0
  %1368 = vmatpush1.bf16.msra.mxu0 0
  %1369 = vmatprep.mubr.bf16.mxu0 0
  %1370 = vmatmul.mubr.bf16.gmra.mrb[0].mxu0 %v1335
  %v1371 = vpop.f32.mrb[0].mxu0
  %v1372 = vadd.f32 0.0, %v1371
  %v1373 = vpop.f32.mrb[0].mxu0
  %v1374 = vpop.f32.mrb[0].mxu0
  %v1375 = vpop.f32.mrb[0].mxu0
  %1376 = vdwg.mxu0
  %v1377 = vadd.f32 %v1315, %v1372
  %v1378 = vld [vmem:[#allocation5] sm:$0xf]
  %v1379 = vxor.u32 %v1314, 2147483648
  %v1380 = vmul.f32 %v1379, 1.442695
  %v1381 = vpow.pop %v1380
  %v1382 = vadd.f32 %v1381, 1.0
  %v1383 = vrcp.pop %v1382
  %v1384 = vmul.f32 1.0, %v1383
  %v1385 = vtanh.pop %v1314
  %1387 = vrot.lane.b32.xlu0 %v1378, 32
  %v1388 = vpop.permute.xlu0 %1387
  %v1390 = vmul.f32 %v1384, %v1388
  %1392 = vrot.lane.b32.xlu0 %v1385, 64
  %v1393 = vpop.permute.xlu0 %1392
  %v1395 = vmul.f32 %v1384, %v1393
  %1397 = vrot.lane.b32.xlu0 %v1395, 32
  %v1398 = vpop.permute.xlu0 %1397
  %v1400 = vadd.f32 %v1390, %v1398
  %v1401 = vtanh.pop %v1400
  %1403 = vrot.lane.b32.xlu0 %v1401, 64
  %v1404 = vpop.permute.xlu0 %1403
  %v1406 = vmul.f32 %v1384, %v1404
  %v1407 = vld [vmem:[#allocation7] sm:$0xf]
  %v1408 = vxor.u32 %v1377, 2147483648
  %v1409 = vmul.f32 %v1408, 1.442695
  %v1410 = vpow.pop %v1409
  %v1411 = vadd.f32 %v1410, 1.0
  %v1412 = vrcp.pop %v1411
  %v1413 = vmul.f32 1.0, %v1412
  %v1414 = vtanh.pop %v1377
  %1416 = vrot.lane.b32.xlu0 %v1407, 32
  %v1417 = vpop.permute.xlu0 %1416
  %v1419 = vmul.f32 %v1413, %v1417
  %1421 = vrot.lane.b32.xlu0 %v1414, 64
  %v1422 = vpop.permute.xlu0 %1421
  %v1424 = vmul.f32 %v1413, %v1422
  %1426 = vrot.lane.b32.xlu0 %v1424, 32
  %v1427 = vpop.permute.xlu0 %1426
  %v1429 = vadd.f32 %v1419, %v1427
  %v1430 = vtanh.pop %v1429
  %1432 = vrot.lane.b32.xlu0 %v1430, 64
  %v1433 = vpop.permute.xlu0 %1432
  %v1435 = vmul.f32 %v1413, %v1433
  %1437 = vrot.lane.b32.xlu0 %v1406, 32
  %v1438 = vpop.permute.xlu0 %1437
  %v1440 = vsel %vm738, %v1438, %v1253
  %1441 = vst.msk [vmem:[#allocation4] sm:$0xf] %vm19, %v1440
  %v1442 = vld [vmem:[#allocation5] sm:$0xf]
  %1444 = vrot.lane.b32.xlu0 %v1400, 96
  %v1445 = vpop.permute.xlu0 %1444
  %v1447 = vsel %vm738, %v1445, %v1442
  %1448 = vst.msk [vmem:[#allocation5] sm:$0xf] %vm19, %v1447
  %v1449 = vld [vmem:[#allocation6] sm:$0xf]
  %1451 = vrot.lane.b32.xlu0 %v1435, 32
  %v1452 = vpop.permute.xlu0 %1451
  %v1454 = vsel %vm720, %v1452, %v1449
  %1455 = vst.msk [vmem:[#allocation6] sm:$0xf] %vm19, %v1454
  %v1456 = vld [vmem:[#allocation7] sm:$0xf]
  %1458 = vrot.lane.b32.xlu0 %v1429, 96
  %v1459 = vpop.permute.xlu0 %1458
  %v1461 = vsel %vm720, %v1459, %v1456
  %1462 = vst.msk [vmem:[#allocation7] sm:$0xf] %vm19, %v1461
  %v1463 = vmul.f32 %v1406, %v767
  %1465 = vrot.lane.b32.xlu0 %v1463, 32
  %v1466 = vpop.permute.xlu0 %1465
  %s1468 = scalar_lea.vmem [#allocation2], 20
  %1469 = vst.msk [vmem:[%s1468] sm:$0xf] %vm19, %v1466
  %v1470 = vmul.f32 %v1435, %v755
  %1472 = vrot.lane.b32.xlu0 %v1470, 32
  %v1473 = vpop.permute.xlu0 %1472
  %s1475 = scalar_lea.vmem [#allocation3], 8
  %1476 = vst.msk [vmem:[%s1475] sm:$0xf] %vm19, %v1473
  %v1477 = vld [vmem:[%s344] sm:$0xf]
  %v1478 = vld [vmem:[#allocation4] sm:$0xf]
  %v1479 = vpack.c.bf16 %v1478, %v1478
  %v1480 = vld [vmem:[%s2] sm:$0xf]
  %v1481 = vld [vmem:[%s2 + $0x4] sm:$0xf]
  %v1482 = vld [vmem:[%s2 + $0x8] sm:$0xf]
  %v1483 = vld [vmem:[%s2 + $0xc] sm:$0xf]
  %v1488 = vunpack.c.l.b16 %v1480
  %v1489 = vunpack.c.l.b16 %v1481
  %v1490 = vunpack.c.l.b16 %v1482
  %v1491 = vunpack.c.l.b16 %v1483
  %v1492 = vpack.c.b16 %v1489, %v1488
  %v1493 = vpack.c.b16 %v1491, %v1490
  %v1497 = vsel %vm49, %v1479, 0
  %1499 = vmatprep.subr.bf16.mxu0 0
  %1500 = vmatpush1.bf16.msra.mxu0 %v1492
  %1501 = vmatprep.subr.bf16.mxu0 0
  %1502 = vmatpush1.bf16.msra.mxu0 %v1493
  %1503 = vmatprep.subr.bf16.mxu0 0
  %1504 = vmatpush1.bf16.msra.mxu0 0
  %1505 = vmatprep.subr.bf16.mxu0 0
  %1506 = vmatpush1.bf16.msra.mxu0 0
  %1507 = vmatprep.subr.bf16.mxu0 0
  %1508 = vmatpush1.bf16.msra.mxu0 0
  %1509 = vmatprep.subr.bf16.mxu0 0
  %1510 = vmatpush1.bf16.msra.mxu0 0
  %1511 = vmatprep.subr.bf16.mxu0 0
  %1512 = vmatpush1.bf16.msra.mxu0 0
  %1513 = vmatprep.subr.bf16.mxu0 0
  %1514 = vmatpush1.bf16.msra.mxu0 0
  %1515 = vmatprep.subr.bf16.mxu0 0
  %1516 = vmatpush1.bf16.msra.mxu0 0
  %1517 = vmatprep.subr.bf16.mxu0 0
  %1518 = vmatpush1.bf16.msra.mxu0 0
  %1519 = vmatprep.subr.bf16.mxu0 0
  %1520 = vmatpush1.bf16.msra.mxu0 0
  %1521 = vmatprep.subr.bf16.mxu0 0
  %1522 = vmatpush1.bf16.msra.mxu0 0
  %1523 = vmatprep.subr.bf16.mxu0 0
  %1524 = vmatpush1.bf16.msra.mxu0 0
  %1525 = vmatprep.subr.bf16.mxu0 0
  %1526 = vmatpush1.bf16.msra.mxu0 0
  %1527 = vmatprep.subr.bf16.mxu0 0
  %1528 = vmatpush1.bf16.msra.mxu0 0
  %1529 = vmatprep.subr.bf16.mxu0 0
  %1530 = vmatpush1.bf16.msra.mxu0 0
  %1531 = vmatprep.mubr.bf16.mxu0 0
  %1532 = vmatmul.mubr.bf16.gmra.mrb[0].mxu0 %v1497
  %v1533 = vpop.f32.mrb[0].mxu0
  %v1534 = vadd.f32 0.0, %v1533
  %v1535 = vpop.f32.mrb[0].mxu0
  %v1536 = vpop.f32.mrb[0].mxu0
  %v1537 = vpop.f32.mrb[0].mxu0
  %1538 = vdwg.mxu0
  %v1539 = vadd.f32 %v1477, %v1534
  %v1540 = vld [vmem:[%s280 + $0x4] sm:$0xf]
  %v1541 = vld [vmem:[#allocation6] sm:$0xf]
  %v1542 = vpack.c.bf16 %v1541, %v1541
  %v1543 = vld [vmem:[%s3] sm:$0xf]
  %v1544 = vld [vmem:[%s3 + $0x4] sm:$0xf]
  %v1545 = vld [vmem:[%s3 + $0x8] sm:$0xf]
  %v1546 = vld [vmem:[%s3 + $0xc] sm:$0xf]
  %v1551 = vunpack.c.l.b16 %v1543
  %v1552 = vunpack.c.l.b16 %v1544
  %v1553 = vunpack.c.l.b16 %v1545
  %v1554 = vunpack.c.l.b16 %v1546
  %v1555 = vpack.c.b16 %v1552, %v1551
  %v1556 = vpack.c.b16 %v1554, %v1553
  %v1560 = vsel %vm49, %v1542, 0
  %1562 = vmatprep.subr.bf16.mxu0 0
  %1563 = vmatpush1.bf16.msra.mxu0 %v1555
  %1564 = vmatprep.subr.bf16.mxu0 0
  %1565 = vmatpush1.bf16.msra.mxu0 %v1556
  %1566 = vmatprep.subr.bf16.mxu0 0
  %1567 = vmatpush1.bf16.msra.mxu0 0
  %1568 = vmatprep.subr.bf16.mxu0 0
  %1569 = vmatpush1.bf16.msra.mxu0 0
  %1570 = vmatprep.subr.bf16.mxu0 0
  %1571 = vmatpush1.bf16.msra.mxu0 0
  %1572 = vmatprep.subr.bf16.mxu0 0
  %1573 = vmatpush1.bf16.msra.mxu0 0
  %1574 = vmatprep.subr.bf16.mxu0 0
  %1575 = vmatpush1.bf16.msra.mxu0 0
  %1576 = vmatprep.subr.bf16.mxu0 0
  %1577 = vmatpush1.bf16.msra.mxu0 0
  %1578 = vmatprep.subr.bf16.mxu0 0
  %1579 = vmatpush1.bf16.msra.mxu0 0
  %1580 = vmatprep.subr.bf16.mxu0 0
  %1581 = vmatpush1.bf16.msra.mxu0 0
  %1582 = vmatprep.subr.bf16.mxu0 0
  %1583 = vmatpush1.bf16.msra.mxu0 0
  %1584 = vmatprep.subr.bf16.mxu0 0
  %1585 = vmatpush1.bf16.msra.mxu0 0
  %1586 = vmatprep.subr.bf16.mxu0 0
  %1587 = vmatpush1.bf16.msra.mxu0 0
  %1588 = vmatprep.subr.bf16.mxu0 0
  %1589 = vmatpush1.bf16.msra.mxu0 0
  %1590 = vmatprep.subr.bf16.mxu0 0
  %1591 = vmatpush1.bf16.msra.mxu0 0
  %1592 = vmatprep.subr.bf16.mxu0 0
  %1593 = vmatpush1.bf16.msra.mxu0 0
  %1594 = vmatprep.mubr.bf16.mxu0 0
  %1595 = vmatmul.mubr.bf16.gmra.mrb[0].mxu0 %v1560
  %v1596 = vpop.f32.mrb[0].mxu0
  %v1597 = vadd.f32 0.0, %v1596
  %v1598 = vpop.f32.mrb[0].mxu0
  %v1599 = vpop.f32.mrb[0].mxu0
  %v1600 = vpop.f32.mrb[0].mxu0
  %1601 = vdwg.mxu0
  %v1602 = vadd.f32 %v1540, %v1597
  %v1603 = vld [vmem:[#allocation5] sm:$0xf]
  %v1604 = vxor.u32 %v1539, 2147483648
  %v1605 = vmul.f32 %v1604, 1.442695
  %v1606 = vpow.pop %v1605
  %v1607 = vadd.f32 %v1606, 1.0
  %v1608 = vrcp.pop %v1607
  %v1609 = vmul.f32 1.0, %v1608
  %v1610 = vtanh.pop %v1539
  %1612 = vrot.lane.b32.xlu0 %v1603, 32
  %v1613 = vpop.permute.xlu0 %1612
  %v1615 = vmul.f32 %v1609, %v1613
  %1617 = vrot.lane.b32.xlu0 %v1610, 64
  %v1618 = vpop.permute.xlu0 %1617
  %v1620 = vmul.f32 %v1609, %v1618
  %1622 = vrot.lane.b32.xlu0 %v1620, 32
  %v1623 = vpop.permute.xlu0 %1622
  %v1625 = vadd.f32 %v1615, %v1623
  %v1626 = vtanh.pop %v1625
  %1628 = vrot.lane.b32.xlu0 %v1626, 64
  %v1629 = vpop.permute.xlu0 %1628
  %v1631 = vmul.f32 %v1609, %v1629
  %v1632 = vld [vmem:[#allocation7] sm:$0xf]
  %v1633 = vxor.u32 %v1602, 2147483648
  %v1634 = vmul.f32 %v1633, 1.442695
  %v1635 = vpow.pop %v1634
  %v1636 = vadd.f32 %v1635, 1.0
  %v1637 = vrcp.pop %v1636
  %v1638 = vmul.f32 1.0, %v1637
  %v1639 = vtanh.pop %v1602
  %1641 = vrot.lane.b32.xlu0 %v1632, 32
  %v1642 = vpop.permute.xlu0 %1641
  %v1644 = vmul.f32 %v1638, %v1642
  %1646 = vrot.lane.b32.xlu0 %v1639, 64
  %v1647 = vpop.permute.xlu0 %1646
  %v1649 = vmul.f32 %v1638, %v1647
  %1651 = vrot.lane.b32.xlu0 %v1649, 32
  %v1652 = vpop.permute.xlu0 %1651
  %v1654 = vadd.f32 %v1644, %v1652
  %v1655 = vtanh.pop %v1654
  %1657 = vrot.lane.b32.xlu0 %v1655, 64
  %v1658 = vpop.permute.xlu0 %1657
  %v1660 = vmul.f32 %v1638, %v1658
  %1662 = vrot.lane.b32.xlu0 %v1631, 32
  %v1663 = vpop.permute.xlu0 %1662
  %v1665 = vsel %vm487, %v1663, %v1478
  %1666 = vst.msk [vmem:[#allocation4] sm:$0xf] %vm19, %v1665
  %v1667 = vld [vmem:[#allocation5] sm:$0xf]
  %1669 = vrot.lane.b32.xlu0 %v1625, 96
  %v1670 = vpop.permute.xlu0 %1669
  %v1672 = vsel %vm487, %v1670, %v1667
  %1673 = vst.msk [vmem:[#allocation5] sm:$0xf] %vm19, %v1672
  %v1674 = vld [vmem:[#allocation6] sm:$0xf]
  %1676 = vrot.lane.b32.xlu0 %v1660, 32
  %v1677 = vpop.permute.xlu0 %1676
  %v1679 = vsel %vm469, %v1677, %v1674
  %1680 = vst.msk [vmem:[#allocation6] sm:$0xf] %vm19, %v1679
  %v1681 = vld [vmem:[#allocation7] sm:$0xf]
  %1683 = vrot.lane.b32.xlu0 %v1654, 96
  %v1684 = vpop.permute.xlu0 %1683
  %v1686 = vsel %vm469, %v1684, %v1681
  %1687 = vst.msk [vmem:[#allocation7] sm:$0xf] %vm19, %v1686
  %v1688 = vmul.f32 %v1631, %v516
  %1690 = vrot.lane.b32.xlu0 %v1688, 32
  %v1691 = vpop.permute.xlu0 %1690
  %s1693 = scalar_lea.vmem [#allocation2], 24
  %1694 = vst.msk [vmem:[%s1693] sm:$0xf] %vm19, %v1691
  %v1695 = vmul.f32 %v1660, %v504
  %1697 = vrot.lane.b32.xlu0 %v1695, 32
  %v1698 = vpop.permute.xlu0 %1697
  %s1700 = scalar_lea.vmem [#allocation3], 4
  %1701 = vst.msk [vmem:[%s1700] sm:$0xf] %vm19, %v1698
  %v1702 = vld [vmem:[%s94] sm:$0xf]
  %v1703 = vld [vmem:[#allocation4] sm:$0xf]
  %v1704 = vpack.c.bf16 %v1703, %v1703
  %v1705 = vld [vmem:[%s2] sm:$0xf]
  %v1706 = vld [vmem:[%s2 + $0x4] sm:$0xf]
  %v1707 = vld [vmem:[%s2 + $0x8] sm:$0xf]
  %v1708 = vld [vmem:[%s2 + $0xc] sm:$0xf]
  %v1713 = vunpack.c.l.b16 %v1705
  %v1714 = vunpack.c.l.b16 %v1706
  %v1715 = vunpack.c.l.b16 %v1707
  %v1716 = vunpack.c.l.b16 %v1708
  %v1717 = vpack.c.b16 %v1714, %v1713
  %v1718 = vpack.c.b16 %v1716, %v1715
  %v1722 = vsel %vm49, %v1704, 0
  %1724 = vmatprep.subr.bf16.mxu0 0
  %1725 = vmatpush1.bf16.msra.mxu0 %v1717
  %1726 = vmatprep.subr.bf16.mxu0 0
  %1727 = vmatpush1.bf16.msra.mxu0 %v1718
  %1728 = vmatprep.subr.bf16.mxu0 0
  %1729 = vmatpush1.bf16.msra.mxu0 0
  %1730 = vmatprep.subr.bf16.mxu0 0
  %1731 = vmatpush1.bf16.msra.mxu0 0
  %1732 = vmatprep.subr.bf16.mxu0 0
  %1733 = vmatpush1.bf16.msra.mxu0 0
  %1734 = vmatprep.subr.bf16.mxu0 0
  %1735 = vmatpush1.bf16.msra.mxu0 0
  %1736 = vmatprep.subr.bf16.mxu0 0
  %1737 = vmatpush1.bf16.msra.mxu0 0
  %1738 = vmatprep.subr.bf16.mxu0 0
  %1739 = vmatpush1.bf16.msra.mxu0 0
  %1740 = vmatprep.subr.bf16.mxu0 0
  %1741 = vmatpush1.bf16.msra.mxu0 0
  %1742 = vmatprep.subr.bf16.mxu0 0
  %1743 = vmatpush1.bf16.msra.mxu0 0
  %1744 = vmatprep.subr.bf16.mxu0 0
  %1745 = vmatpush1.bf16.msra.mxu0 0
  %1746 = vmatprep.subr.bf16.mxu0 0
  %1747 = vmatpush1.bf16.msra.mxu0 0
  %1748 = vmatprep.subr.bf16.mxu0 0
  %1749 = vmatpush1.bf16.msra.mxu0 0
  %1750 = vmatprep.subr.bf16.mxu0 0
  %1751 = vmatpush1.bf16.msra.mxu0 0
  %1752 = vmatprep.subr.bf16.mxu0 0
  %1753 = vmatpush1.bf16.msra.mxu0 0
  %1754 = vmatprep.subr.bf16.mxu0 0
  %1755 = vmatpush1.bf16.msra.mxu0 0
  %1756 = vmatprep.mubr.bf16.mxu0 0
  %1757 = vmatmul.mubr.bf16.gmra.mrb[0].mxu0 %v1722
  %v1758 = vpop.f32.mrb[0].mxu0
  %v1759 = vadd.f32 0.0, %v1758
  %v1760 = vpop.f32.mrb[0].mxu0
  %v1761 = vpop.f32.mrb[0].mxu0
  %v1762 = vpop.f32.mrb[0].mxu0
  %1763 = vdwg.mxu0
  %v1764 = vadd.f32 %v1702, %v1759
  %v1765 = vld [vmem:[%s0 + $0x4] sm:$0xf]
  %v1766 = vld [vmem:[#allocation6] sm:$0xf]
  %v1767 = vpack.c.bf16 %v1766, %v1766
  %v1768 = vld [vmem:[%s3] sm:$0xf]
  %v1769 = vld [vmem:[%s3 + $0x4] sm:$0xf]
  %v1770 = vld [vmem:[%s3 + $0x8] sm:$0xf]
  %v1771 = vld [vmem:[%s3 + $0xc] sm:$0xf]
  %v1776 = vunpack.c.l.b16 %v1768
  %v1777 = vunpack.c.l.b16 %v1769
  %v1778 = vunpack.c.l.b16 %v1770
  %v1779 = vunpack.c.l.b16 %v1771
  %v1780 = vpack.c.b16 %v1777, %v1776
  %v1781 = vpack.c.b16 %v1779, %v1778
  %v1785 = vsel %vm49, %v1767, 0
  %1787 = vmatprep.subr.bf16.mxu0 0
  %1788 = vmatpush1.bf16.msra.mxu0 %v1780
  %1789 = vmatprep.subr.bf16.mxu0 0
  %1790 = vmatpush1.bf16.msra.mxu0 %v1781
  %1791 = vmatprep.subr.bf16.mxu0 0
  %1792 = vmatpush1.bf16.msra.mxu0 0
  %1793 = vmatprep.subr.bf16.mxu0 0
  %1794 = vmatpush1.bf16.msra.mxu0 0
  %1795 = vmatprep.subr.bf16.mxu0 0
  %1796 = vmatpush1.bf16.msra.mxu0 0
  %1797 = vmatprep.subr.bf16.mxu0 0
  %1798 = vmatpush1.bf16.msra.mxu0 0
  %1799 = vmatprep.subr.bf16.mxu0 0
  %1800 = vmatpush1.bf16.msra.mxu0 0
  %1801 = vmatprep.subr.bf16.mxu0 0
  %1802 = vmatpush1.bf16.msra.mxu0 0
  %1803 = vmatprep.subr.bf16.mxu0 0
  %1804 = vmatpush1.bf16.msra.mxu0 0
  %1805 = vmatprep.subr.bf16.mxu0 0
  %1806 = vmatpush1.bf16.msra.mxu0 0
  %1807 = vmatprep.subr.bf16.mxu0 0
  %1808 = vmatpush1.bf16.msra.mxu0 0
  %1809 = vmatprep.subr.bf16.mxu0 0
  %1810 = vmatpush1.bf16.msra.mxu0 0
  %1811 = vmatprep.subr.bf16.mxu0 0
  %1812 = vmatpush1.bf16.msra.mxu0 0
  %1813 = vmatprep.subr.bf16.mxu0 0
  %1814 = vmatpush1.bf16.msra.mxu0 0
  %1815 = vmatprep.subr.bf16.mxu0 0
  %1816 = vmatpush1.bf16.msra.mxu0 0
  %1817 = vmatprep.subr.bf16.mxu0 0
  %1818 = vmatpush1.bf16.msra.mxu0 0
  %1819 = vmatprep.mubr.bf16.mxu0 0
  %1820 = vmatmul.mubr.bf16.gmra.mrb[0].mxu0 %v1785
  %v1821 = vpop.f32.mrb[0].mxu0
  %v1822 = vadd.f32 0.0, %v1821
  %v1823 = vpop.f32.mrb[0].mxu0
  %v1824 = vpop.f32.mrb[0].mxu0
  %v1825 = vpop.f32.mrb[0].mxu0
  %1826 = vdwg.mxu0
  %v1827 = vadd.f32 %v1765, %v1822
  %v1828 = vld [vmem:[#allocation5] sm:$0xf]
  %v1829 = vxor.u32 %v1764, 2147483648
  %v1830 = vmul.f32 %v1829, 1.442695
  %v1831 = vpow.pop %v1830
  %v1832 = vadd.f32 %v1831, 1.0
  %v1833 = vrcp.pop %v1832
  %v1834 = vmul.f32 1.0, %v1833
  %v1835 = vtanh.pop %v1764
  %1837 = vrot.lane.b32.xlu0 %v1828, 32
  %v1838 = vpop.permute.xlu0 %1837
  %v1840 = vmul.f32 %v1834, %v1838
  %1842 = vrot.lane.b32.xlu0 %v1835, 64
  %v1843 = vpop.permute.xlu0 %1842
  %v1845 = vmul.f32 %v1834, %v1843
  %1847 = vrot.lane.b32.xlu0 %v1845, 32
  %v1848 = vpop.permute.xlu0 %1847
  %v1850 = vadd.f32 %v1840, %v1848
  %v1851 = vtanh.pop %v1850
  %1853 = vrot.lane.b32.xlu0 %v1851, 64
  %v1854 = vpop.permute.xlu0 %1853
  %v1856 = vmul.f32 %v1834, %v1854
  %v1857 = vld [vmem:[#allocation7] sm:$0xf]
  %v1858 = vxor.u32 %v1827, 2147483648
  %v1859 = vmul.f32 %v1858, 1.442695
  %v1860 = vpow.pop %v1859
  %v1861 = vadd.f32 %v1860, 1.0
  %v1862 = vrcp.pop %v1861
  %v1863 = vmul.f32 1.0, %v1862
  %v1864 = vtanh.pop %v1827
  %1866 = vrot.lane.b32.xlu0 %v1857, 32
  %v1867 = vpop.permute.xlu0 %1866
  %v1869 = vmul.f32 %v1863, %v1867
  %1871 = vrot.lane.b32.xlu0 %v1864, 64
  %v1872 = vpop.permute.xlu0 %1871
  %v1874 = vmul.f32 %v1863, %v1872
  %1876 = vrot.lane.b32.xlu0 %v1874, 32
  %v1877 = vpop.permute.xlu0 %1876
  %v1879 = vadd.f32 %v1869, %v1877
  %v1880 = vtanh.pop %v1879
  %1882 = vrot.lane.b32.xlu0 %v1880, 64
  %v1883 = vpop.permute.xlu0 %1882
  %v1885 = vmul.f32 %v1863, %v1883
  %1887 = vrot.lane.b32.xlu0 %v1856, 32
  %v1888 = vpop.permute.xlu0 %1887
  %v1890 = vsel %vm237, %v1888, %v1703
  %1891 = vst.msk [vmem:[#allocation4] sm:$0xf] %vm19, %v1890
  %v1892 = vld [vmem:[#allocation5] sm:$0xf]
  %1894 = vrot.lane.b32.xlu0 %v1850, 96
  %v1895 = vpop.permute.xlu0 %1894
  %v1897 = vsel %vm237, %v1895, %v1892
  %1898 = vst.msk [vmem:[#allocation5] sm:$0xf] %vm19, %v1897
  %v1899 = vld [vmem:[#allocation6] sm:$0xf]
  %1901 = vrot.lane.b32.xlu0 %v1885, 32
  %v1902 = vpop.permute.xlu0 %1901
  %v1904 = vsel %vm219, %v1902, %v1899
  %1905 = vst.msk [vmem:[#allocation6] sm:$0xf] %vm19, %v1904
  %v1906 = vld [vmem:[#allocation7] sm:$0xf]
  %1908 = vrot.lane.b32.xlu0 %v1879, 96
  %v1909 = vpop.permute.xlu0 %1908
  %v1911 = vsel %vm219, %v1909, %v1906
  %1912 = vst.msk [vmem:[#allocation7] sm:$0xf] %vm19, %v1911
  %v1913 = vmul.f32 %v1856, %v265
  %1915 = vrot.lane.b32.xlu0 %v1913, 32
  %v1916 = vpop.permute.xlu0 %1915
  %s1918 = scalar_lea.vmem [#allocation2], 28
  %1919 = vst.msk [vmem:[%s1918] sm:$0xf] %vm19, %v1916
  %v1920 = vmul.f32 %v1885, %v254
  %1922 = vrot.lane.b32.xlu0 %v1920, 32
  %v1923 = vpop.permute.xlu0 %1922
  %1925 = vst.msk [vmem:[#allocation3] sm:$0xf] %vm19, %v1923
  %v1926 = vld [vmem:[#allocation2] sm:$0xf]
  %v1927 = vld [vmem:[#allocation2 + $0x4] sm:$0xf]
  %v1928 = vld [vmem:[#allocation2 + $0x8] sm:$0xf]
  %v1929 = vld [vmem:[#allocation2 + $0xc] sm:$0xf]
  %v1930 = vld [vmem:[#allocation2 + $0x10] sm:$0xf]
  %v1931 = vld [vmem:[#allocation2 + $0x14] sm:$0xf]
  %v1932 = vld [vmem:[#allocation2 + $0x18] sm:$0xf]
  %v1933 = vld [vmem:[#allocation2 + $0x1c] sm:$0xf]
  %1934 = vst.msk [vmem:[%s4] sm:$0xf] %vm19, %v1926
  %1935 = vst.msk [vmem:[%s4 + $0x4] sm:$0xf] %vm19, %v1927
  %1936 = vst.msk [vmem:[%s4 + $0x8] sm:$0xf] %vm19, %v1928
  %1937 = vst.msk [vmem:[%s4 + $0xc] sm:$0xf] %vm19, %v1929
  %1938 = vst.msk [vmem:[%s4 + $0x10] sm:$0xf] %vm19, %v1930
  %1939 = vst.msk [vmem:[%s4 + $0x14] sm:$0xf] %vm19, %v1931
  %1940 = vst.msk [vmem:[%s4 + $0x18] sm:$0xf] %vm19, %v1932
  %1941 = vst.msk [vmem:[%s4 + $0x1c] sm:$0xf] %vm19, %v1933
  %v1942 = vld [vmem:[#allocation3] sm:$0xf]
  %v1943 = vld [vmem:[#allocation3 + $0x4] sm:$0xf]
  %v1944 = vld [vmem:[#allocation3 + $0x8] sm:$0xf]
  %v1945 = vld [vmem:[#allocation3 + $0xc] sm:$0xf]
  %v1946 = vld [vmem:[#allocation3 + $0x10] sm:$0xf]
  %v1947 = vld [vmem:[#allocation3 + $0x14] sm:$0xf]
  %v1948 = vld [vmem:[#allocation3 + $0x18] sm:$0xf]
  %v1949 = vld [vmem:[#allocation3 + $0x1c] sm:$0xf]
  %1958 = vrot.lane.b32.xlu0 %v1942, 32
  %v1959 = vpop.permute.xlu0 %1958
  %1960 = vrot.lane.b32.xlu0 %v1943, 32
  %v1961 = vpop.permute.xlu0 %1960
  %1962 = vrot.lane.b32.xlu0 %v1944, 32
  %v1963 = vpop.permute.xlu0 %1962
  %1964 = vrot.lane.b32.xlu0 %v1945, 32
  %v1965 = vpop.permute.xlu0 %1964
  %1966 = vrot.lane.b32.xlu0 %v1946, 32
  %v1967 = vpop.permute.xlu0 %1966
  %1968 = vrot.lane.b32.xlu0 %v1947, 32
  %v1969 = vpop.permute.xlu0 %1968
  %1970 = vrot.lane.b32.xlu0 %v1948, 32
  %v1971 = vpop.permute.xlu0 %1970
  %1972 = vrot.lane.b32.xlu0 %v1949, 32
  %v1973 = vpop.permute.xlu0 %1972
  %vm1982 = vcmask 519424
  %1983 = vst.msk [vmem:[%s4] sm:$0xf] %vm1982, %v1959
  %1984 = vst.msk [vmem:[%s4 + $0x4] sm:$0xf] %vm1982, %v1961
  %1985 = vst.msk [vmem:[%s4 + $0x8] sm:$0xf] %vm1982, %v1963
  %1986 = vst.msk [vmem:[%s4 + $0xc] sm:$0xf] %vm1982, %v1965
  %1987 = vst.msk [vmem:[%s4 + $0x10] sm:$0xf] %vm1982, %v1967
  %1988 = vst.msk [vmem:[%s4 + $0x14] sm:$0xf] %vm1982, %v1969
  %1989 = vst.msk [vmem:[%s4 + $0x18] sm:$0xf] %vm1982, %v1971
  %1990 = vst.msk [vmem:[%s4 + $0x1c] sm:$0xf] %vm1982, %v1973
  // Predicated region
  $region18: #{_lambda_.6} parent=0 // pred_check
    _
  $region19: #{_lambda_.6} parent=0 // pred_check_branch
    %1992 = sbr.rel (0) target = $region21
  $region20: #{_lambda_.6} parent=0 // pred_region
    _
  $region21: #{_lambda_.6} parent=0 // pred_fallthru
    _
  // Predicated region
  $region22: #{_lambda_.6} parent=0 // pred_check
    _
  $region23: #{_lambda_.6} parent=0 // pred_check_branch
    %1994 = sbr.rel (0) target = $region25
  $region24: #{_lambda_.6} parent=0 // pred_region
    _
  $region25: #{_lambda_.6} parent=0 // pred_fallthru
    _

</llo_original>
